<compile_context>
chip_gen: v7x
topology: tpu7x:2x2x1
jax: 0.10.0
libtpu: 0.0.40
codegen_flags: <defaults>
</compile_context>

<pallas_src>
import functools
import math

import jax
import jax.numpy as jnp
from jax.experimental import pallas as pl
from jax.experimental.pallas import tpu as pltpu

LANE = 128


# ----------------------------------------------------------------------------
# Pallas kernel: one RGCNConv layer (+ optional relu / masked log_softmax)
# ----------------------------------------------------------------------------
def rgcn_layer_kernel(x_src_ref, x_dst_ref, adj_ref, invdeg_ref, wrel_ref, wroot_ref,
                      b_ref, nt_ref, out_ref, agg_ref, acc_ref, *,
                      num_node_types, cout, apply_relu, apply_log_softmax):
    e = pl.program_id(1)
    k = pl.program_id(2)
    last_e = pl.num_programs(1) - 1
    last_k = pl.num_programs(2) - 1

    @pl.when((e == 0) & (k == 0))
    def _():
        acc_ref[...] = jnp.zeros_like(acc_ref)

    @pl.when(k == 0)
    def _():
        agg_ref[...] = jnp.zeros_like(agg_ref)

    # Mean-aggregation partial sum for edge type e over this source chunk:
    #   agg += adj_e[tile_n, tile_k] @ x_src[tile_k, Cin_p]     (raw counts, f32 acc)
    agg_ref[...] += jnp.dot(adj_ref[0], x_src_ref[...],
                            preferred_element_type=jnp.float32)

    @pl.when(k == last_k)
    def _():
        # Mean normalization (f32 per-destination-row scale) then relation projection.
        agg = agg_ref[...] * invdeg_ref[0]                       # [tile_n, Cin_p] f32
        acc_ref[...] += jnp.dot(agg.astype(jnp.bfloat16), wrel_ref[0],
                                preferred_element_type=jnp.float32)

    @pl.when((e == last_e) & (k == last_k))
    def _():
        acc = acc_ref[...]

        # Root path: per-node-type masked dots + pre-gathered per-node bias.
        x_dst = x_dst_ref[...]                                   # [tile_n, Cin_p] bf16
        nt = nt_ref[...]                                         # [tile_n, 1] int32
        for t in range(num_node_types):
            x_t = jnp.where(nt == t, x_dst, jnp.zeros_like(x_dst))
            acc = acc + jnp.dot(x_t, wroot_ref[t],
                                preferred_element_type=jnp.float32)
        acc = acc + b_ref[...]                                   # zero rows for pad nodes

        if apply_relu:
            acc = jnp.maximum(acc, 0.0)
        if apply_log_softmax:
            # log_softmax over the REAL output columns only (rest is lane padding).
            col = jax.lax.broadcasted_iota(jnp.int32, acc.shape, 1)
            valid = col < cout
            acc_m = jnp.where(valid, acc, jnp.full_like(acc, -1e30))
            m = jnp.max(acc_m, axis=-1, keepdims=True)
            lse = m + jnp.log(jnp.sum(jnp.exp(acc_m - m), axis=-1, keepdims=True))
            acc = jnp.where(valid, acc - lse, 0.0)

        out_ref[...] = acc.astype(out_ref.dtype)


def rgcn_conv(x_pad, adj, inv_deg, wrel_p, wroot_p, b_node, nt_col, *,
              cout, apply_relu, apply_log_softmax, tile_n, tile_k, out_dtype):
    n_p, cin_p = x_pad.shape
    num_edge_types = adj.shape[0]
    num_node_types = wroot_p.shape[0]
    cout_p = wrel_p.shape[-1]
    assert n_p % tile_n == 0 and n_p % tile_k == 0

    kernel = functools.partial(
        rgcn_layer_kernel,
        num_node_types=num_node_types, cout=cout,
        apply_relu=apply_relu, apply_log_softmax=apply_log_softmax)

    # Per-step VMEM footprint (double-buffered inputs + f32 scratch accumulators).
    vmem_bytes = (
        2 * tile_k * cin_p * 2 +                    # x source chunk (bf16)
        2 * tile_n * cin_p * 2 +                    # x dest tile (bf16)
        2 * tile_n * tile_k * 2 +                   # adj counts (bf16)
        2 * tile_n * LANE * 4 +                     # inv_deg (lane-padded f32)
        2 * cin_p * cout_p * 2 +                    # W_rel[e] (bf16)
        2 * num_node_types * cin_p * cout_p * 2 +   # W_root (bf16)
        2 * tile_n * cout_p * 4 +                   # per-node bias (f32)
        2 * tile_n * LANE * 4 +                     # node types (lane-padded i32)
        2 * tile_n * cout_p * 4 +                   # output block (worst case f32)
        tile_n * cin_p * 4 + tile_n * cout_p * 4)   # scratch accumulators
    vmem_limit = min(max(2 * vmem_bytes + (4 << 20), 32 << 20), 64 << 20)

    flops = (2 * num_edge_types * n_p * n_p * cin_p            # aggregation
             + 2 * num_edge_types * n_p * cin_p * cout_p       # relation projection
             + 2 * num_node_types * n_p * cin_p * cout_p)      # root projection
    transcendentals = n_p * cout_p if apply_log_softmax else 0
    bytes_accessed = int(num_edge_types * n_p * n_p * 2        # adj counts
                         + num_edge_types * n_p * 4            # inv_deg
                         + 2 * n_p * cin_p * 2                 # x (src + dst streams)
                         + (num_edge_types + num_node_types) * cin_p * cout_p * 2
                         + n_p * cout_p * 4                    # bias
                         + n_p * cout_p * jnp.dtype(out_dtype).itemsize)

    return pl.pallas_call(
        kernel,
        out_shape=jax.ShapeDtypeStruct((n_p, cout_p), out_dtype),
        grid_spec=pltpu.PrefetchScalarGridSpec(
            num_scalar_prefetch=0,
            grid=(n_p // tile_n, num_edge_types, n_p // tile_k),
            in_specs=[
                pl.BlockSpec((tile_k, cin_p), lambda i, e, k: (k, 0)),        # x: src chunk
                pl.BlockSpec((tile_n, cin_p), lambda i, e, k: (i, 0)),        # x: dst tile
                pl.BlockSpec((1, tile_n, tile_k), lambda i, e, k: (e, i, k)),  # adj counts
                pl.BlockSpec((1, tile_n, 1), lambda i, e, k: (e, i, 0)),      # 1/deg
                pl.BlockSpec((1, cin_p, cout_p), lambda i, e, k: (e, 0, 0)),  # W_rel[e]
                pl.BlockSpec((num_node_types, cin_p, cout_p),
                             lambda i, e, k: (0, 0, 0)),                      # W_root
                pl.BlockSpec((tile_n, cout_p), lambda i, e, k: (i, 0)),       # per-node bias
                pl.BlockSpec((tile_n, 1), lambda i, e, k: (i, 0)),            # node types
            ],
            out_specs=pl.BlockSpec((tile_n, cout_p), lambda i, e, k: (i, 0)),
            scratch_shapes=[pltpu.VMEM((tile_n, cin_p), jnp.float32),
                            pltpu.VMEM((tile_n, cout_p), jnp.float32)]),
        compiler_params=pltpu.CompilerParams(
            dimension_semantics=("parallel", "arbitrary", "arbitrary"),
            vmem_limit_bytes=vmem_limit),
        cost_estimate=pl.CostEstimate(flops=flops, transcendentals=transcendentals,
                                      bytes_accessed=bytes_accessed),
    )(x_pad, x_pad, adj, inv_deg, wrel_p, wroot_p, b_node, nt_col)


# ----------------------------------------------------------------------------
# Glue (plain JAX): gather, dense adjacency + inv-degree, padding, parameter init
# ----------------------------------------------------------------------------
def _pad2d(x, r, c):
    return jnp.pad(x, ((0, r - x.shape[0]), (0, c - x.shape[1])))


def _pad3d(x, a, b, c):
    return jnp.pad(x, ((0, a - x.shape[0]), (0, b - x.shape[1]), (0, c - x.shape[2])))


def group_input(x_dict, emb_dict, node_type, local_node_idx, in_channels):
    n = node_type.shape[0]
    h = jnp.zeros((n, in_channels), jnp.float32)
    for key, x in x_dict.items():
        mask = (node_type == key)[:, None]
        idx = jnp.clip(local_node_idx, 0, x.shape[0] - 1)
        h = jnp.where(mask, x[idx], h)
    for key, emb in emb_dict.items():
        mask = (node_type == int(key))[:, None]
        idx = jnp.clip(local_node_idx, 0, emb.shape[0] - 1)
        h = jnp.where(mask, emb[idx], h)
    return h


def build_adj_and_invdeg(edge_index, edge_type, num_edge_types, n_pad):
    # adj[e, t, s] = multiplicity of edge s->t with type e (raw counts, exact in bf16).
    # Mean normalization is applied in-kernel as an f32 row scale (inv_deg).
    src, tgt = edge_index[0], edge_index[1]
    adj = jnp.zeros((num_edge_types, n_pad, n_pad), jnp.float32)
    adj = adj.at[edge_type, tgt, src].add(1.0)
    deg = jnp.sum(adj, axis=-1, keepdims=True)
    inv_deg = (1.0 / jnp.maximum(deg, 1.0)).astype(jnp.float32)   # [E, n_pad, 1]
    return adj.astype(jnp.bfloat16), inv_deg


def init_linear(key, fan_in, fan_out, bias):
    k1, k2 = jax.random.split(key)
    bound = 1.0 / jnp.sqrt(jnp.float32(fan_in))
    w = jax.random.uniform(k1, (fan_in, fan_out), jnp.float32, -bound, bound)
    if bias:
        b = jax.random.uniform(k2, (1, fan_out), jnp.float32, -bound, bound)
        return w, b
    return w, None


def init_rgcn_params(key, in_c, hid_c, out_c, num_layers, num_node_types, num_edge_types):
    dims = [in_c] + [hid_c] * (num_layers - 1) + [out_c]
    convs = []
    for layer in range(num_layers):
        ci, co = dims[layer], dims[layer + 1]
        w_rel, w_root, b_root = [], [], []
        for _ in range(num_edge_types):
            key, sub = jax.random.split(key)
            w, _unused = init_linear(sub, ci, co, bias=False)
            w_rel.append(w)
        for _ in range(num_node_types):
            key, sub = jax.random.split(key)
            w, b = init_linear(sub, ci, co, bias=True)
            w_root.append(w)
            b_root.append(b)
        convs.append({
            "w_rel": jnp.stack(w_rel),        # [E_types, Cin, Cout]
            "w_root": jnp.stack(w_root),      # [N_types, Cin, Cout]
            "b_root": jnp.stack(b_root),      # [N_types, 1, Cout]
        })
    return convs


def rgcn_forward(convs, x_dict, emb_dict, edge_index, edge_type, node_type,
                 local_node_idx, *, in_channels, num_node_types, num_edge_types,
                 tile_n=256, tile_k=256):
    num_layers = len(convs)
    n_real = node_type.shape[0]
    step = math.lcm(tile_n, tile_k)
    n_p = pl.cdiv(n_real, step) * step

    x = group_input(x_dict, emb_dict, node_type, local_node_idx, in_channels)
    cin_p0 = pl.cdiv(in_channels, LANE) * LANE
    x = _pad2d(x, n_p, cin_p0).astype(jnp.bfloat16)

    adj, inv_deg = build_adj_and_invdeg(edge_index, edge_type, num_edge_types, n_p)

    # Padded (fake) nodes get type -1 -> no root-weight match and zero bias.
    nt_full = jnp.full((n_p,), -1, jnp.int32).at[:n_real].set(node_type.astype(jnp.int32))
    nt_col = nt_full[:, None]
    bias_gather_idx = jnp.where(nt_full >= 0, nt_full, num_node_types)

    for i, layer in enumerate(convs):
        last = (i == num_layers - 1)
        _e, cin, cout = layer["w_rel"].shape
        cin_p = pl.cdiv(cin, LANE) * LANE
        cout_p = pl.cdiv(cout, LANE) * LANE

        wrel_p = _pad3d(layer["w_rel"], num_edge_types, cin_p, cout_p).astype(jnp.bfloat16)
        wroot_p = _pad3d(layer["w_root"], num_node_types, cin_p, cout_p).astype(jnp.bfloat16)
        b_pad = _pad2d(layer["b_root"][:, 0, :], num_node_types, cout_p).astype(jnp.float32)
        b_ext = jnp.concatenate([b_pad, jnp.zeros((1, cout_p), jnp.float32)], axis=0)
        b_node = b_ext[bias_gather_idx]                          # [n_p, cout_p] per-node bias

        x = rgcn_conv(x, adj, inv_deg, wrel_p, wroot_p, b_node, nt_col,
                      cout=cout, apply_relu=not last, apply_log_softmax=last,
                      tile_n=tile_n, tile_k=tile_k,
                      out_dtype=jnp.float32 if last else jnp.bfloat16)
        # TODO(synk): F.dropout(p=0.5) is identity in eval mode; training dropout omitted.

    out_channels = convs[-1]["w_rel"].shape[-1]
    return x[:n_real, :out_channels]


# ----------------------------------------------------------------------------
# Pure-JAX f32 reference (for correctness check)
# ----------------------------------------------------------------------------
def rgcn_reference(convs, x0, edge_index, edge_type, node_type, *,
                   num_node_types, num_edge_types):
    n = x0.shape[0]
    src, tgt = edge_index[0], edge_index[1]
    adj = jnp.zeros((num_edge_types, n, n), jnp.float32).at[edge_type, tgt, src].add(1.0)
    adj = adj / jnp.maximum(jnp.sum(adj, axis=-1, keepdims=True), 1.0)
    x = x0.astype(jnp.float32)
    num_layers = len(convs)
    for i, layer in enumerate(convs):
        cout = layer["w_rel"].shape[-1]
        out = jnp.zeros((n, cout), jnp.float32)
        for e in range(num_edge_types):
            out = out + (adj[e] @ x) @ layer["w_rel"][e]
        for t in range(num_node_types):
            mask = (node_type == t)[:, None].astype(jnp.float32)
            out = out + mask * (x @ layer["w_root"][t] + layer["b_root"][t])
        x = jnp.maximum(out, 0.0) if i != num_layers - 1 else jax.nn.log_softmax(out, -1)
    return x


# ----------------------------------------------------------------------------
# Driver
# ----------------------------------------------------------------------------
if __name__ == "__main__":
    key = jax.random.PRNGKey(0)

    in_channels, hidden_channels, out_channels = 32, 32, 16
    num_layers = 2
    num_node_types = 3
    num_edge_types = 4
    num_nodes_dict = {0: 40, 1: 30, 2: 20}   # node type 2 has no features -> embedding
    N = 200                                  # nodes in the sampled subgraph
    E = 800                                  # edges in the sampled subgraph

    ks = jax.random.split(key, 10)
    x_dict = {
        0: jax.random.normal(ks[0], (num_nodes_dict[0], in_channels), jnp.float32),
        1: jax.random.normal(ks[1], (num_nodes_dict[1], in_channels), jnp.float32),
    }
    emb_dict = {2: jax.random.normal(ks[2], (num_nodes_dict[2], in_channels), jnp.float32) * 0.1}

    node_type = jax.random.randint(ks[3], (N,), 0, num_node_types)
    max_per_type = jnp.array([num_nodes_dict[t] for t in range(num_node_types)], jnp.int32)
    local_node_idx = jax.random.randint(ks[4], (N,), 0, 10_000) % max_per_type[node_type]

    src = jax.random.randint(ks[5], (E,), 0, N)
    tgt = jax.random.randint(ks[6], (E,), 0, N)
    edge_index = jnp.stack([src, tgt])                      # [2, E], row0=src(j), row1=tgt(i)
    edge_type = jax.random.randint(ks[7], (E,), 0, num_edge_types)

    convs = init_rgcn_params(ks[8], in_channels, hidden_channels, out_channels,
                             num_layers, num_node_types, num_edge_types)

    # Pure-JAX f32 reference.
    x0 = group_input(x_dict, emb_dict, node_type, local_node_idx, in_channels)
    ref = rgcn_reference(convs, x0, edge_index, edge_type, node_type,
                         num_node_types=num_node_types, num_edge_types=num_edge_types)

    # Run with the production default (256) and with small tiles that exercise the
    # multi-tile / multi-chunk accumulation paths (grid = (2, 4, 2)).
    for tn, tk in ((256, 256), (128, 128)):
        out = rgcn_forward(convs, x_dict, emb_dict, edge_index, edge_type, node_type,
                           local_node_idx, in_channels=in_channels,
                           num_node_types=num_node_types, num_edge_types=num_edge_types,
                           tile_n=tn, tile_k=tk)
        out = jax.block_until_ready(out)

        assert out.shape == (N, out_channels) and out.dtype == jnp.float32
        # rows of log_softmax must exp-sum to 1
        assert bool(jnp.allclose(jnp.sum(jnp.exp(out), axis=-1), 1.0, atol=1e-3))
        # compare against pure-JAX f32 reference (bf16 operands -> loose tolerance)
        max_err = float(jnp.max(jnp.abs(out - ref)))
        assert max_err < 0.25, (tn, tk, max_err)

    print("KERNEL_OK")
</pallas_src>

<mosaic_0001>
module attributes {stable_mosaic.version = 11 : i64} {
  func.func @rgcn_layer_kernel(%arg0: i32, %arg1: i32, %arg2: i32, %arg3: memref<256x128xbf16, #tpu.memory_space<vmem>>, %arg4: memref<256x128xbf16, #tpu.memory_space<vmem>>, %arg5: memref<1x256x256xbf16, #tpu.memory_space<vmem>>, %arg6: memref<1x256x1xf32, #tpu.memory_space<vmem>>, %arg7: memref<1x128x128xbf16, #tpu.memory_space<vmem>>, %arg8: memref<3x128x128xbf16, #tpu.memory_space<vmem>>, %arg9: memref<256x128xf32, #tpu.memory_space<vmem>>, %arg10: memref<256x1xi32, #tpu.memory_space<vmem>>, %arg11: memref<256x128xbf16, #tpu.memory_space<vmem>>, %arg12: memref<256x128xf32, #tpu.memory_space<vmem>>, %arg13: memref<256x128xf32, #tpu.memory_space<vmem>>) attributes {dimension_semantics = [#tpu.dimension_semantics<parallel>, #tpu.dimension_semantics<arbitrary>, #tpu.dimension_semantics<arbitrary>], iteration_bounds = array<i64: 1, 4, 1>, scalar_prefetch = 0 : i64, scratch_operands = 2 : i64, tpu.core_type = #tpu.core_type<tc>, window_params = [{transform_indices = @transform_0, window_bounds = array<i64: 256, 128>}, {transform_indices = @transform_1, window_bounds = array<i64: 256, 128>}, {transform_indices = @transform_2, window_bounds = array<i64: 1, 256, 256>}, {transform_indices = @transform_3, window_bounds = array<i64: 1, 256, 1>}, {transform_indices = @transform_4, window_bounds = array<i64: 1, 128, 128>}, {pipeline_mode = #tpu.pipeline_mode<synchronous>, transform_indices = @transform_5, window_bounds = array<i64: 3, 128, 128>}, {transform_indices = @transform_6, window_bounds = array<i64: 256, 128>}, {transform_indices = @transform_7, window_bounds = array<i64: 256, 1>}, {transform_indices = @transform_8, window_bounds = array<i64: 256, 128>}]} {
    %c0_i32 = arith.constant 0 : i32
    %0 = arith.cmpi eq, %arg1, %c0_i32 : i32
    %c0_i32_0 = arith.constant 0 : i32
    %1 = arith.cmpi eq, %arg2, %c0_i32_0 : i32
    %2 = arith.andi %0, %1 : i1
    %3 = arith.extui %2 : i1 to i32
    %c0_i32_1 = arith.constant 0 : i32
    %4 = arith.cmpi ne, %3, %c0_i32_1 : i32
    scf.if %4 {
      %cst_16 = arith.constant 0.000000e+00 : f32
      %23 = vector.broadcast %cst_16 : f32 to vector<256x128xf32>
      %c0_17 = arith.constant 0 : index
      %c0_18 = arith.constant 0 : index
      %24 = vector.load %arg13[%c0_17, %c0_18] : memref<256x128xf32, #tpu.memory_space<vmem>>, vector<256x128xf32>
      tpu.vector_store %arg13[%c0_17, %c0_18], %23 {strides = array<i32>} : memref<256x128xf32, #tpu.memory_space<vmem>>, vector<256x128xf32>,
    } else {
    }
    %c0_i32_2 = arith.constant 0 : i32
    %5 = arith.cmpi eq, %arg2, %c0_i32_2 : i32
    %6 = arith.extui %5 : i1 to i32
    %c0_i32_3 = arith.constant 0 : i32
    %7 = arith.cmpi ne, %6, %c0_i32_3 : i32
    scf.if %7 {
      %cst_16 = arith.constant 0.000000e+00 : f32
      %23 = vector.broadcast %cst_16 : f32 to vector<256x128xf32>
      %c0_17 = arith.constant 0 : index
      %c0_18 = arith.constant 0 : index
      %24 = vector.load %arg12[%c0_17, %c0_18] : memref<256x128xf32, #tpu.memory_space<vmem>>, vector<256x128xf32>
      tpu.vector_store %arg12[%c0_17, %c0_18], %23 {strides = array<i32>} : memref<256x128xf32, #tpu.memory_space<vmem>>, vector<256x128xf32>,
    } else {
    }
    %c0 = arith.constant 0 : index
    %c0_4 = arith.constant 0 : index
    %8 = vector.load %arg12[%c0, %c0_4] : memref<256x128xf32, #tpu.memory_space<vmem>>, vector<256x128xf32>
    %c0_5 = arith.constant 0 : index
    %c0_6 = arith.constant 0 : index
    %c0_7 = arith.constant 0 : index
    %9 = vector.load %arg5[%c0_5, %c0_6, %c0_7] : memref<1x256x256xbf16, #tpu.memory_space<vmem>>, vector<1x256x256xbf16>
    %10 = vector.shape_cast %9 : vector<1x256x256xbf16> to vector<256x256xbf16>
    %c0_8 = arith.constant 0 : index
    %c0_9 = arith.constant 0 : index
    %11 = vector.load %arg3[%c0_8, %c0_9] : memref<256x128xbf16, #tpu.memory_space<vmem>>, vector<256x128xbf16>
    %cst = arith.constant dense<0.000000e+00> : vector<256x128xf32>
    %12 = tpu.matmul %10, %11, %cst {dimension_numbers = #tpu.dot_dimension_numbers<[1], [0], [0], [1], [0, 0, 1, 1], [], []>} : vector<256x256xbf16>, vector<256x128xbf16>, vector<256x128xf32> -> vector<256x128xf32>
    %13 = arith.addf %8, %12 : vector<256x128xf32>
    %c0_10 = arith.constant 0 : index
    %c0_11 = arith.constant 0 : index
    %14 = vector.load %arg12[%c0_10, %c0_11] : memref<256x128xf32, #tpu.memory_space<vmem>>, vector<256x128xf32>
    tpu.vector_store %arg12[%c0_10, %c0_11], %13 {strides = array<i32>} : memref<256x128xf32, #tpu.memory_space<vmem>>, vector<256x128xf32>,
    %c0_i32_12 = arith.constant 0 : i32
    %15 = arith.cmpi eq, %arg2, %c0_i32_12 : i32
    %16 = arith.extui %15 : i1 to i32
    %c0_i32_13 = arith.constant 0 : i32
    %17 = arith.cmpi ne, %16, %c0_i32_13 : i32
    scf.if %17 {
      %c0_16 = arith.constant 0 : index
      %c0_17 = arith.constant 0 : index
      %23 = vector.load %arg12[%c0_16, %c0_17] : memref<256x128xf32, #tpu.memory_space<vmem>>, vector<256x128xf32>
      %c0_18 = arith.constant 0 : index
      %c0_19 = arith.constant 0 : index
      %c0_20 = arith.constant 0 : index
      %24 = vector.load %arg6[%c0_18, %c0_19, %c0_20] : memref<1x256x1xf32, #tpu.memory_space<vmem>>, vector<1x256x1xf32>
      %25 = vector.shape_cast %24 : vector<1x256x1xf32> to vector<256x1xf32>
      %26 = vector.broadcast %25 : vector<256x1xf32> to vector<256x128xf32>
      %27 = arith.mulf %23, %26 : vector<256x128xf32>
      %c0_21 = arith.constant 0 : index
      %c0_22 = arith.constant 0 : index
      %28 = vector.load %arg13[%c0_21, %c0_22] : memref<256x128xf32, #tpu.memory_space<vmem>>, vector<256x128xf32>
      %29 = arith.truncf %27 : vector<256x128xf32> to vector<256x128xbf16>
      %c0_23 = arith.constant 0 : index
      %c0_24 = arith.constant 0 : index
      %c0_25 = arith.constant 0 : index
      %30 = vector.load %arg7[%c0_23, %c0_24, %c0_25] : memref<1x128x128xbf16, #tpu.memory_space<vmem>>, vector<1x128x128xbf16>
      %31 = vector.shape_cast %30 : vector<1x128x128xbf16> to vector<128x128xbf16>
      %cst_26 = arith.constant dense<0.000000e+00> : vector<256x128xf32>
      %32 = tpu.matmul %29, %31, %cst_26 {dimension_numbers = #tpu.dot_dimension_numbers<[1], [0], [0], [1], [0, 0, 1, 1], [], []>} : vector<256x128xbf16>, vector<128x128xbf16>, vector<256x128xf32> -> vector<256x128xf32>
      %33 = arith.addf %28, %32 : vector<256x128xf32>
      %c0_27 = arith.constant 0 : index
      %c0_28 = arith.constant 0 : index
      %34 = vector.load %arg13[%c0_27, %c0_28] : memref<256x128xf32, #tpu.memory_space<vmem>>, vector<256x128xf32>
      tpu.vector_store %arg13[%c0_27, %c0_28], %33 {strides = array<i32>} : memref<256x128xf32, #tpu.memory_space<vmem>>, vector<256x128xf32>,
    } else {
    }
    %c3_i32 = arith.constant 3 : i32
    %18 = arith.cmpi eq, %arg1, %c3_i32 : i32
    %c0_i32_14 = arith.constant 0 : i32
    %19 = arith.cmpi eq, %arg2, %c0_i32_14 : i32
    %20 = arith.andi %18, %19 : i1
    %21 = arith.extui %20 : i1 to i32
    %c0_i32_15 = arith.constant 0 : i32
    %22 = arith.cmpi ne, %21, %c0_i32_15 : i32
    scf.if %22 {
      %c0_16 = arith.constant 0 : index
      %c0_17 = arith.constant 0 : index
      %23 = vector.load %arg13[%c0_16, %c0_17] : memref<256x128xf32, #tpu.memory_space<vmem>>, vector<256x128xf32>
      %c0_18 = arith.constant 0 : index
      %c0_19 = arith.constant 0 : index
      %24 = vector.load %arg4[%c0_18, %c0_19] : memref<256x128xbf16, #tpu.memory_space<vmem>>, vector<256x128xbf16>
      %c0_20 = arith.constant 0 : index
      %c0_21 = arith.constant 0 : index
      %25 = vector.load %arg10[%c0_20, %c0_21] : memref<256x1xi32, #tpu.memory_space<vmem>>, vector<256x1xi32>
      %c0_i32_22 = arith.constant 0 : i32
      %26 = vector.broadcast %c0_i32_22 : i32 to vector<256x1xi32>
      %27 = arith.cmpi eq, %25, %26 : vector<256x1xi32>
      %cst_23 = arith.constant 0.000000e+00 : bf16
      %28 = vector.broadcast %cst_23 : bf16 to vector<256x128xbf16>
      %29 = vector.shape_cast %27 : vector<256x1xi1> to vector<256x1xi1>
      %30 = vector.broadcast %29 : vector<256x1xi1> to vector<256x128xi1>
      %31 = arith.select %30, %24, %28 : vector<256x128xi1>, vector<256x128xbf16>
      %c0_24 = arith.constant 0 : index
      %c0_25 = arith.constant 0 : index
      %c0_26 = arith.constant 0 : index
      %32 = vector.load %arg8[%c0_24, %c0_25, %c0_26] : memref<3x128x128xbf16, #tpu.memory_space<vmem>>, vector<1x128x128xbf16>
      %33 = vector.shape_cast %32 : vector<1x128x128xbf16> to vector<128x128xbf16>
      %cst_27 = arith.constant dense<0.000000e+00> : vector<256x128xf32>
      %34 = tpu.matmul %31, %33, %cst_27 {dimension_numbers = #tpu.dot_dimension_numbers<[1], [0], [0], [1], [0, 0, 1, 1], [], []>} : vector<256x128xbf16>, vector<128x128xbf16>, vector<256x128xf32> -> vector<256x128xf32>
      %35 = arith.addf %23, %34 : vector<256x128xf32>
      %c1_i32 = arith.constant 1 : i32
      %36 = vector.broadcast %c1_i32 : i32 to vector<256x1xi32>
      %37 = arith.cmpi eq, %25, %36 : vector<256x1xi32>
      %cst_28 = arith.constant 0.000000e+00 : bf16
      %38 = vector.broadcast %cst_28 : bf16 to vector<256x128xbf16>
      %39 = vector.shape_cast %37 : vector<256x1xi1> to vector<256x1xi1>
      %40 = vector.broadcast %39 : vector<256x1xi1> to vector<256x128xi1>
      %41 = arith.select %40, %24, %38 : vector<256x128xi1>, vector<256x128xbf16>
      %c1 = arith.constant 1 : index
      %c0_29 = arith.constant 0 : index
      %c0_30 = arith.constant 0 : index
      %42 = vector.load %arg8[%c1, %c0_29, %c0_30] : memref<3x128x128xbf16, #tpu.memory_space<vmem>>, vector<1x128x128xbf16>
      %43 = vector.shape_cast %42 : vector<1x128x128xbf16> to vector<128x128xbf16>
      %cst_31 = arith.constant dense<0.000000e+00> : vector<256x128xf32>
      %44 = tpu.matmul %41, %43, %cst_31 {dimension_numbers = #tpu.dot_dimension_numbers<[1], [0], [0], [1], [0, 0, 1, 1], [], []>} : vector<256x128xbf16>, vector<128x128xbf16>, vector<256x128xf32> -> vector<256x128xf32>
      %45 = arith.addf %35, %44 : vector<256x128xf32>
      %c2_i32 = arith.constant 2 : i32
      %46 = vector.broadcast %c2_i32 : i32 to vector<256x1xi32>
      %47 = arith.cmpi eq, %25, %46 : vector<256x1xi32>
      %cst_32 = arith.constant 0.000000e+00 : bf16
      %48 = vector.broadcast %cst_32 : bf16 to vector<256x128xbf16>
      %49 = vector.shape_cast %47 : vector<256x1xi1> to vector<256x1xi1>
      %50 = vector.broadcast %49 : vector<256x1xi1> to vector<256x128xi1>
      %51 = arith.select %50, %24, %48 : vector<256x128xi1>, vector<256x128xbf16>
      %c2 = arith.constant 2 : index
      %c0_33 = arith.constant 0 : index
      %c0_34 = arith.constant 0 : index
      %52 = vector.load %arg8[%c2, %c0_33, %c0_34] : memref<3x128x128xbf16, #tpu.memory_space<vmem>>, vector<1x128x128xbf16>
      %53 = vector.shape_cast %52 : vector<1x128x128xbf16> to vector<128x128xbf16>
      %cst_35 = arith.constant dense<0.000000e+00> : vector<256x128xf32>
      %54 = tpu.matmul %51, %53, %cst_35 {dimension_numbers = #tpu.dot_dimension_numbers<[1], [0], [0], [1], [0, 0, 1, 1], [], []>} : vector<256x128xbf16>, vector<128x128xbf16>, vector<256x128xf32> -> vector<256x128xf32>
      %55 = arith.addf %45, %54 : vector<256x128xf32>
      %c0_36 = arith.constant 0 : index
      %c0_37 = arith.constant 0 : index
      %56 = vector.load %arg9[%c0_36, %c0_37] : memref<256x128xf32, #tpu.memory_space<vmem>>, vector<256x128xf32>
      %57 = arith.addf %55, %56 : vector<256x128xf32>
      %cst_38 = arith.constant 0.000000e+00 : f32
      %58 = vector.broadcast %cst_38 : f32 to vector<256x128xf32>
      %59 = arith.maximumf %57, %58 : vector<256x128xf32>
      %60 = arith.truncf %59 : vector<256x128xf32> to vector<256x128xbf16>
      %c0_39 = arith.constant 0 : index
      %c0_40 = arith.constant 0 : index
      %61 = vector.load %arg11[%c0_39, %c0_40] : memref<256x128xbf16, #tpu.memory_space<vmem>>, vector<256x128xbf16>
      tpu.vector_store %arg11[%c0_39, %c0_40], %60 {strides = array<i32>} : memref<256x128xbf16, #tpu.memory_space<vmem>>, vector<256x128xbf16>,
    } else {
    }
    return
  }
  func.func @transform_0(%arg0: i32, %arg1: i32, %arg2: i32) -> (i32, i32) {
    %c0_i32 = arith.constant 0 : i32
    %c0_i32_0 = arith.constant 0 : i32
    return %arg2, %c0_i32 : i32, i32
  }
  func.func @transform_1(%arg0: i32, %arg1: i32, %arg2: i32) -> (i32, i32) {
    %c0_i32 = arith.constant 0 : i32
    %c0_i32_0 = arith.constant 0 : i32
    return %arg0, %c0_i32 : i32, i32
  }
  func.func @transform_2(%arg0: i32, %arg1: i32, %arg2: i32) -> (i32, i32, i32) {
    %c0_i32 = arith.constant 0 : i32
    return %arg1, %arg0, %arg2 : i32, i32, i32
  }
  func.func @transform_3(%arg0: i32, %arg1: i32, %arg2: i32) -> (i32, i32, i32) {
    %c0_i32 = arith.constant 0 : i32
    %c0_i32_0 = arith.constant 0 : i32
    return %arg1, %arg0, %c0_i32 : i32, i32, i32
  }
  func.func @transform_4(%arg0: i32, %arg1: i32, %arg2: i32) -> (i32, i32, i32) {
    %c0_i32 = arith.constant 0 : i32
    %c0_i32_0 = arith.constant 0 : i32
    %c0_i32_1 = arith.constant 0 : i32
    return %arg1, %c0_i32, %c0_i32_0 : i32, i32, i32
  }
  func.func @transform_5(%arg0: i32, %arg1: i32, %arg2: i32) -> (i32, i32, i32) {
    %c0_i32 = arith.constant 0 : i32
    %c0_i32_0 = arith.constant 0 : i32
    %c0_i32_1 = arith.constant 0 : i32
    %c0_i32_2 = arith.constant 0 : i32
    return %c0_i32, %c0_i32_0, %c0_i32_1 : i32, i32, i32
  }
  func.func @transform_6(%arg0: i32, %arg1: i32, %arg2: i32) -> (i32, i32) {
    %c0_i32 = arith.constant 0 : i32
    %c0_i32_0 = arith.constant 0 : i32
    return %arg0, %c0_i32 : i32, i32
  }
  func.func @transform_7(%arg0: i32, %arg1: i32, %arg2: i32) -> (i32, i32) {
    %c0_i32 = arith.constant 0 : i32
    %c0_i32_0 = arith.constant 0 : i32
    return %arg0, %c0_i32 : i32, i32
  }
  func.func @transform_8(%arg0: i32, %arg1: i32, %arg2: i32) -> (i32, i32) {
    %c0_i32 = arith.constant 0 : i32
    %c0_i32_0 = arith.constant 0 : i32
    return %arg0, %c0_i32 : i32, i32
  }
}

</mosaic_0001>

<llo_original>
// kernel: tpu_custom_call.1
$region0: #{tpu_custom_call.1}
  #allocation0 [shape = 'u32[]', space=smem, size = 0x4, offset = 0x4, fixed_abs, tag = 'smem constant byte address 0x4 - core index']
  #allocation1 [shape = 'u32[144,128]{1,0:T(1,128)}', space=vmem, size = 0x12000, scoped, tag = 'internal scratch']
  #allocation2 [shape = 'f32[256,128]{1,0:T(8,128)}', space=vmem, size = 0x20000, scoped, tag = 'scratch operand']
  #allocation3 [shape = 'f32[256,128]{1,0:T(8,128)}', space=vmem, size = 0x20000, scoped, tag = 'scratch operand']
  %s0 = inlined_call_operand.hbm [shape: bf16[256,128], index: 0, kind: input, shape index: {}]
  %s1 = inlined_call_operand.hbm [shape: bf16[256,128], index: 1, kind: input, shape index: {}]
  %s2 = inlined_call_operand.vmem [shape: bf16[4,256,256], index: 2, kind: input, shape index: {}]
  %s3 = inlined_call_operand.vmem [shape: f32[4,256,1], index: 3, kind: input, shape index: {}]
  %s4 = inlined_call_operand.vmem [shape: bf16[4,128,128], index: 4, kind: input, shape index: {}]
  %s5 = inlined_call_operand.hbm [shape: bf16[3,128,128], index: 5, kind: input, shape index: {}]
  %s6 = inlined_call_operand.hbm [shape: f32[256,128], index: 6, kind: input, shape index: {}]
  %s7 = inlined_call_operand.vmem [shape: s32[256,1], index: 7, kind: input, shape index: {}]
  %s8 = inlined_call_operand.hbm [shape: bf16[256,128], index: 8, kind: output, shape index: {}]
  %s9 = sld [smem:[#allocation0]]
  $region97: #{tpu_custom_call.1} parent=0
    _
  %s11 = ssub.s32 1, %s9
  %s12 = scalar_select 0, %s11, %s9
  $region1: #{tpu_custom_call.1} parent=0
    #allocation4 [shape = 'u8[65536]{0}', space=vmem, size = 0x10000, scoped, tag = 'input window, operand 0, single buffered']
    #allocation5 [shape = 's32[2]{0}', space=sflag, size = 0x8, scoped, tag = 'scoped memory for tpu_custom_call.1']
    #allocation6 [shape = 's32[2]{0}', space=sflag, size = 0x8, scoped, tag = 'scoped memory for tpu_custom_call.1']
    #allocation7 [shape = 'u8[65536]{0}', space=vmem, size = 0x10000, scoped, tag = 'input window, operand 1, single buffered']
    #allocation8 [shape = 's32[1]{0}', space=sflag, size = 0x4, scoped, tag = 'scoped memory for tpu_custom_call.1']
    #allocation9 [shape = 'u8[98304]{0}', space=vmem, size = 0x18000, scoped, tag = 'input window, operand 5, single buffered']
    #allocation10 [shape = 'u8[131072]{0}', space=vmem, size = 0x20000, scoped, tag = 'input window, operand 6, single buffered']
    #allocation11 [shape = 's32[1]{0}', space=sflag, size = 0x4, scoped, tag = 'scoped memory for tpu_custom_call.1']
    #allocation12 [shape = 'u8[65536]{0}', space=vmem, size = 0x10000, scoped, tag = 'output window, operand 0, single buffered']
    %13 = vsyncpa [#allocation5], 0
    %14 = vsyncpa [#allocation8], 0
    %15 = vsyncpa [#allocation11], 0
    %16 = vsyncpa [#allocation6], 0
    loop: start=0, step=1, limit=6
    $region2: #{tpu_custom_call.1} parent=1 // loop_pre_header
      _
    $region3: #{tpu_custom_call.1} parent=1 // loop_header
      %s18 = sphi 0, %s22
      %p19 = scmp.ge.s32.totalorder %s18, 6
      %s25 = sphi 0, %s44
      %s26 = sphi 0, %s40
      %s27 = sphi 0, %s36
      %s28 = sphi 0, %s25
      %s29 = sphi 0, %s26
      %s30 = sphi 0, %s27
      %s31 = sphi 0, %s28
      %s32 = sphi 0, %s29
      %s33 = sphi 0, %s30
      %s47 = sphi 0, %s49
      %s50 = sphi 0, %s47
      %s51 = sphi 0, %s50
      %s67 = sphi 0, %s51
      %s73 = sphi 0, %s75
      %s76 = sphi 0, %s73
      %s77 = sphi 0, %s76
      %s93 = sphi 0, %s77
      %s103 = sphi 0, %s105
      %s106 = sphi 0, %s103
      %s107 = sphi 0, %s106
      %s123 = sphi 0, %s107
      %s131 = sphi 0, %s133
      %s134 = sphi 0, %s131
      %s135 = sphi 0, %s134
      %s151 = sphi 0, %s135
      %s157 = sphi 0, %s159
      %s160 = sphi 0, %s157
      %s161 = sphi 0, %s160
      %s177 = sphi 0, %s161
      %s181 = sphi 0, %s181
      %s183 = sphi 0, %s181
      %s184 = sphi 0, %s183
      %s198 = sphi 0, %s184
      %s204 = sphi 0, %s206
      %s207 = sphi 0, %s204
      %s208 = sphi 0, %s207
      %s224 = sphi 0, %s208
      %s230 = sphi 0, %s232
      %s233 = sphi 0, %s230
      %s234 = sphi 0, %s233
      %s250 = sphi 0, %s234
      %s256 = sphi 0, %s258
      %s259 = sphi 0, %s256
      %s260 = sphi 0, %s259
      %s276 = sphi 0, %s260
    $region4: #{tpu_custom_call.1} parent=1 // loop_header_branch
      %21 = sbr.rel (%p19) target = $region8
    $region5: #{tpu_custom_call.1} parent=1 // loop_body
      %s23 = ssub.s32 %s18, 1
      %s24 = ssub.s32 %s18, 2
      %s34 = sadd.s32 1, %s27
      %p35 = scmp.ge.s32.totalorder %s34, 1
      %s36 = scalar_select %p35, 0, %s34
      %s37 = sadd.s32 1, %s26
      %s38 = scalar_select %p35, %s37, %s26
      %p39 = scmp.ge.s32.totalorder %s38, 4
      %s40 = scalar_select %p39, 0, %s38
      %s41 = sadd.s32 1, %s25
      %s42 = scalar_select %p39, %s41, %s25
      %p43 = scmp.ge.s32.totalorder %s42, 1
      %s44 = scalar_select %p43, 0, %s42
      %s45 = ssub.s32 %s27, %s36
      %p46 = scmp.eq.s32.totalorder %s45, 0
      %s48 = sadd.s32 %s47, 1
      %s49 = scalar_select %p46, %s47, %s48
      %p52 = pneg %p46
      %p53 = scmp.eq.s32.totalorder %s18, 3
      %p54 = por %p52, %p53
      %p55 = scmp.ne.s32.totalorder %s47, %s50
      %p56 = scmp.eq.s32.totalorder %s18, 0
      %p57 = por %p55, %p56
      %p58 = scmp.ne.s32.totalorder %s47, %s50
      %p59 = scmp.eq.s32.totalorder %s23, 3
      %p60 = por %p58, %p59
      %p61 = scmp.ne.s32.totalorder %s50, %s51
      %p62 = scmp.eq.s32.totalorder %s23, 0
      %p63 = por %p61, %p62
      %p64 = scmp.ne.s32.totalorder %s50, %s51
      %p65 = scmp.eq.s32.totalorder %s24, 3
      %p66 = por %p64, %p65
      %p68 = scmp.ne.s32.totalorder %s51, %s67
      %p69 = scmp.eq.s32.totalorder %s24, 0
      %p70 = por %p68, %p69
      %s71 = ssub.s32 %s25, %s44
      %p72 = scmp.eq.s32.totalorder %s71, 0
      %s74 = sadd.s32 %s73, 1
      %s75 = scalar_select %p72, %s73, %s74
      %p78 = pneg %p72
      %p79 = scmp.eq.s32.totalorder %s18, 3
      %p80 = por %p78, %p79
      %p81 = scmp.ne.s32.totalorder %s73, %s76
      %p82 = scmp.eq.s32.totalorder %s18, 0
      %p83 = por %p81, %p82
      %p84 = scmp.ne.s32.totalorder %s73, %s76
      %p85 = scmp.eq.s32.totalorder %s23, 3
      %p86 = por %p84, %p85
      %p87 = scmp.ne.s32.totalorder %s76, %s77
      %p88 = scmp.eq.s32.totalorder %s23, 0
      %p89 = por %p87, %p88
      %p90 = scmp.ne.s32.totalorder %s76, %s77
      %p91 = scmp.eq.s32.totalorder %s24, 3
      %p92 = por %p90, %p91
      %p94 = scmp.ne.s32.totalorder %s77, %s93
      %p95 = scmp.eq.s32.totalorder %s24, 0
      %p96 = por %p94, %p95
      %s97 = ssub.s32 %s26, %s40
      %s98 = ssub.s32 %s25, %s44
      %s99 = sor.u32 %s97, %s98
      %s100 = ssub.s32 %s27, %s36
      %s101 = sor.u32 %s99, %s100
      %p102 = scmp.eq.s32.totalorder %s101, 0
      %s104 = sadd.s32 %s103, 1
      %s105 = scalar_select %p102, %s103, %s104
      %p108 = pneg %p102
      %p109 = scmp.eq.s32.totalorder %s18, 3
      %p110 = por %p108, %p109
      %p111 = scmp.ne.s32.totalorder %s103, %s106
      %p112 = scmp.eq.s32.totalorder %s18, 0
      %p113 = por %p111, %p112
      %p114 = scmp.ne.s32.totalorder %s103, %s106
      %p115 = scmp.eq.s32.totalorder %s23, 3
      %p116 = por %p114, %p115
      %p117 = scmp.ne.s32.totalorder %s106, %s107
      %p118 = scmp.eq.s32.totalorder %s23, 0
      %p119 = por %p117, %p118
      %p120 = scmp.ne.s32.totalorder %s106, %s107
      %p121 = scmp.eq.s32.totalorder %s24, 3
      %p122 = por %p120, %p121
      %p124 = scmp.ne.s32.totalorder %s107, %s123
      %p125 = scmp.eq.s32.totalorder %s24, 0
      %p126 = por %p124, %p125
      %s127 = ssub.s32 %s26, %s40
      %s128 = ssub.s32 %s25, %s44
      %s129 = sor.u32 %s127, %s128
      %p130 = scmp.eq.s32.totalorder %s129, 0
      %s132 = sadd.s32 %s131, 1
      %s133 = scalar_select %p130, %s131, %s132
      %p136 = pneg %p130
      %p137 = scmp.eq.s32.totalorder %s18, 3
      %p138 = por %p136, %p137
      %p139 = scmp.ne.s32.totalorder %s131, %s134
      %p140 = scmp.eq.s32.totalorder %s18, 0
      %p141 = por %p139, %p140
      %p142 = scmp.ne.s32.totalorder %s131, %s134
      %p143 = scmp.eq.s32.totalorder %s23, 3
      %p144 = por %p142, %p143
      %p145 = scmp.ne.s32.totalorder %s134, %s135
      %p146 = scmp.eq.s32.totalorder %s23, 0
      %p147 = por %p145, %p146
      %p148 = scmp.ne.s32.totalorder %s134, %s135
      %p149 = scmp.eq.s32.totalorder %s24, 3
      %p150 = por %p148, %p149
      %p152 = scmp.ne.s32.totalorder %s135, %s151
      %p153 = scmp.eq.s32.totalorder %s24, 0
      %p154 = por %p152, %p153
      %s155 = ssub.s32 %s26, %s40
      %p156 = scmp.eq.s32.totalorder %s155, 0
      %s158 = sadd.s32 %s157, 1
      %s159 = scalar_select %p156, %s157, %s158
      %p162 = pneg %p156
      %p163 = scmp.eq.s32.totalorder %s18, 3
      %p164 = por %p162, %p163
      %p165 = scmp.ne.s32.totalorder %s157, %s160
      %p166 = scmp.eq.s32.totalorder %s18, 0
      %p167 = por %p165, %p166
      %p168 = scmp.ne.s32.totalorder %s157, %s160
      %p169 = scmp.eq.s32.totalorder %s23, 3
      %p170 = por %p168, %p169
      %p171 = scmp.ne.s32.totalorder %s160, %s161
      %p172 = scmp.eq.s32.totalorder %s23, 0
      %p173 = por %p171, %p172
      %p174 = scmp.ne.s32.totalorder %s160, %s161
      %p175 = scmp.eq.s32.totalorder %s24, 3
      %p176 = por %p174, %p175
      %p178 = scmp.ne.s32.totalorder %s161, %s177
      %p179 = scmp.eq.s32.totalorder %s24, 0
      %p180 = por %p178, %p179
      %s182 = sadd.s32 %s181, 1
      %p185 = scmp.eq.s32.totalorder %s18, 3
      %p186 = scmp.ne.s32.totalorder %s181, %s183
      %p187 = scmp.eq.s32.totalorder %s18, 0
      %p188 = por %p186, %p187
      %p189 = scmp.ne.s32.totalorder %s181, %s183
      %p190 = scmp.eq.s32.totalorder %s23, 3
      %p191 = por %p189, %p190
      %p192 = scmp.ne.s32.totalorder %s183, %s184
      %p193 = scmp.eq.s32.totalorder %s23, 0
      %p194 = por %p192, %p193
      %p195 = scmp.ne.s32.totalorder %s183, %s184
      %p196 = scmp.eq.s32.totalorder %s24, 3
      %p197 = por %p195, %p196
      %p199 = scmp.ne.s32.totalorder %s184, %s198
      %p200 = scmp.eq.s32.totalorder %s24, 0
      %p201 = por %p199, %p200
      %s202 = ssub.s32 %s25, %s44
      %p203 = scmp.eq.s32.totalorder %s202, 0
      %s205 = sadd.s32 %s204, 1
      %s206 = scalar_select %p203, %s204, %s205
      %p209 = pneg %p203
      %p210 = scmp.eq.s32.totalorder %s18, 3
      %p211 = por %p209, %p210
      %p212 = scmp.ne.s32.totalorder %s204, %s207
      %p213 = scmp.eq.s32.totalorder %s18, 0
      %p214 = por %p212, %p213
      %p215 = scmp.ne.s32.totalorder %s204, %s207
      %p216 = scmp.eq.s32.totalorder %s23, 3
      %p217 = por %p215, %p216
      %p218 = scmp.ne.s32.totalorder %s207, %s208
      %p219 = scmp.eq.s32.totalorder %s23, 0
      %p220 = por %p218, %p219
      %p221 = scmp.ne.s32.totalorder %s207, %s208
      %p222 = scmp.eq.s32.totalorder %s24, 3
      %p223 = por %p221, %p222
      %p225 = scmp.ne.s32.totalorder %s208, %s224
      %p226 = scmp.eq.s32.totalorder %s24, 0
      %p227 = por %p225, %p226
      %s228 = ssub.s32 %s25, %s44
      %p229 = scmp.eq.s32.totalorder %s228, 0
      %s231 = sadd.s32 %s230, 1
      %s232 = scalar_select %p229, %s230, %s231
      %p235 = pneg %p229
      %p236 = scmp.eq.s32.totalorder %s18, 3
      %p237 = por %p235, %p236
      %p238 = scmp.ne.s32.totalorder %s230, %s233
      %p239 = scmp.eq.s32.totalorder %s18, 0
      %p240 = por %p238, %p239
      %p241 = scmp.ne.s32.totalorder %s230, %s233
      %p242 = scmp.eq.s32.totalorder %s23, 3
      %p243 = por %p241, %p242
      %p244 = scmp.ne.s32.totalorder %s233, %s234
      %p245 = scmp.eq.s32.totalorder %s23, 0
      %p246 = por %p244, %p245
      %p247 = scmp.ne.s32.totalorder %s233, %s234
      %p248 = scmp.eq.s32.totalorder %s24, 3
      %p249 = por %p247, %p248
      %p251 = scmp.ne.s32.totalorder %s234, %s250
      %p252 = scmp.eq.s32.totalorder %s24, 0
      %p253 = por %p251, %p252
      %s254 = ssub.s32 %s25, %s44
      %p255 = scmp.eq.s32.totalorder %s254, 0
      %s257 = sadd.s32 %s256, 1
      %s258 = scalar_select %p255, %s256, %s257
      %p261 = pneg %p255
      %p262 = scmp.eq.s32.totalorder %s18, 3
      %p263 = por %p261, %p262
      %p264 = scmp.ne.s32.totalorder %s256, %s259
      %p265 = scmp.eq.s32.totalorder %s18, 0
      %p266 = por %p264, %p265
      %p267 = scmp.ne.s32.totalorder %s256, %s259
      %p268 = scmp.eq.s32.totalorder %s23, 3
      %p269 = por %p267, %p268
      %p270 = scmp.ne.s32.totalorder %s259, %s260
      %p271 = scmp.eq.s32.totalorder %s23, 0
      %p272 = por %p270, %p271
      %p273 = scmp.ne.s32.totalorder %s259, %s260
      %p274 = scmp.eq.s32.totalorder %s24, 3
      %p275 = por %p273, %p274
      %p277 = scmp.ne.s32.totalorder %s260, %s276
      %p278 = scmp.eq.s32.totalorder %s24, 0
      %p279 = por %p277, %p278
      %p280 = scmp.le.s32.totalorder 1, %s18
      %p281 = scmp.lt.s32.totalorder %s18, 5
      %p282 = pnand %p280, %p281
      %p283 = pneg %p282
      // Predicated region
      $region9: #{tpu_custom_call.1} parent=5 // pred_check
        _
      $region10: #{tpu_custom_call.1} parent=5 // pred_check_branch
        %285 = sbr.rel (%p282) target = $region12
      $region11: #{tpu_custom_call.1} parent=5 // pred_region
        %s286 = ssub.s32 %s18, 1
        // Predicated region
        $region13: #{tpu_custom_call.1} parent=11 // pred_check
          %p287 = pneg %p63
        $region14: #{tpu_custom_call.1} parent=11 // pred_check_branch
          %289 = sbr.rel (%p287) target = $region16
        $region15: #{tpu_custom_call.1} parent=11 // pred_region
          %s290 = smul.u32 32, %s30
          %s292 = ssub.s32 2048, 2048
          %293 = vsyncadd [#allocation5], %s292
          %s294 = smul.addr %s290, 64
          %s295 = scalar_lea.hbm %s0, %s294
          %s296 = sshll.u32 [#allocation4], 4
          %s297 = int_to_ptr.vmem [resolvable:$true] %s296
          %302 = dma.hbm_to_vmem [thread:$0]  %s295, 2048, %s297, [#allocation5], 64, 64, 4
        $region16: #{tpu_custom_call.1} parent=11 // pred_fallthru
          _
        // Predicated region
        $region17: #{tpu_custom_call.1} parent=11 // pred_check
          %p303 = pneg %p89
        $region18: #{tpu_custom_call.1} parent=11 // pred_check_branch
          %305 = sbr.rel (%p303) target = $region20
        $region19: #{tpu_custom_call.1} parent=11 // pred_region
          %s306 = smul.u32 32, %s28
          %s308 = ssub.s32 2048, 2048
          %309 = vsyncadd [#allocation8], %s308
          %s310 = smul.addr %s306, 64
          %s311 = scalar_lea.hbm %s1, %s310
          %s312 = sshll.u32 [#allocation7], 4
          %s313 = int_to_ptr.vmem [resolvable:$true] %s312
          %318 = dma.hbm_to_vmem [thread:$0]  %s311, 2048, %s313, [#allocation8], 64, 64, 4
        $region20: #{tpu_custom_call.1} parent=11 // pred_fallthru
          _
        // Predicated region
        $region21: #{tpu_custom_call.1} parent=11 // pred_check
          %p319 = pneg %p194
        $region22: #{tpu_custom_call.1} parent=11 // pred_check_branch
          %321 = sbr.rel (%p319) target = $region24
        $region23: #{tpu_custom_call.1} parent=11 // pred_region
          %s323 = ssub.s32 3072, 3072
          %324 = vsyncadd [#allocation8], %s323
          %s325 = sshll.u32 [#allocation9], 4
          %s326 = int_to_ptr.vmem [resolvable:$true] %s325
          %331 = dma.hbm_to_vmem [thread:$0]  %s5, 3072, %s326, [#allocation8], 64, 64, 4
        $region24: #{tpu_custom_call.1} parent=11 // pred_fallthru
          _
        // Predicated region
        $region25: #{tpu_custom_call.1} parent=11 // pred_check
          %p332 = pneg %p220
        $region26: #{tpu_custom_call.1} parent=11 // pred_check_branch
          %334 = sbr.rel (%p332) target = $region28
        $region27: #{tpu_custom_call.1} parent=11 // pred_region
          %s335 = smul.u32 32, %s28
          %s337 = ssub.s32 4096, 4096
          %338 = vsyncadd [#allocation11], %s337
          %s339 = smul.addr %s335, 128
          %s340 = scalar_lea.hbm %s6, %s339
          %s341 = sshll.u32 [#allocation10], 4
          %s342 = int_to_ptr.vmem [resolvable:$true] %s341
          %347 = dma.hbm_to_vmem [thread:$0]  %s340, 4096, %s342, [#allocation11], 128, 128, 8
        $region28: #{tpu_custom_call.1} parent=11 // pred_fallthru
          _
        // Predicated region
        $region29: #{tpu_custom_call.1} parent=11 // pred_check
          %p348 = pneg %p246
        $region30: #{tpu_custom_call.1} parent=11 // pred_check_branch
          %350 = sbr.rel (%p348) target = $region32
        $region31: #{tpu_custom_call.1} parent=11 // pred_region
          %s351 = smul.u32 32, %s28
          %p352 = scmp.lt.s32.totalorder %s351, 31
          %s353 = scalar_select %p352, %s351, 31
          %s354 = smul.addr %s353, 8
          %s355 = scalar_lea.vmem %s7, %s354
          %s356 = smul.u32 32, %s28
        $region32: #{tpu_custom_call.1} parent=11 // pred_fallthru
          _
      $region12: #{tpu_custom_call.1} parent=5 // pred_fallthru
        _
      %p357 = scmp.lt.s32.totalorder %s18, 4
      // Predicated region
      $region33: #{tpu_custom_call.1} parent=5 // pred_check
        %p358 = pneg %p357
      $region34: #{tpu_custom_call.1} parent=5 // pred_check_branch
        %360 = sbr.rel (%p358) target = $region36
      $region35: #{tpu_custom_call.1} parent=5 // pred_region
        // Predicated region
        $region37: #{tpu_custom_call.1} parent=35 // pred_check
          %p361 = pneg %p113
        $region38: #{tpu_custom_call.1} parent=35 // pred_check_branch
          %363 = sbr.rel (%p361) target = $region40
        $region39: #{tpu_custom_call.1} parent=35 // pred_region
          %s364 = smul.u32 32, %s25
          %s365 = smul.u32 2, %s27
          %p366 = scmp.lt.s32.totalorder %s26, 3
          %s367 = scalar_select %p366, %s26, 3
          %p368 = scmp.lt.s32.totalorder %s364, 31
          %s369 = scalar_select %p368, %s364, 31
          %p370 = scmp.lt.s32.totalorder %s365, 1
          %s371 = scalar_select %p370, %s365, 1
          %s372 = smul.addr %s369, 2
          %s373 = sadd.s32 %s371, %s372
          %s374 = smul.addr %s367, 64
          %s375 = sadd.s32 %s373, %s374
          %s376 = smul.addr %s375, 4
          %s377 = scalar_lea.vmem %s2, %s376
          %s378 = smul.u32 32, %s25
          %s379 = smul.u32 2, %s27
        $region40: #{tpu_custom_call.1} parent=35 // pred_fallthru
          _
        // Predicated region
        $region41: #{tpu_custom_call.1} parent=35 // pred_check
          %p380 = pneg %p141
        $region42: #{tpu_custom_call.1} parent=35 // pred_check_branch
          %382 = sbr.rel (%p380) target = $region44
        $region43: #{tpu_custom_call.1} parent=35 // pred_region
          %s383 = smul.u32 32, %s25
          %p384 = scmp.lt.s32.totalorder %s26, 3
          %s385 = scalar_select %p384, %s26, 3
          %p386 = scmp.lt.s32.totalorder %s383, 31
          %s387 = scalar_select %p386, %s383, 31
          %s388 = smul.addr %s385, 32
          %s389 = sadd.s32 %s387, %s388
          %s390 = smul.addr %s389, 8
          %s391 = scalar_lea.vmem %s3, %s390
          %s392 = smul.u32 32, %s25
        $region44: #{tpu_custom_call.1} parent=35 // pred_fallthru
          _
        // Predicated region
        $region45: #{tpu_custom_call.1} parent=35 // pred_check
          %p393 = pneg %p167
        $region46: #{tpu_custom_call.1} parent=35 // pred_check_branch
          %395 = sbr.rel (%p393) target = $region48
        $region47: #{tpu_custom_call.1} parent=35 // pred_region
          %p396 = scmp.lt.s32.totalorder %s26, 3
          %s397 = scalar_select %p396, %s26, 3
          %s398 = smul.addr %s397, 16
          %s399 = smul.addr %s398, 4
          %s400 = scalar_lea.vmem %s4, %s399
        $region48: #{tpu_custom_call.1} parent=35 // pred_fallthru
          _
      $region36: #{tpu_custom_call.1} parent=5 // pred_fallthru
        _
      %p401 = scmp.le.s32.totalorder 1, %s18
      %p402 = scmp.lt.s32.totalorder %s18, 5
      %p403 = pnand %p401, %p402
      %p404 = pneg %p403
      // Predicated region
      $region49: #{tpu_custom_call.1} parent=5 // pred_check
        _
      $region50: #{tpu_custom_call.1} parent=5 // pred_check_branch
        %406 = sbr.rel (%p403) target = $region52
      $region51: #{tpu_custom_call.1} parent=5 // pred_region
        %s407 = ssub.s32 %s18, 1
        // Predicated region
        $region53: #{tpu_custom_call.1} parent=51 // pred_check
          %p408 = pneg %p63
        $region54: #{tpu_custom_call.1} parent=51 // pred_check_branch
          %410 = sbr.rel (%p408) target = $region56
        $region55: #{tpu_custom_call.1} parent=51 // pred_region
          %411 = dma.done [#allocation5], 2048
        $region56: #{tpu_custom_call.1} parent=51 // pred_fallthru
          _
        // Predicated region
        $region57: #{tpu_custom_call.1} parent=51 // pred_check
          %p412 = pneg %p89
        $region58: #{tpu_custom_call.1} parent=51 // pred_check_branch
          %414 = sbr.rel (%p412) target = $region60
        $region59: #{tpu_custom_call.1} parent=51 // pred_region
          %415 = dma.done [#allocation8], 2048
        $region60: #{tpu_custom_call.1} parent=51 // pred_fallthru
          _
        // Predicated region
        $region61: #{tpu_custom_call.1} parent=51 // pred_check
          %p416 = pneg %p194
        $region62: #{tpu_custom_call.1} parent=51 // pred_check_branch
          %418 = sbr.rel (%p416) target = $region64
        $region63: #{tpu_custom_call.1} parent=51 // pred_region
          %419 = dma.done [#allocation8], 3072
        $region64: #{tpu_custom_call.1} parent=51 // pred_fallthru
          _
        // Predicated region
        $region65: #{tpu_custom_call.1} parent=51 // pred_check
          %p420 = pneg %p220
        $region66: #{tpu_custom_call.1} parent=51 // pred_check_branch
          %422 = sbr.rel (%p420) target = $region68
        $region67: #{tpu_custom_call.1} parent=51 // pred_region
          %423 = dma.done [#allocation11], 4096
        $region68: #{tpu_custom_call.1} parent=51 // pred_fallthru
          _
        %p424 = pneg %p63
        %p425 = pneg %p60
        %p426 = pneg %p89
        %p427 = pneg %p86
        %s428 = smul.u32 32, %s28
        %s429 = smul.u32 2, %s30
        %p430 = scmp.lt.s32.totalorder %s29, 3
        %s431 = scalar_select %p430, %s29, 3
        %p432 = scmp.lt.s32.totalorder %s428, 31
        %s433 = scalar_select %p432, %s428, 31
        %p434 = scmp.lt.s32.totalorder %s429, 1
        %s435 = scalar_select %p434, %s429, 1
        %s436 = smul.addr %s433, 2
        %s437 = sadd.s32 %s435, %s436
        %s438 = smul.addr %s431, 64
        %s439 = sadd.s32 %s437, %s438
        %s440 = smul.addr %s439, 4
        %s441 = scalar_lea.vmem %s2, %s440
        %p442 = pneg %p119
        %p443 = pneg %p116
        %s444 = smul.u32 32, %s28
        %p445 = scmp.lt.s32.totalorder %s29, 3
        %s446 = scalar_select %p445, %s29, 3
        %p447 = scmp.lt.s32.totalorder %s444, 31
        %s448 = scalar_select %p447, %s444, 31
        %s449 = smul.addr %s446, 32
        %s450 = sadd.s32 %s448, %s449
        %s451 = smul.addr %s450, 8
        %s452 = scalar_lea.vmem %s3, %s451
        %p453 = pneg %p147
        %p454 = pneg %p144
        %p455 = scmp.lt.s32.totalorder %s29, 3
        %s456 = scalar_select %p455, %s29, 3
        %s457 = smul.addr %s456, 16
        %s458 = smul.addr %s457, 4
        %s459 = scalar_lea.vmem %s4, %s458
        %p460 = pneg %p173
        %p461 = pneg %p170
        %p462 = pneg %p194
        %p463 = pneg %p191
        %p464 = pneg %p220
        %p465 = pneg %p217
        %s466 = smul.u32 32, %s28
        %p467 = scmp.lt.s32.totalorder %s466, 31
        %s468 = scalar_select %p467, %s466, 31
        %s469 = smul.addr %s468, 8
        %s470 = scalar_lea.vmem %s7, %s469
        %p471 = pneg %p246
        %p472 = pneg %p243
        %p473 = pneg %p272
        %p474 = pneg %p269
        %s475 = smul.u32 32, %s30
        %s476 = smul.u32 32, %s28
        %s477 = smul.u32 32, %s28
        %s478 = smul.u32 2, %s30
        %p479 = scmp.lt.s32.totalorder %s29, 3
        %s480 = scalar_select %p479, %s29, 3
        %p481 = scmp.lt.s32.totalorder %s477, 31
        %s482 = scalar_select %p481, %s477, 31
        %p483 = scmp.lt.s32.totalorder %s478, 1
        %s484 = scalar_select %p483, %s478, 1
        %s485 = smul.addr %s482, 2
        %s486 = sadd.s32 %s484, %s485
        %s487 = smul.addr %s480, 64
        %s488 = sadd.s32 %s486, %s487
        %s489 = smul.addr %s488, 4
        %s490 = scalar_lea.vmem %s2, %s489
        %s491 = smul.u32 32, %s28
        %s492 = smul.u32 2, %s30
        %s493 = smul.u32 32, %s28
        %p494 = scmp.lt.s32.totalorder %s29, 3
        %s495 = scalar_select %p494, %s29, 3
        %p496 = scmp.lt.s32.totalorder %s493, 31
        %s497 = scalar_select %p496, %s493, 31
        %s498 = smul.addr %s495, 32
        %s499 = sadd.s32 %s497, %s498
        %s500 = smul.addr %s499, 8
        %s501 = scalar_lea.vmem %s3, %s500
        %s502 = smul.u32 32, %s28
        %p503 = scmp.lt.s32.totalorder %s29, 3
        %s504 = scalar_select %p503, %s29, 3
        %s505 = smul.addr %s504, 16
        %s506 = smul.addr %s505, 4
        %s507 = scalar_lea.vmem %s4, %s506
        %s508 = smul.u32 32, %s28
        %s509 = smul.u32 32, %s28
        %p510 = scmp.lt.s32.totalorder %s509, 31
        %s511 = scalar_select %p510, %s509, 31
        %s512 = smul.addr %s511, 8
        %s513 = scalar_lea.vmem %s7, %s512
        %s514 = smul.u32 32, %s28
        %s515 = smul.u32 32, %s28
        %p517 = scmp.eq.s32.totalorder %s29, 0
        %p518 = scmp.eq.s32.totalorder %s30, 0
        %p519 = pnand %p517, %p518
        %p520 = pneg %p519
        // Predicated region
        $region69: #{tpu_custom_call.1} parent=51 // pred_check
          _
        $region70: #{tpu_custom_call.1} parent=51 // pred_check_branch
          %522 = sbr.rel (%p519) target = $region72
        $region71: #{tpu_custom_call.1} parent=51 // pred_region
          %523 = vst [vmem:[#allocation3] sm:$0xff] 0.0
          %524 = vst [vmem:[#allocation3 + $0x8] sm:$0xff] 0.0
          %525 = vst [vmem:[#allocation3 + $0x10] sm:$0xff] 0.0
          %526 = vst [vmem:[#allocation3 + $0x18] sm:$0xff] 0.0
          %527 = vst [vmem:[#allocation3 + $0x20] sm:$0xff] 0.0
          %528 = vst [vmem:[#allocation3 + $0x28] sm:$0xff] 0.0
          %529 = vst [vmem:[#allocation3 + $0x30] sm:$0xff] 0.0
          %530 = vst [vmem:[#allocation3 + $0x38] sm:$0xff] 0.0
          %531 = vst [vmem:[#allocation3 + $0x40] sm:$0xff] 0.0
          %532 = vst [vmem:[#allocation3 + $0x48] sm:$0xff] 0.0
          %533 = vst [vmem:[#allocation3 + $0x50] sm:$0xff] 0.0
          %534 = vst [vmem:[#allocation3 + $0x58] sm:$0xff] 0.0
          %535 = vst [vmem:[#allocation3 + $0x60] sm:$0xff] 0.0
          %536 = vst [vmem:[#allocation3 + $0x68] sm:$0xff] 0.0
          %537 = vst [vmem:[#allocation3 + $0x70] sm:$0xff] 0.0
          %538 = vst [vmem:[#allocation3 + $0x78] sm:$0xff] 0.0
          %539 = vst [vmem:[#allocation3 + $0x80] sm:$0xff] 0.0
          %540 = vst [vmem:[#allocation3 + $0x88] sm:$0xff] 0.0
          %541 = vst [vmem:[#allocation3 + $0x90] sm:$0xff] 0.0
          %542 = vst [vmem:[#allocation3 + $0x98] sm:$0xff] 0.0
          %543 = vst [vmem:[#allocation3 + $0xa0] sm:$0xff] 0.0
          %544 = vst [vmem:[#allocation3 + $0xa8] sm:$0xff] 0.0
          %545 = vst [vmem:[#allocation3 + $0xb0] sm:$0xff] 0.0
          %546 = vst [vmem:[#allocation3 + $0xb8] sm:$0xff] 0.0
          %547 = vst [vmem:[#allocation3 + $0xc0] sm:$0xff] 0.0
          %548 = vst [vmem:[#allocation3 + $0xc8] sm:$0xff] 0.0
          %549 = vst [vmem:[#allocation3 + $0xd0] sm:$0xff] 0.0
          %550 = vst [vmem:[#allocation3 + $0xd8] sm:$0xff] 0.0
          %551 = vst [vmem:[#allocation3 + $0xe0] sm:$0xff] 0.0
          %552 = vst [vmem:[#allocation3 + $0xe8] sm:$0xff] 0.0
          %553 = vst [vmem:[#allocation3 + $0xf0] sm:$0xff] 0.0
          %554 = vst [vmem:[#allocation3 + $0xf8] sm:$0xff] 0.0
        $region72: #{tpu_custom_call.1} parent=51 // pred_fallthru
          _
        // Predicated region
        $region73: #{tpu_custom_call.1} parent=51 // pred_check
          %p555 = pneg %p518
        $region74: #{tpu_custom_call.1} parent=51 // pred_check_branch
          %557 = sbr.rel (%p555) target = $region76
        $region75: #{tpu_custom_call.1} parent=51 // pred_region
          %558 = vst [vmem:[#allocation2] sm:$0xff] 0.0
          %559 = vst [vmem:[#allocation2 + $0x8] sm:$0xff] 0.0
          %560 = vst [vmem:[#allocation2 + $0x10] sm:$0xff] 0.0
          %561 = vst [vmem:[#allocation2 + $0x18] sm:$0xff] 0.0
          %562 = vst [vmem:[#allocation2 + $0x20] sm:$0xff] 0.0
          %563 = vst [vmem:[#allocation2 + $0x28] sm:$0xff] 0.0
          %564 = vst [vmem:[#allocation2 + $0x30] sm:$0xff] 0.0
          %565 = vst [vmem:[#allocation2 + $0x38] sm:$0xff] 0.0
          %566 = vst [vmem:[#allocation2 + $0x40] sm:$0xff] 0.0
          %567 = vst [vmem:[#allocation2 + $0x48] sm:$0xff] 0.0
          %568 = vst [vmem:[#allocation2 + $0x50] sm:$0xff] 0.0
          %569 = vst [vmem:[#allocation2 + $0x58] sm:$0xff] 0.0
          %570 = vst [vmem:[#allocation2 + $0x60] sm:$0xff] 0.0
          %571 = vst [vmem:[#allocation2 + $0x68] sm:$0xff] 0.0
          %572 = vst [vmem:[#allocation2 + $0x70] sm:$0xff] 0.0
          %573 = vst [vmem:[#allocation2 + $0x78] sm:$0xff] 0.0
          %574 = vst [vmem:[#allocation2 + $0x80] sm:$0xff] 0.0
          %575 = vst [vmem:[#allocation2 + $0x88] sm:$0xff] 0.0
          %576 = vst [vmem:[#allocation2 + $0x90] sm:$0xff] 0.0
          %577 = vst [vmem:[#allocation2 + $0x98] sm:$0xff] 0.0
          %578 = vst [vmem:[#allocation2 + $0xa0] sm:$0xff] 0.0
          %579 = vst [vmem:[#allocation2 + $0xa8] sm:$0xff] 0.0
          %580 = vst [vmem:[#allocation2 + $0xb0] sm:$0xff] 0.0
          %581 = vst [vmem:[#allocation2 + $0xb8] sm:$0xff] 0.0
          %582 = vst [vmem:[#allocation2 + $0xc0] sm:$0xff] 0.0
          %583 = vst [vmem:[#allocation2 + $0xc8] sm:$0xff] 0.0
          %584 = vst [vmem:[#allocation2 + $0xd0] sm:$0xff] 0.0
          %585 = vst [vmem:[#allocation2 + $0xd8] sm:$0xff] 0.0
          %586 = vst [vmem:[#allocation2 + $0xe0] sm:$0xff] 0.0
          %587 = vst [vmem:[#allocation2 + $0xe8] sm:$0xff] 0.0
          %588 = vst [vmem:[#allocation2 + $0xf0] sm:$0xff] 0.0
          %589 = vst [vmem:[#allocation2 + $0xf8] sm:$0xff] 0.0
        $region76: #{tpu_custom_call.1} parent=51 // pred_fallthru
          _
        %v590 = vld [vmem:[#allocation2] sm:$0xff]
        %v591 = vld [vmem:[#allocation2 + $0x8] sm:$0xff]
        %v592 = vld [vmem:[#allocation2 + $0x10] sm:$0xff]
        %v593 = vld [vmem:[#allocation2 + $0x18] sm:$0xff]
        %v594 = vld [vmem:[#allocation2 + $0x20] sm:$0xff]
        %v595 = vld [vmem:[#allocation2 + $0x28] sm:$0xff]
        %v596 = vld [vmem:[#allocation2 + $0x30] sm:$0xff]
        %v597 = vld [vmem:[#allocation2 + $0x38] sm:$0xff]
        %v598 = vld [vmem:[#allocation2 + $0x40] sm:$0xff]
        %v599 = vld [vmem:[#allocation2 + $0x48] sm:$0xff]
        %v600 = vld [vmem:[#allocation2 + $0x50] sm:$0xff]
        %v601 = vld [vmem:[#allocation2 + $0x58] sm:$0xff]
        %v602 = vld [vmem:[#allocation2 + $0x60] sm:$0xff]
        %v603 = vld [vmem:[#allocation2 + $0x68] sm:$0xff]
        %v604 = vld [vmem:[#allocation2 + $0x70] sm:$0xff]
        %v605 = vld [vmem:[#allocation2 + $0x78] sm:$0xff]
        %v606 = vld [vmem:[#allocation2 + $0x80] sm:$0xff]
        %v607 = vld [vmem:[#allocation2 + $0x88] sm:$0xff]
        %v608 = vld [vmem:[#allocation2 + $0x90] sm:$0xff]
        %v609 = vld [vmem:[#allocation2 + $0x98] sm:$0xff]
        %v610 = vld [vmem:[#allocation2 + $0xa0] sm:$0xff]
        %v611 = vld [vmem:[#allocation2 + $0xa8] sm:$0xff]
        %v612 = vld [vmem:[#allocation2 + $0xb0] sm:$0xff]
        %v613 = vld [vmem:[#allocation2 + $0xb8] sm:$0xff]
        %v614 = vld [vmem:[#allocation2 + $0xc0] sm:$0xff]
        %v615 = vld [vmem:[#allocation2 + $0xc8] sm:$0xff]
        %v616 = vld [vmem:[#allocation2 + $0xd0] sm:$0xff]
        %v617 = vld [vmem:[#allocation2 + $0xd8] sm:$0xff]
        %v618 = vld [vmem:[#allocation2 + $0xe0] sm:$0xff]
        %v619 = vld [vmem:[#allocation2 + $0xe8] sm:$0xff]
        %v620 = vld [vmem:[#allocation2 + $0xf0] sm:$0xff]
        %v621 = vld [vmem:[#allocation2 + $0xf8] sm:$0xff]
        %v622 = vld [vmem:[%s490] sm:$0xff]
        %v623 = vld [vmem:[%s490 + $0x8] sm:$0xff]
        %v624 = vld [vmem:[%s490 + $0x10] sm:$0xff]
        %v625 = vld [vmem:[%s490 + $0x18] sm:$0xff]
        %v626 = vld [vmem:[%s490 + $0x20] sm:$0xff]
        %v627 = vld [vmem:[%s490 + $0x28] sm:$0xff]
        %v628 = vld [vmem:[%s490 + $0x30] sm:$0xff]
        %v629 = vld [vmem:[%s490 + $0x38] sm:$0xff]
        %v630 = vld [vmem:[%s490 + $0x40] sm:$0xff]
        %v631 = vld [vmem:[%s490 + $0x48] sm:$0xff]
        %v632 = vld [vmem:[%s490 + $0x50] sm:$0xff]
        %v633 = vld [vmem:[%s490 + $0x58] sm:$0xff]
        %v634 = vld [vmem:[%s490 + $0x60] sm:$0xff]
        %v635 = vld [vmem:[%s490 + $0x68] sm:$0xff]
        %v636 = vld [vmem:[%s490 + $0x70] sm:$0xff]
        %v637 = vld [vmem:[%s490 + $0x78] sm:$0xff]
        %v638 = vld [vmem:[%s490 + $0x80] sm:$0xff]
        %v639 = vld [vmem:[%s490 + $0x88] sm:$0xff]
        %v640 = vld [vmem:[%s490 + $0x90] sm:$0xff]
        %v641 = vld [vmem:[%s490 + $0x98] sm:$0xff]
        %v642 = vld [vmem:[%s490 + $0xa0] sm:$0xff]
        %v643 = vld [vmem:[%s490 + $0xa8] sm:$0xff]
        %v644 = vld [vmem:[%s490 + $0xb0] sm:$0xff]
        %v645 = vld [vmem:[%s490 + $0xb8] sm:$0xff]
        %v646 = vld [vmem:[%s490 + $0xc0] sm:$0xff]
        %v647 = vld [vmem:[%s490 + $0xc8] sm:$0xff]
        %v648 = vld [vmem:[%s490 + $0xd0] sm:$0xff]
        %v649 = vld [vmem:[%s490 + $0xd8] sm:$0xff]
        %v650 = vld [vmem:[%s490 + $0xe0] sm:$0xff]
        %v651 = vld [vmem:[%s490 + $0xe8] sm:$0xff]
        %v652 = vld [vmem:[%s490 + $0xf0] sm:$0xff]
        %v653 = vld [vmem:[%s490 + $0xf8] sm:$0xff]
        %v654 = vld [vmem:[#allocation4] sm:$0xf]
        %v655 = vld [vmem:[#allocation4 + $0x4] sm:$0xf]
        %v656 = vld [vmem:[#allocation4 + $0x8] sm:$0xf]
        %v657 = vld [vmem:[#allocation4 + $0xc] sm:$0xf]
        %v658 = vld [vmem:[#allocation4 + $0x10] sm:$0xf]
        %v659 = vld [vmem:[#allocation4 + $0x14] sm:$0xf]
        %v660 = vld [vmem:[#allocation4 + $0x18] sm:$0xf]
        %v661 = vld [vmem:[#allocation4 + $0x1c] sm:$0xf]
        %v662 = vld [vmem:[#allocation4 + $0x20] sm:$0xf]
        %v663 = vld [vmem:[#allocation4 + $0x24] sm:$0xf]
        %v664 = vld [vmem:[#allocation4 + $0x28] sm:$0xf]
        %v665 = vld [vmem:[#allocation4 + $0x2c] sm:$0xf]
        %v666 = vld [vmem:[#allocation4 + $0x30] sm:$0xf]
        %v667 = vld [vmem:[#allocation4 + $0x34] sm:$0xf]
        %v668 = vld [vmem:[#allocation4 + $0x38] sm:$0xf]
        %v669 = vld [vmem:[#allocation4 + $0x3c] sm:$0xf]
        %v670 = vld [vmem:[#allocation4 + $0x40] sm:$0xf]
        %v671 = vld [vmem:[#allocation4 + $0x44] sm:$0xf]
        %v672 = vld [vmem:[#allocation4 + $0x48] sm:$0xf]
        %v673 = vld [vmem:[#allocation4 + $0x4c] sm:$0xf]
        %v674 = vld [vmem:[#allocation4 + $0x50] sm:$0xf]
        %v675 = vld [vmem:[#allocation4 + $0x54] sm:$0xf]
        %v676 = vld [vmem:[#allocation4 + $0x58] sm:$0xf]
        %v677 = vld [vmem:[#allocation4 + $0x5c] sm:$0xf]
        %v678 = vld [vmem:[#allocation4 + $0x60] sm:$0xf]
        %v679 = vld [vmem:[#allocation4 + $0x64] sm:$0xf]
        %v680 = vld [vmem:[#allocation4 + $0x68] sm:$0xf]
        %v681 = vld [vmem:[#allocation4 + $0x6c] sm:$0xf]
        %v682 = vld [vmem:[#allocation4 + $0x70] sm:$0xf]
        %v683 = vld [vmem:[#allocation4 + $0x74] sm:$0xf]
        %v684 = vld [vmem:[#allocation4 + $0x78] sm:$0xf]
        %v685 = vld [vmem:[#allocation4 + $0x7c] sm:$0xf]
        %v718 = vunpack.c.l.b16 %v622
        %v719 = vunpack.c.h.b16 %v622
        %v720 = vunpack.c.l.b16 %v623
        %v721 = vunpack.c.h.b16 %v623
        %v722 = vunpack.c.l.b16 %v624
        %v723 = vunpack.c.h.b16 %v624
        %v724 = vunpack.c.l.b16 %v625
        %v725 = vunpack.c.h.b16 %v625
        %v726 = vunpack.c.l.b16 %v626
        %v727 = vunpack.c.h.b16 %v626
        %v728 = vunpack.c.l.b16 %v627
        %v729 = vunpack.c.h.b16 %v627
        %v730 = vunpack.c.l.b16 %v628
        %v731 = vunpack.c.h.b16 %v628
        %v732 = vunpack.c.l.b16 %v629
        %v733 = vunpack.c.h.b16 %v629
        %v734 = vunpack.c.l.b16 %v630
        %v735 = vunpack.c.h.b16 %v630
        %v736 = vunpack.c.l.b16 %v631
        %v737 = vunpack.c.h.b16 %v631
        %v738 = vunpack.c.l.b16 %v632
        %v739 = vunpack.c.h.b16 %v632
        %v740 = vunpack.c.l.b16 %v633
        %v741 = vunpack.c.h.b16 %v633
        %v742 = vunpack.c.l.b16 %v634
        %v743 = vunpack.c.h.b16 %v634
        %v744 = vunpack.c.l.b16 %v635
        %v745 = vunpack.c.h.b16 %v635
        %v746 = vunpack.c.l.b16 %v636
        %v747 = vunpack.c.h.b16 %v636
        %v748 = vunpack.c.l.b16 %v637
        %v749 = vunpack.c.h.b16 %v637
        %v750 = vunpack.c.l.b16 %v638
        %v751 = vunpack.c.h.b16 %v638
        %v752 = vunpack.c.l.b16 %v639
        %v753 = vunpack.c.h.b16 %v639
        %v754 = vunpack.c.l.b16 %v640
        %v755 = vunpack.c.h.b16 %v640
        %v756 = vunpack.c.l.b16 %v641
        %v757 = vunpack.c.h.b16 %v641
        %v758 = vunpack.c.l.b16 %v642
        %v759 = vunpack.c.h.b16 %v642
        %v760 = vunpack.c.l.b16 %v643
        %v761 = vunpack.c.h.b16 %v643
        %v762 = vunpack.c.l.b16 %v644
        %v763 = vunpack.c.h.b16 %v644
        %v764 = vunpack.c.l.b16 %v645
        %v765 = vunpack.c.h.b16 %v645
        %v766 = vunpack.c.l.b16 %v646
        %v767 = vunpack.c.h.b16 %v646
        %v768 = vunpack.c.l.b16 %v647
        %v769 = vunpack.c.h.b16 %v647
        %v770 = vunpack.c.l.b16 %v648
        %v771 = vunpack.c.h.b16 %v648
        %v772 = vunpack.c.l.b16 %v649
        %v773 = vunpack.c.h.b16 %v649
        %v774 = vunpack.c.l.b16 %v650
        %v775 = vunpack.c.h.b16 %v650
        %v776 = vunpack.c.l.b16 %v651
        %v777 = vunpack.c.h.b16 %v651
        %v778 = vunpack.c.l.b16 %v652
        %v779 = vunpack.c.h.b16 %v652
        %v780 = vunpack.c.l.b16 %v653
        %v781 = vunpack.c.h.b16 %v653
        %v782 = vpack.c.b16 %v720, %v718
        %v783 = vpack.c.b16 %v721, %v719
        %v784 = vpack.c.b16 %v724, %v722
        %v785 = vpack.c.b16 %v725, %v723
        %v786 = vpack.c.b16 %v728, %v726
        %v787 = vpack.c.b16 %v729, %v727
        %v788 = vpack.c.b16 %v732, %v730
        %v789 = vpack.c.b16 %v733, %v731
        %v790 = vpack.c.b16 %v736, %v734
        %v791 = vpack.c.b16 %v737, %v735
        %v792 = vpack.c.b16 %v740, %v738
        %v793 = vpack.c.b16 %v741, %v739
        %v794 = vpack.c.b16 %v744, %v742
        %v795 = vpack.c.b16 %v745, %v743
        %v796 = vpack.c.b16 %v748, %v746
        %v797 = vpack.c.b16 %v749, %v747
        %v798 = vpack.c.b16 %v752, %v750
        %v799 = vpack.c.b16 %v753, %v751
        %v800 = vpack.c.b16 %v756, %v754
        %v801 = vpack.c.b16 %v757, %v755
        %v802 = vpack.c.b16 %v760, %v758
        %v803 = vpack.c.b16 %v761, %v759
        %v804 = vpack.c.b16 %v764, %v762
        %v805 = vpack.c.b16 %v765, %v763
        %v806 = vpack.c.b16 %v768, %v766
        %v807 = vpack.c.b16 %v769, %v767
        %v808 = vpack.c.b16 %v772, %v770
        %v809 = vpack.c.b16 %v773, %v771
        %v810 = vpack.c.b16 %v776, %v774
        %v811 = vpack.c.b16 %v777, %v775
        %v812 = vpack.c.b16 %v780, %v778
        %v813 = vpack.c.b16 %v781, %v779
        %v878 = vunpack.c.l.b16 %v654
        %v879 = vunpack.c.l.b16 %v655
        %v880 = vunpack.c.l.b16 %v656
        %v881 = vunpack.c.l.b16 %v657
        %v882 = vunpack.c.l.b16 %v658
        %v883 = vunpack.c.l.b16 %v659
        %v884 = vunpack.c.l.b16 %v660
        %v885 = vunpack.c.l.b16 %v661
        %v886 = vunpack.c.l.b16 %v662
        %v887 = vunpack.c.l.b16 %v663
        %v888 = vunpack.c.l.b16 %v664
        %v889 = vunpack.c.l.b16 %v665
        %v890 = vunpack.c.l.b16 %v666
        %v891 = vunpack.c.l.b16 %v667
        %v892 = vunpack.c.l.b16 %v668
        %v893 = vunpack.c.l.b16 %v669
        %v894 = vunpack.c.l.b16 %v670
        %v895 = vunpack.c.l.b16 %v671
        %v896 = vunpack.c.l.b16 %v672
        %v897 = vunpack.c.l.b16 %v673
        %v898 = vunpack.c.l.b16 %v674
        %v899 = vunpack.c.l.b16 %v675
        %v900 = vunpack.c.l.b16 %v676
        %v901 = vunpack.c.l.b16 %v677
        %v902 = vunpack.c.l.b16 %v678
        %v903 = vunpack.c.l.b16 %v679
        %v904 = vunpack.c.l.b16 %v680
        %v905 = vunpack.c.l.b16 %v681
        %v906 = vunpack.c.l.b16 %v682
        %v907 = vunpack.c.l.b16 %v683
        %v908 = vunpack.c.l.b16 %v684
        %v909 = vunpack.c.l.b16 %v685
        %v910 = vpack.c.b16 %v879, %v878
        %v911 = vpack.c.b16 %v881, %v880
        %v912 = vpack.c.b16 %v883, %v882
        %v913 = vpack.c.b16 %v885, %v884
        %v914 = vpack.c.b16 %v887, %v886
        %v915 = vpack.c.b16 %v889, %v888
        %v916 = vpack.c.b16 %v891, %v890
        %v917 = vpack.c.b16 %v893, %v892
        %v918 = vpack.c.b16 %v895, %v894
        %v919 = vpack.c.b16 %v897, %v896
        %v920 = vpack.c.b16 %v899, %v898
        %v921 = vpack.c.b16 %v901, %v900
        %v922 = vpack.c.b16 %v903, %v902
        %v923 = vpack.c.b16 %v905, %v904
        %v924 = vpack.c.b16 %v907, %v906
        %v925 = vpack.c.b16 %v909, %v908
        %942 = vmatprep.subr.bf16.mxu0 0
        %943 = vmatpush1.bf16.msra.mxu0 %v910
        %944 = vmatprep.subr.bf16.mxu0 0
        %945 = vmatpush1.bf16.msra.mxu0 %v911
        %946 = vmatprep.subr.bf16.mxu0 0
        %947 = vmatpush1.bf16.msra.mxu0 %v912
        %948 = vmatprep.subr.bf16.mxu0 0
        %949 = vmatpush1.bf16.msra.mxu0 %v913
        %950 = vmatprep.subr.bf16.mxu0 0
        %951 = vmatpush1.bf16.msra.mxu0 %v914
        %952 = vmatprep.subr.bf16.mxu0 0
        %953 = vmatpush1.bf16.msra.mxu0 %v915
        %954 = vmatprep.subr.bf16.mxu0 0
        %955 = vmatpush1.bf16.msra.mxu0 %v916
        %956 = vmatprep.subr.bf16.mxu0 0
        %957 = vmatpush1.bf16.msra.mxu0 %v917
        %958 = vmatprep.subr.bf16.mxu0 0
        %959 = vmatpush1.bf16.msra.mxu0 %v918
        %960 = vmatprep.subr.bf16.mxu0 0
        %961 = vmatpush1.bf16.msra.mxu0 %v919
        %962 = vmatprep.subr.bf16.mxu0 0
        %963 = vmatpush1.bf16.msra.mxu0 %v920
        %964 = vmatprep.subr.bf16.mxu0 0
        %965 = vmatpush1.bf16.msra.mxu0 %v921
        %966 = vmatprep.subr.bf16.mxu0 0
        %967 = vmatpush1.bf16.msra.mxu0 %v922
        %968 = vmatprep.subr.bf16.mxu0 0
        %969 = vmatpush1.bf16.msra.mxu0 %v923
        %970 = vmatprep.subr.bf16.mxu0 0
        %971 = vmatpush1.bf16.msra.mxu0 %v924
        %972 = vmatprep.subr.bf16.mxu0 0
        %973 = vmatpush1.bf16.msra.mxu0 %v925
        %974 = vmatprep.mubr.bf16.mxu0 %v783
        %975 = vmatmul.mubr.bf16.gmra.mrb[0].mxu0 %v782
        %v976 = vpop.f32.mrb[0].mxu0
        %v977 = vadd.f32 0.0, %v976
        %v978 = vpop.f32.mrb[0].mxu0
        %v979 = vpop.f32.mrb[0].mxu0
        %v980 = vadd.f32 0.0, %v979
        %v981 = vpop.f32.mrb[0].mxu0
        %982 = vmatprep.mubr.bf16.mxu0 %v785
        %983 = vmatmul.mubr.bf16.gmra.mrb[0].mxu0 %v784
        %v984 = vpop.f32.mrb[0].mxu0
        %v985 = vadd.f32 0.0, %v984
        %v986 = vpop.f32.mrb[0].mxu0
        %v987 = vpop.f32.mrb[0].mxu0
        %v988 = vadd.f32 0.0, %v987
        %v989 = vpop.f32.mrb[0].mxu0
        %990 = vmatprep.mubr.bf16.mxu0 %v787
        %991 = vmatmul.mubr.bf16.gmra.mrb[0].mxu0 %v786
        %v992 = vpop.f32.mrb[0].mxu0
        %v993 = vadd.f32 0.0, %v992
        %v994 = vpop.f32.mrb[0].mxu0
        %v995 = vpop.f32.mrb[0].mxu0
        %v996 = vadd.f32 0.0, %v995
        %v997 = vpop.f32.mrb[0].mxu0
        %998 = vmatprep.mubr.bf16.mxu0 %v789
        %999 = vmatmul.mubr.bf16.gmra.mrb[0].mxu0 %v788
        %v1000 = vpop.f32.mrb[0].mxu0
        %v1001 = vadd.f32 0.0, %v1000
        %v1002 = vpop.f32.mrb[0].mxu0
        %v1003 = vpop.f32.mrb[0].mxu0
        %v1004 = vadd.f32 0.0, %v1003
        %v1005 = vpop.f32.mrb[0].mxu0
        %1006 = vmatprep.mubr.bf16.mxu0 %v791
        %1007 = vmatmul.mubr.bf16.gmra.mrb[0].mxu0 %v790
        %v1008 = vpop.f32.mrb[0].mxu0
        %v1009 = vadd.f32 0.0, %v1008
        %v1010 = vpop.f32.mrb[0].mxu0
        %v1011 = vpop.f32.mrb[0].mxu0
        %v1012 = vadd.f32 0.0, %v1011
        %v1013 = vpop.f32.mrb[0].mxu0
        %1014 = vmatprep.mubr.bf16.mxu0 %v793
        %1015 = vmatmul.mubr.bf16.gmra.mrb[0].mxu0 %v792
        %v1016 = vpop.f32.mrb[0].mxu0
        %v1017 = vadd.f32 0.0, %v1016
        %v1018 = vpop.f32.mrb[0].mxu0
        %v1019 = vpop.f32.mrb[0].mxu0
        %v1020 = vadd.f32 0.0, %v1019
        %v1021 = vpop.f32.mrb[0].mxu0
        %1022 = vmatprep.mubr.bf16.mxu0 %v795
        %1023 = vmatmul.mubr.bf16.gmra.mrb[0].mxu0 %v794
        %v1024 = vpop.f32.mrb[0].mxu0
        %v1025 = vadd.f32 0.0, %v1024
        %v1026 = vpop.f32.mrb[0].mxu0
        %v1027 = vpop.f32.mrb[0].mxu0
        %v1028 = vadd.f32 0.0, %v1027
        %v1029 = vpop.f32.mrb[0].mxu0
        %1030 = vmatprep.mubr.bf16.mxu0 %v797
        %1031 = vmatmul.mubr.bf16.gmra.mrb[0].mxu0 %v796
        %v1032 = vpop.f32.mrb[0].mxu0
        %v1033 = vadd.f32 0.0, %v1032
        %v1034 = vpop.f32.mrb[0].mxu0
        %v1035 = vpop.f32.mrb[0].mxu0
        %v1036 = vadd.f32 0.0, %v1035
        %v1037 = vpop.f32.mrb[0].mxu0
        %1038 = vmatprep.mubr.bf16.mxu0 %v799
        %1039 = vmatmul.mubr.bf16.gmra.mrb[0].mxu0 %v798
        %v1040 = vpop.f32.mrb[0].mxu0
        %v1041 = vadd.f32 0.0, %v1040
        %v1042 = vpop.f32.mrb[0].mxu0
        %v1043 = vpop.f32.mrb[0].mxu0
        %v1044 = vadd.f32 0.0, %v1043
        %v1045 = vpop.f32.mrb[0].mxu0
        %1046 = vmatprep.mubr.bf16.mxu0 %v801
        %1047 = vmatmul.mubr.bf16.gmra.mrb[0].mxu0 %v800
        %v1048 = vpop.f32.mrb[0].mxu0
        %v1049 = vadd.f32 0.0, %v1048
        %v1050 = vpop.f32.mrb[0].mxu0
        %v1051 = vpop.f32.mrb[0].mxu0
        %v1052 = vadd.f32 0.0, %v1051
        %v1053 = vpop.f32.mrb[0].mxu0
        %1054 = vmatprep.mubr.bf16.mxu0 %v803
        %1055 = vmatmul.mubr.bf16.gmra.mrb[0].mxu0 %v802
        %v1056 = vpop.f32.mrb[0].mxu0
        %v1057 = vadd.f32 0.0, %v1056
        %v1058 = vpop.f32.mrb[0].mxu0
        %v1059 = vpop.f32.mrb[0].mxu0
        %v1060 = vadd.f32 0.0, %v1059
        %v1061 = vpop.f32.mrb[0].mxu0
        %1062 = vmatprep.mubr.bf16.mxu0 %v805
        %1063 = vmatmul.mubr.bf16.gmra.mrb[0].mxu0 %v804
        %v1064 = vpop.f32.mrb[0].mxu0
        %v1065 = vadd.f32 0.0, %v1064
        %v1066 = vpop.f32.mrb[0].mxu0
        %v1067 = vpop.f32.mrb[0].mxu0
        %v1068 = vadd.f32 0.0, %v1067
        %v1069 = vpop.f32.mrb[0].mxu0
        %1070 = vmatprep.mubr.bf16.mxu0 %v807
        %1071 = vmatmul.mubr.bf16.gmra.mrb[0].mxu0 %v806
        %v1072 = vpop.f32.mrb[0].mxu0
        %v1073 = vadd.f32 0.0, %v1072
        %v1074 = vpop.f32.mrb[0].mxu0
        %v1075 = vpop.f32.mrb[0].mxu0
        %v1076 = vadd.f32 0.0, %v1075
        %v1077 = vpop.f32.mrb[0].mxu0
        %1078 = vmatprep.mubr.bf16.mxu0 %v809
        %1079 = vmatmul.mubr.bf16.gmra.mrb[0].mxu0 %v808
        %v1080 = vpop.f32.mrb[0].mxu0
        %v1081 = vadd.f32 0.0, %v1080
        %v1082 = vpop.f32.mrb[0].mxu0
        %v1083 = vpop.f32.mrb[0].mxu0
        %v1084 = vadd.f32 0.0, %v1083
        %v1085 = vpop.f32.mrb[0].mxu0
        %1086 = vmatprep.mubr.bf16.mxu0 %v811
        %1087 = vmatmul.mubr.bf16.gmra.mrb[0].mxu0 %v810
        %v1088 = vpop.f32.mrb[0].mxu0
        %v1089 = vadd.f32 0.0, %v1088
        %v1090 = vpop.f32.mrb[0].mxu0
        %v1091 = vpop.f32.mrb[0].mxu0
        %v1092 = vadd.f32 0.0, %v1091
        %v1093 = vpop.f32.mrb[0].mxu0
        %1094 = vmatprep.mubr.bf16.mxu0 %v813
        %1095 = vmatmul.mubr.bf16.gmra.mrb[0].mxu0 %v812
        %v1096 = vpop.f32.mrb[0].mxu0
        %v1097 = vadd.f32 0.0, %v1096
        %v1098 = vpop.f32.mrb[0].mxu0
        %v1099 = vpop.f32.mrb[0].mxu0
        %v1100 = vadd.f32 0.0, %v1099
        %v1101 = vpop.f32.mrb[0].mxu0
        %1102 = vdwg.mxu0
        %v1103 = vadd.f32 %v590, %v977
        %v1104 = vadd.f32 %v591, %v980
        %v1105 = vadd.f32 %v592, %v985
        %v1106 = vadd.f32 %v593, %v988
        %v1107 = vadd.f32 %v594, %v993
        %v1108 = vadd.f32 %v595, %v996
        %v1109 = vadd.f32 %v596, %v1001
        %v1110 = vadd.f32 %v597, %v1004
        %v1111 = vadd.f32 %v598, %v1009
        %v1112 = vadd.f32 %v599, %v1012
        %v1113 = vadd.f32 %v600, %v1017
        %v1114 = vadd.f32 %v601, %v1020
        %v1115 = vadd.f32 %v602, %v1025
        %v1116 = vadd.f32 %v603, %v1028
        %v1117 = vadd.f32 %v604, %v1033
        %v1118 = vadd.f32 %v605, %v1036
        %v1119 = vadd.f32 %v606, %v1041
        %v1120 = vadd.f32 %v607, %v1044
        %v1121 = vadd.f32 %v608, %v1049
        %v1122 = vadd.f32 %v609, %v1052
        %v1123 = vadd.f32 %v610, %v1057
        %v1124 = vadd.f32 %v611, %v1060
        %v1125 = vadd.f32 %v612, %v1065
        %v1126 = vadd.f32 %v613, %v1068
        %v1127 = vadd.f32 %v614, %v1073
        %v1128 = vadd.f32 %v615, %v1076
        %v1129 = vadd.f32 %v616, %v1081
        %v1130 = vadd.f32 %v617, %v1084
        %v1131 = vadd.f32 %v618, %v1089
        %v1132 = vadd.f32 %v619, %v1092
        %v1133 = vadd.f32 %v620, %v1097
        %v1134 = vadd.f32 %v621, %v1100
        %1135 = vst [vmem:[#allocation2] sm:$0xff] %v1103
        %1136 = vst [vmem:[#allocation2 + $0x8] sm:$0xff] %v1104
        %1137 = vst [vmem:[#allocation2 + $0x10] sm:$0xff] %v1105
        %1138 = vst [vmem:[#allocation2 + $0x18] sm:$0xff] %v1106
        %1139 = vst [vmem:[#allocation2 + $0x20] sm:$0xff] %v1107
        %1140 = vst [vmem:[#allocation2 + $0x28] sm:$0xff] %v1108
        %1141 = vst [vmem:[#allocation2 + $0x30] sm:$0xff] %v1109
        %1142 = vst [vmem:[#allocation2 + $0x38] sm:$0xff] %v1110
        %1143 = vst [vmem:[#allocation2 + $0x40] sm:$0xff] %v1111
        %1144 = vst [vmem:[#allocation2 + $0x48] sm:$0xff] %v1112
        %1145 = vst [vmem:[#allocation2 + $0x50] sm:$0xff] %v1113
        %1146 = vst [vmem:[#allocation2 + $0x58] sm:$0xff] %v1114
        %1147 = vst [vmem:[#allocation2 + $0x60] sm:$0xff] %v1115
        %1148 = vst [vmem:[#allocation2 + $0x68] sm:$0xff] %v1116
        %1149 = vst [vmem:[#allocation2 + $0x70] sm:$0xff] %v1117
        %1150 = vst [vmem:[#allocation2 + $0x78] sm:$0xff] %v1118
        %1151 = vst [vmem:[#allocation2 + $0x80] sm:$0xff] %v1119
        %1152 = vst [vmem:[#allocation2 + $0x88] sm:$0xff] %v1120
        %1153 = vst [vmem:[#allocation2 + $0x90] sm:$0xff] %v1121
        %1154 = vst [vmem:[#allocation2 + $0x98] sm:$0xff] %v1122
        %1155 = vst [vmem:[#allocation2 + $0xa0] sm:$0xff] %v1123
        %1156 = vst [vmem:[#allocation2 + $0xa8] sm:$0xff] %v1124
        %1157 = vst [vmem:[#allocation2 + $0xb0] sm:$0xff] %v1125
        %1158 = vst [vmem:[#allocation2 + $0xb8] sm:$0xff] %v1126
        %1159 = vst [vmem:[#allocation2 + $0xc0] sm:$0xff] %v1127
        %1160 = vst [vmem:[#allocation2 + $0xc8] sm:$0xff] %v1128
        %1161 = vst [vmem:[#allocation2 + $0xd0] sm:$0xff] %v1129
        %1162 = vst [vmem:[#allocation2 + $0xd8] sm:$0xff] %v1130
        %1163 = vst [vmem:[#allocation2 + $0xe0] sm:$0xff] %v1131
        %1164 = vst [vmem:[#allocation2 + $0xe8] sm:$0xff] %v1132
        %1165 = vst [vmem:[#allocation2 + $0xf0] sm:$0xff] %v1133
        %1166 = vst [vmem:[#allocation2 + $0xf8] sm:$0xff] %v1134
        // Predicated region
        $region77: #{tpu_custom_call.1} parent=51 // pred_check
          %p1167 = pneg %p518
        $region78: #{tpu_custom_call.1} parent=51 // pred_check_branch
          %1169 = sbr.rel (%p1167) target = $region80
        $region79: #{tpu_custom_call.1} parent=51 // pred_region
          %v1170 = vld [vmem:[#allocation2] sm:$0xff]
          %v1171 = vld [vmem:[#allocation2 + $0x8] sm:$0xff]
          %v1172 = vld [vmem:[#allocation2 + $0x10] sm:$0xff]
          %v1173 = vld [vmem:[#allocation2 + $0x18] sm:$0xff]
          %v1174 = vld [vmem:[#allocation2 + $0x20] sm:$0xff]
          %v1175 = vld [vmem:[#allocation2 + $0x28] sm:$0xff]
          %v1176 = vld [vmem:[#allocation2 + $0x30] sm:$0xff]
          %v1177 = vld [vmem:[#allocation2 + $0x38] sm:$0xff]
          %v1178 = vld [vmem:[#allocation2 + $0x40] sm:$0xff]
          %v1179 = vld [vmem:[#allocation2 + $0x48] sm:$0xff]
          %v1180 = vld [vmem:[#allocation2 + $0x50] sm:$0xff]
          %v1181 = vld [vmem:[#allocation2 + $0x58] sm:$0xff]
          %v1182 = vld [vmem:[#allocation2 + $0x60] sm:$0xff]
          %v1183 = vld [vmem:[#allocation2 + $0x68] sm:$0xff]
          %v1184 = vld [vmem:[#allocation2 + $0x70] sm:$0xff]
          %v1185 = vld [vmem:[#allocation2 + $0x78] sm:$0xff]
          %v1186 = vld [vmem:[#allocation2 + $0x80] sm:$0xff]
          %v1187 = vld [vmem:[#allocation2 + $0x88] sm:$0xff]
          %v1188 = vld [vmem:[#allocation2 + $0x90] sm:$0xff]
          %v1189 = vld [vmem:[#allocation2 + $0x98] sm:$0xff]
          %v1190 = vld [vmem:[#allocation2 + $0xa0] sm:$0xff]
          %v1191 = vld [vmem:[#allocation2 + $0xa8] sm:$0xff]
          %v1192 = vld [vmem:[#allocation2 + $0xb0] sm:$0xff]
          %v1193 = vld [vmem:[#allocation2 + $0xb8] sm:$0xff]
          %v1194 = vld [vmem:[#allocation2 + $0xc0] sm:$0xff]
          %v1195 = vld [vmem:[#allocation2 + $0xc8] sm:$0xff]
          %v1196 = vld [vmem:[#allocation2 + $0xd0] sm:$0xff]
          %v1197 = vld [vmem:[#allocation2 + $0xd8] sm:$0xff]
          %v1198 = vld [vmem:[#allocation2 + $0xe0] sm:$0xff]
          %v1199 = vld [vmem:[#allocation2 + $0xe8] sm:$0xff]
          %v1200 = vld [vmem:[#allocation2 + $0xf0] sm:$0xff]
          %v1201 = vld [vmem:[#allocation2 + $0xf8] sm:$0xff]
          %v1202 = vld [vmem:[%s501] sm:$0xff]
          %v1203 = vld [vmem:[%s501 + $0x8] sm:$0xff]
          %v1204 = vld [vmem:[%s501 + $0x10] sm:$0xff]
          %v1205 = vld [vmem:[%s501 + $0x18] sm:$0xff]
          %v1206 = vld [vmem:[%s501 + $0x20] sm:$0xff]
          %v1207 = vld [vmem:[%s501 + $0x28] sm:$0xff]
          %v1208 = vld [vmem:[%s501 + $0x30] sm:$0xff]
          %v1209 = vld [vmem:[%s501 + $0x38] sm:$0xff]
          %v1210 = vld [vmem:[%s501 + $0x40] sm:$0xff]
          %v1211 = vld [vmem:[%s501 + $0x48] sm:$0xff]
          %v1212 = vld [vmem:[%s501 + $0x50] sm:$0xff]
          %v1213 = vld [vmem:[%s501 + $0x58] sm:$0xff]
          %v1214 = vld [vmem:[%s501 + $0x60] sm:$0xff]
          %v1215 = vld [vmem:[%s501 + $0x68] sm:$0xff]
          %v1216 = vld [vmem:[%s501 + $0x70] sm:$0xff]
          %v1217 = vld [vmem:[%s501 + $0x78] sm:$0xff]
          %v1218 = vld [vmem:[%s501 + $0x80] sm:$0xff]
          %v1219 = vld [vmem:[%s501 + $0x88] sm:$0xff]
          %v1220 = vld [vmem:[%s501 + $0x90] sm:$0xff]
          %v1221 = vld [vmem:[%s501 + $0x98] sm:$0xff]
          %v1222 = vld [vmem:[%s501 + $0xa0] sm:$0xff]
          %v1223 = vld [vmem:[%s501 + $0xa8] sm:$0xff]
          %v1224 = vld [vmem:[%s501 + $0xb0] sm:$0xff]
          %v1225 = vld [vmem:[%s501 + $0xb8] sm:$0xff]
          %v1226 = vld [vmem:[%s501 + $0xc0] sm:$0xff]
          %v1227 = vld [vmem:[%s501 + $0xc8] sm:$0xff]
          %v1228 = vld [vmem:[%s501 + $0xd0] sm:$0xff]
          %v1229 = vld [vmem:[%s501 + $0xd8] sm:$0xff]
          %v1230 = vld [vmem:[%s501 + $0xe0] sm:$0xff]
          %v1231 = vld [vmem:[%s501 + $0xe8] sm:$0xff]
          %v1232 = vld [vmem:[%s501 + $0xf0] sm:$0xff]
          %v1233 = vld [vmem:[%s501 + $0xf8] sm:$0xff]
          %1235 = vset.pattern.permute.xlu0 0
          %1236 = vperm.xlu0 %1235, %v1202
          %v1237 = vpop.permute.xlu0 %1236
          %1240 = vset.pattern.permute.xlu0 0
          %1241 = vperm.xlu0 %1240, %v1203
          %v1242 = vpop.permute.xlu0 %1241
          %1245 = vset.pattern.permute.xlu0 0
          %1246 = vperm.xlu0 %1245, %v1204
          %v1247 = vpop.permute.xlu0 %1246
          %1250 = vset.pattern.permute.xlu0 0
          %1251 = vperm.xlu0 %1250, %v1205
          %v1252 = vpop.permute.xlu0 %1251
          %1255 = vset.pattern.permute.xlu0 0
          %1256 = vperm.xlu0 %1255, %v1206
          %v1257 = vpop.permute.xlu0 %1256
          %1260 = vset.pattern.permute.xlu0 0
          %1261 = vperm.xlu0 %1260, %v1207
          %v1262 = vpop.permute.xlu0 %1261
          %1265 = vset.pattern.permute.xlu0 0
          %1266 = vperm.xlu0 %1265, %v1208
          %v1267 = vpop.permute.xlu0 %1266
          %1270 = vset.pattern.permute.xlu0 0
          %1271 = vperm.xlu0 %1270, %v1209
          %v1272 = vpop.permute.xlu0 %1271
          %1275 = vset.pattern.permute.xlu0 0
          %1276 = vperm.xlu0 %1275, %v1210
          %v1277 = vpop.permute.xlu0 %1276
          %1280 = vset.pattern.permute.xlu0 0
          %1281 = vperm.xlu0 %1280, %v1211
          %v1282 = vpop.permute.xlu0 %1281
          %1285 = vset.pattern.permute.xlu0 0
          %1286 = vperm.xlu0 %1285, %v1212
          %v1287 = vpop.permute.xlu0 %1286
          %1290 = vset.pattern.permute.xlu0 0
          %1291 = vperm.xlu0 %1290, %v1213
          %v1292 = vpop.permute.xlu0 %1291
          %1295 = vset.pattern.permute.xlu0 0
          %1296 = vperm.xlu0 %1295, %v1214
          %v1297 = vpop.permute.xlu0 %1296
          %1300 = vset.pattern.permute.xlu0 0
          %1301 = vperm.xlu0 %1300, %v1215
          %v1302 = vpop.permute.xlu0 %1301
          %1305 = vset.pattern.permute.xlu0 0
          %1306 = vperm.xlu0 %1305, %v1216
          %v1307 = vpop.permute.xlu0 %1306
          %1310 = vset.pattern.permute.xlu0 0
          %1311 = vperm.xlu0 %1310, %v1217
          %v1312 = vpop.permute.xlu0 %1311
          %1315 = vset.pattern.permute.xlu0 0
          %1316 = vperm.xlu0 %1315, %v1218
          %v1317 = vpop.permute.xlu0 %1316
          %1320 = vset.pattern.permute.xlu0 0
          %1321 = vperm.xlu0 %1320, %v1219
          %v1322 = vpop.permute.xlu0 %1321
          %1325 = vset.pattern.permute.xlu0 0
          %1326 = vperm.xlu0 %1325, %v1220
          %v1327 = vpop.permute.xlu0 %1326
          %1330 = vset.pattern.permute.xlu0 0
          %1331 = vperm.xlu0 %1330, %v1221
          %v1332 = vpop.permute.xlu0 %1331
          %1335 = vset.pattern.permute.xlu0 0
          %1336 = vperm.xlu0 %1335, %v1222
          %v1337 = vpop.permute.xlu0 %1336
          %1340 = vset.pattern.permute.xlu0 0
          %1341 = vperm.xlu0 %1340, %v1223
          %v1342 = vpop.permute.xlu0 %1341
          %1345 = vset.pattern.permute.xlu0 0
          %1346 = vperm.xlu0 %1345, %v1224
          %v1347 = vpop.permute.xlu0 %1346
          %1350 = vset.pattern.permute.xlu0 0
          %1351 = vperm.xlu0 %1350, %v1225
          %v1352 = vpop.permute.xlu0 %1351
          %1355 = vset.pattern.permute.xlu0 0
          %1356 = vperm.xlu0 %1355, %v1226
          %v1357 = vpop.permute.xlu0 %1356
          %1360 = vset.pattern.permute.xlu0 0
          %1361 = vperm.xlu0 %1360, %v1227
          %v1362 = vpop.permute.xlu0 %1361
          %1365 = vset.pattern.permute.xlu0 0
          %1366 = vperm.xlu0 %1365, %v1228
          %v1367 = vpop.permute.xlu0 %1366
          %1370 = vset.pattern.permute.xlu0 0
          %1371 = vperm.xlu0 %1370, %v1229
          %v1372 = vpop.permute.xlu0 %1371
          %1375 = vset.pattern.permute.xlu0 0
          %1376 = vperm.xlu0 %1375, %v1230
          %v1377 = vpop.permute.xlu0 %1376
          %1380 = vset.pattern.permute.xlu0 0
          %1381 = vperm.xlu0 %1380, %v1231
          %v1382 = vpop.permute.xlu0 %1381
          %1385 = vset.pattern.permute.xlu0 0
          %1386 = vperm.xlu0 %1385, %v1232
          %v1387 = vpop.permute.xlu0 %1386
          %1390 = vset.pattern.permute.xlu0 0
          %1391 = vperm.xlu0 %1390, %v1233
          %v1392 = vpop.permute.xlu0 %1391
          %v1394 = vmul.f32 %v1170, %v1237
          %v1395 = vmul.f32 %v1171, %v1242
          %v1396 = vmul.f32 %v1172, %v1247
          %v1397 = vmul.f32 %v1173, %v1252
          %v1398 = vmul.f32 %v1174, %v1257
          %v1399 = vmul.f32 %v1175, %v1262
          %v1400 = vmul.f32 %v1176, %v1267
          %v1401 = vmul.f32 %v1177, %v1272
          %v1402 = vmul.f32 %v1178, %v1277
          %v1403 = vmul.f32 %v1179, %v1282
          %v1404 = vmul.f32 %v1180, %v1287
          %v1405 = vmul.f32 %v1181, %v1292
          %v1406 = vmul.f32 %v1182, %v1297
          %v1407 = vmul.f32 %v1183, %v1302
          %v1408 = vmul.f32 %v1184, %v1307
          %v1409 = vmul.f32 %v1185, %v1312
          %v1410 = vmul.f32 %v1186, %v1317
          %v1411 = vmul.f32 %v1187, %v1322
          %v1412 = vmul.f32 %v1188, %v1327
          %v1413 = vmul.f32 %v1189, %v1332
          %v1414 = vmul.f32 %v1190, %v1337
          %v1415 = vmul.f32 %v1191, %v1342
          %v1416 = vmul.f32 %v1192, %v1347
          %v1417 = vmul.f32 %v1193, %v1352
          %v1418 = vmul.f32 %v1194, %v1357
          %v1419 = vmul.f32 %v1195, %v1362
          %v1420 = vmul.f32 %v1196, %v1367
          %v1421 = vmul.f32 %v1197, %v1372
          %v1422 = vmul.f32 %v1198, %v1377
          %v1423 = vmul.f32 %v1199, %v1382
          %v1424 = vmul.f32 %v1200, %v1387
          %v1425 = vmul.f32 %v1201, %v1392
          %v1426 = vld [vmem:[#allocation3] sm:$0xff]
          %v1427 = vld [vmem:[#allocation3 + $0x8] sm:$0xff]
          %v1428 = vld [vmem:[#allocation3 + $0x10] sm:$0xff]
          %v1429 = vld [vmem:[#allocation3 + $0x18] sm:$0xff]
          %v1430 = vld [vmem:[#allocation3 + $0x20] sm:$0xff]
          %v1431 = vld [vmem:[#allocation3 + $0x28] sm:$0xff]
          %v1432 = vld [vmem:[#allocation3 + $0x30] sm:$0xff]
          %v1433 = vld [vmem:[#allocation3 + $0x38] sm:$0xff]
          %v1434 = vld [vmem:[#allocation3 + $0x40] sm:$0xff]
          %v1435 = vld [vmem:[#allocation3 + $0x48] sm:$0xff]
          %v1436 = vld [vmem:[#allocation3 + $0x50] sm:$0xff]
          %v1437 = vld [vmem:[#allocation3 + $0x58] sm:$0xff]
          %v1438 = vld [vmem:[#allocation3 + $0x60] sm:$0xff]
          %v1439 = vld [vmem:[#allocation3 + $0x68] sm:$0xff]
          %v1440 = vld [vmem:[#allocation3 + $0x70] sm:$0xff]
          %v1441 = vld [vmem:[#allocation3 + $0x78] sm:$0xff]
          %v1442 = vld [vmem:[#allocation3 + $0x80] sm:$0xff]
          %v1443 = vld [vmem:[#allocation3 + $0x88] sm:$0xff]
          %v1444 = vld [vmem:[#allocation3 + $0x90] sm:$0xff]
          %v1445 = vld [vmem:[#allocation3 + $0x98] sm:$0xff]
          %v1446 = vld [vmem:[#allocation3 + $0xa0] sm:$0xff]
          %v1447 = vld [vmem:[#allocation3 + $0xa8] sm:$0xff]
          %v1448 = vld [vmem:[#allocation3 + $0xb0] sm:$0xff]
          %v1449 = vld [vmem:[#allocation3 + $0xb8] sm:$0xff]
          %v1450 = vld [vmem:[#allocation3 + $0xc0] sm:$0xff]
          %v1451 = vld [vmem:[#allocation3 + $0xc8] sm:$0xff]
          %v1452 = vld [vmem:[#allocation3 + $0xd0] sm:$0xff]
          %v1453 = vld [vmem:[#allocation3 + $0xd8] sm:$0xff]
          %v1454 = vld [vmem:[#allocation3 + $0xe0] sm:$0xff]
          %v1455 = vld [vmem:[#allocation3 + $0xe8] sm:$0xff]
          %v1456 = vld [vmem:[#allocation3 + $0xf0] sm:$0xff]
          %v1457 = vld [vmem:[#allocation3 + $0xf8] sm:$0xff]
          %v1458 = vpack.c.bf16 %v1395, %v1394
          %v1459 = vpack.c.bf16 %v1397, %v1396
          %v1460 = vpack.c.bf16 %v1399, %v1398
          %v1461 = vpack.c.bf16 %v1401, %v1400
          %v1462 = vpack.c.bf16 %v1403, %v1402
          %v1463 = vpack.c.bf16 %v1405, %v1404
          %v1464 = vpack.c.bf16 %v1407, %v1406
          %v1465 = vpack.c.bf16 %v1409, %v1408
          %v1466 = vpack.c.bf16 %v1411, %v1410
          %v1467 = vpack.c.bf16 %v1413, %v1412
          %v1468 = vpack.c.bf16 %v1415, %v1414
          %v1469 = vpack.c.bf16 %v1417, %v1416
          %v1470 = vpack.c.bf16 %v1419, %v1418
          %v1471 = vpack.c.bf16 %v1421, %v1420
          %v1472 = vpack.c.bf16 %v1423, %v1422
          %v1473 = vpack.c.bf16 %v1425, %v1424
          %v1474 = vld [vmem:[%s507] sm:$0xf]
          %v1475 = vld [vmem:[%s507 + $0x4] sm:$0xf]
          %v1476 = vld [vmem:[%s507 + $0x8] sm:$0xf]
          %v1477 = vld [vmem:[%s507 + $0xc] sm:$0xf]
          %v1478 = vld [vmem:[%s507 + $0x10] sm:$0xf]
          %v1479 = vld [vmem:[%s507 + $0x14] sm:$0xf]
          %v1480 = vld [vmem:[%s507 + $0x18] sm:$0xf]
          %v1481 = vld [vmem:[%s507 + $0x1c] sm:$0xf]
          %v1482 = vld [vmem:[%s507 + $0x20] sm:$0xf]
          %v1483 = vld [vmem:[%s507 + $0x24] sm:$0xf]
          %v1484 = vld [vmem:[%s507 + $0x28] sm:$0xf]
          %v1485 = vld [vmem:[%s507 + $0x2c] sm:$0xf]
          %v1486 = vld [vmem:[%s507 + $0x30] sm:$0xf]
          %v1487 = vld [vmem:[%s507 + $0x34] sm:$0xf]
          %v1488 = vld [vmem:[%s507 + $0x38] sm:$0xf]
          %v1489 = vld [vmem:[%s507 + $0x3c] sm:$0xf]
          %v1506 = vunpack.c.l.b16 %v1474
          %v1507 = vunpack.c.l.b16 %v1475
          %v1508 = vunpack.c.l.b16 %v1476
          %v1509 = vunpack.c.l.b16 %v1477
          %v1510 = vunpack.c.l.b16 %v1478
          %v1511 = vunpack.c.l.b16 %v1479
          %v1512 = vunpack.c.l.b16 %v1480
          %v1513 = vunpack.c.l.b16 %v1481
          %v1514 = vunpack.c.l.b16 %v1482
          %v1515 = vunpack.c.l.b16 %v1483
          %v1516 = vunpack.c.l.b16 %v1484
          %v1517 = vunpack.c.l.b16 %v1485
          %v1518 = vunpack.c.l.b16 %v1486
          %v1519 = vunpack.c.l.b16 %v1487
          %v1520 = vunpack.c.l.b16 %v1488
          %v1521 = vunpack.c.l.b16 %v1489
          %v1522 = vpack.c.b16 %v1507, %v1506
          %v1523 = vpack.c.b16 %v1509, %v1508
          %v1524 = vpack.c.b16 %v1511, %v1510
          %v1525 = vpack.c.b16 %v1513, %v1512
          %v1526 = vpack.c.b16 %v1515, %v1514
          %v1527 = vpack.c.b16 %v1517, %v1516
          %v1528 = vpack.c.b16 %v1519, %v1518
          %v1529 = vpack.c.b16 %v1521, %v1520
          %1538 = vmatprep.subr.bf16.mxu0 0
          %1539 = vmatpush1.bf16.msra.mxu0 %v1522
          %1540 = vmatprep.subr.bf16.mxu0 0
          %1541 = vmatpush1.bf16.msra.mxu0 %v1523
          %1542 = vmatprep.subr.bf16.mxu0 0
          %1543 = vmatpush1.bf16.msra.mxu0 %v1524
          %1544 = vmatprep.subr.bf16.mxu0 0
          %1545 = vmatpush1.bf16.msra.mxu0 %v1525
          %1546 = vmatprep.subr.bf16.mxu0 0
          %1547 = vmatpush1.bf16.msra.mxu0 %v1526
          %1548 = vmatprep.subr.bf16.mxu0 0
          %1549 = vmatpush1.bf16.msra.mxu0 %v1527
          %1550 = vmatprep.subr.bf16.mxu0 0
          %1551 = vmatpush1.bf16.msra.mxu0 %v1528
          %1552 = vmatprep.subr.bf16.mxu0 0
          %1553 = vmatpush1.bf16.msra.mxu0 %v1529
          %1554 = vmatprep.subr.bf16.mxu0 0
          %1555 = vmatpush1.bf16.msra.mxu0 0
          %1556 = vmatprep.subr.bf16.mxu0 0
          %1557 = vmatpush1.bf16.msra.mxu0 0
          %1558 = vmatprep.subr.bf16.mxu0 0
          %1559 = vmatpush1.bf16.msra.mxu0 0
          %1560 = vmatprep.subr.bf16.mxu0 0
          %1561 = vmatpush1.bf16.msra.mxu0 0
          %1562 = vmatprep.subr.bf16.mxu0 0
          %1563 = vmatpush1.bf16.msra.mxu0 0
          %1564 = vmatprep.subr.bf16.mxu0 0
          %1565 = vmatpush1.bf16.msra.mxu0 0
          %1566 = vmatprep.subr.bf16.mxu0 0
          %1567 = vmatpush1.bf16.msra.mxu0 0
          %1568 = vmatprep.subr.bf16.mxu0 0
          %1569 = vmatpush1.bf16.msra.mxu0 0
          %1570 = vmatprep.mubr.bf16.mxu0 0
          %1571 = vmatmul.mubr.bf16.gmra.mrb[0].mxu0 %v1458
          %v1572 = vpop.f32.mrb[0].mxu0
          %v1573 = vadd.f32 0.0, %v1572
          %v1574 = vpop.f32.mrb[0].mxu0
          %v1575 = vpop.f32.mrb[0].mxu0
          %v1576 = vadd.f32 0.0, %v1575
          %v1577 = vpop.f32.mrb[0].mxu0
          %1578 = vmatprep.mubr.bf16.mxu0 0
          %1579 = vmatmul.mubr.bf16.gmra.mrb[0].mxu0 %v1459
          %v1580 = vpop.f32.mrb[0].mxu0
          %v1581 = vadd.f32 0.0, %v1580
          %v1582 = vpop.f32.mrb[0].mxu0
          %v1583 = vpop.f32.mrb[0].mxu0
          %v1584 = vadd.f32 0.0, %v1583
          %v1585 = vpop.f32.mrb[0].mxu0
          %1586 = vmatprep.mubr.bf16.mxu0 0
          %1587 = vmatmul.mubr.bf16.gmra.mrb[0].mxu0 %v1460
          %v1588 = vpop.f32.mrb[0].mxu0
          %v1589 = vadd.f32 0.0, %v1588
          %v1590 = vpop.f32.mrb[0].mxu0
          %v1591 = vpop.f32.mrb[0].mxu0
          %v1592 = vadd.f32 0.0, %v1591
          %v1593 = vpop.f32.mrb[0].mxu0
          %1594 = vmatprep.mubr.bf16.mxu0 0
          %1595 = vmatmul.mubr.bf16.gmra.mrb[0].mxu0 %v1461
          %v1596 = vpop.f32.mrb[0].mxu0
          %v1597 = vadd.f32 0.0, %v1596
          %v1598 = vpop.f32.mrb[0].mxu0
          %v1599 = vpop.f32.mrb[0].mxu0
          %v1600 = vadd.f32 0.0, %v1599
          %v1601 = vpop.f32.mrb[0].mxu0
          %1602 = vmatprep.mubr.bf16.mxu0 0
          %1603 = vmatmul.mubr.bf16.gmra.mrb[0].mxu0 %v1462
          %v1604 = vpop.f32.mrb[0].mxu0
          %v1605 = vadd.f32 0.0, %v1604
          %v1606 = vpop.f32.mrb[0].mxu0
          %v1607 = vpop.f32.mrb[0].mxu0
          %v1608 = vadd.f32 0.0, %v1607
          %v1609 = vpop.f32.mrb[0].mxu0
          %1610 = vmatprep.mubr.bf16.mxu0 0
          %1611 = vmatmul.mubr.bf16.gmra.mrb[0].mxu0 %v1463
          %v1612 = vpop.f32.mrb[0].mxu0
          %v1613 = vadd.f32 0.0, %v1612
          %v1614 = vpop.f32.mrb[0].mxu0
          %v1615 = vpop.f32.mrb[0].mxu0
          %v1616 = vadd.f32 0.0, %v1615
          %v1617 = vpop.f32.mrb[0].mxu0
          %1618 = vmatprep.mubr.bf16.mxu0 0
          %1619 = vmatmul.mubr.bf16.gmra.mrb[0].mxu0 %v1464
          %v1620 = vpop.f32.mrb[0].mxu0
          %v1621 = vadd.f32 0.0, %v1620
          %v1622 = vpop.f32.mrb[0].mxu0
          %v1623 = vpop.f32.mrb[0].mxu0
          %v1624 = vadd.f32 0.0, %v1623
          %v1625 = vpop.f32.mrb[0].mxu0
          %1626 = vmatprep.mubr.bf16.mxu0 0
          %1627 = vmatmul.mubr.bf16.gmra.mrb[0].mxu0 %v1465
          %v1628 = vpop.f32.mrb[0].mxu0
          %v1629 = vadd.f32 0.0, %v1628
          %v1630 = vpop.f32.mrb[0].mxu0
          %v1631 = vpop.f32.mrb[0].mxu0
          %v1632 = vadd.f32 0.0, %v1631
          %v1633 = vpop.f32.mrb[0].mxu0
          %1634 = vmatprep.mubr.bf16.mxu0 0
          %1635 = vmatmul.mubr.bf16.gmra.mrb[0].mxu0 %v1466
          %v1636 = vpop.f32.mrb[0].mxu0
          %v1637 = vadd.f32 0.0, %v1636
          %v1638 = vpop.f32.mrb[0].mxu0
          %v1639 = vpop.f32.mrb[0].mxu0
          %v1640 = vadd.f32 0.0, %v1639
          %v1641 = vpop.f32.mrb[0].mxu0
          %1642 = vmatprep.mubr.bf16.mxu0 0
          %1643 = vmatmul.mubr.bf16.gmra.mrb[0].mxu0 %v1467
          %v1644 = vpop.f32.mrb[0].mxu0
          %v1645 = vadd.f32 0.0, %v1644
          %v1646 = vpop.f32.mrb[0].mxu0
          %v1647 = vpop.f32.mrb[0].mxu0
          %v1648 = vadd.f32 0.0, %v1647
          %v1649 = vpop.f32.mrb[0].mxu0
          %1650 = vmatprep.mubr.bf16.mxu0 0
          %1651 = vmatmul.mubr.bf16.gmra.mrb[0].mxu0 %v1468
          %v1652 = vpop.f32.mrb[0].mxu0
          %v1653 = vadd.f32 0.0, %v1652
          %v1654 = vpop.f32.mrb[0].mxu0
          %v1655 = vpop.f32.mrb[0].mxu0
          %v1656 = vadd.f32 0.0, %v1655
          %v1657 = vpop.f32.mrb[0].mxu0
          %1658 = vmatprep.mubr.bf16.mxu0 0
          %1659 = vmatmul.mubr.bf16.gmra.mrb[0].mxu0 %v1469
          %v1660 = vpop.f32.mrb[0].mxu0
          %v1661 = vadd.f32 0.0, %v1660
          %v1662 = vpop.f32.mrb[0].mxu0
          %v1663 = vpop.f32.mrb[0].mxu0
          %v1664 = vadd.f32 0.0, %v1663
          %v1665 = vpop.f32.mrb[0].mxu0
          %1666 = vmatprep.mubr.bf16.mxu0 0
          %1667 = vmatmul.mubr.bf16.gmra.mrb[0].mxu0 %v1470
          %v1668 = vpop.f32.mrb[0].mxu0
          %v1669 = vadd.f32 0.0, %v1668
          %v1670 = vpop.f32.mrb[0].mxu0
          %v1671 = vpop.f32.mrb[0].mxu0
          %v1672 = vadd.f32 0.0, %v1671
          %v1673 = vpop.f32.mrb[0].mxu0
          %1674 = vmatprep.mubr.bf16.mxu0 0
          %1675 = vmatmul.mubr.bf16.gmra.mrb[0].mxu0 %v1471
          %v1676 = vpop.f32.mrb[0].mxu0
          %v1677 = vadd.f32 0.0, %v1676
          %v1678 = vpop.f32.mrb[0].mxu0
          %v1679 = vpop.f32.mrb[0].mxu0
          %v1680 = vadd.f32 0.0, %v1679
          %v1681 = vpop.f32.mrb[0].mxu0
          %1682 = vmatprep.mubr.bf16.mxu0 0
          %1683 = vmatmul.mubr.bf16.gmra.mrb[0].mxu0 %v1472
          %v1684 = vpop.f32.mrb[0].mxu0
          %v1685 = vadd.f32 0.0, %v1684
          %v1686 = vpop.f32.mrb[0].mxu0
          %v1687 = vpop.f32.mrb[0].mxu0
          %v1688 = vadd.f32 0.0, %v1687
          %v1689 = vpop.f32.mrb[0].mxu0
          %1690 = vmatprep.mubr.bf16.mxu0 0
          %1691 = vmatmul.mubr.bf16.gmra.mrb[0].mxu0 %v1473
          %v1692 = vpop.f32.mrb[0].mxu0
          %v1693 = vadd.f32 0.0, %v1692
          %v1694 = vpop.f32.mrb[0].mxu0
          %v1695 = vpop.f32.mrb[0].mxu0
          %v1696 = vadd.f32 0.0, %v1695
          %v1697 = vpop.f32.mrb[0].mxu0
          %1698 = vdwg.mxu0
          %v1699 = vadd.f32 %v1426, %v1573
          %v1700 = vadd.f32 %v1427, %v1576
          %v1701 = vadd.f32 %v1428, %v1581
          %v1702 = vadd.f32 %v1429, %v1584
          %v1703 = vadd.f32 %v1430, %v1589
          %v1704 = vadd.f32 %v1431, %v1592
          %v1705 = vadd.f32 %v1432, %v1597
          %v1706 = vadd.f32 %v1433, %v1600
          %v1707 = vadd.f32 %v1434, %v1605
          %v1708 = vadd.f32 %v1435, %v1608
          %v1709 = vadd.f32 %v1436, %v1613
          %v1710 = vadd.f32 %v1437, %v1616
          %v1711 = vadd.f32 %v1438, %v1621
          %v1712 = vadd.f32 %v1439, %v1624
          %v1713 = vadd.f32 %v1440, %v1629
          %v1714 = vadd.f32 %v1441, %v1632
          %v1715 = vadd.f32 %v1442, %v1637
          %v1716 = vadd.f32 %v1443, %v1640
          %v1717 = vadd.f32 %v1444, %v1645
          %v1718 = vadd.f32 %v1445, %v1648
          %v1719 = vadd.f32 %v1446, %v1653
          %v1720 = vadd.f32 %v1447, %v1656
          %v1721 = vadd.f32 %v1448, %v1661
          %v1722 = vadd.f32 %v1449, %v1664
          %v1723 = vadd.f32 %v1450, %v1669
          %v1724 = vadd.f32 %v1451, %v1672
          %v1725 = vadd.f32 %v1452, %v1677
          %v1726 = vadd.f32 %v1453, %v1680
          %v1727 = vadd.f32 %v1454, %v1685
          %v1728 = vadd.f32 %v1455, %v1688
          %v1729 = vadd.f32 %v1456, %v1693
          %v1730 = vadd.f32 %v1457, %v1696
          %1731 = vst [vmem:[#allocation3] sm:$0xff] %v1699
          %1732 = vst [vmem:[#allocation3 + $0x8] sm:$0xff] %v1700
          %1733 = vst [vmem:[#allocation3 + $0x10] sm:$0xff] %v1701
          %1734 = vst [vmem:[#allocation3 + $0x18] sm:$0xff] %v1702
          %1735 = vst [vmem:[#allocation3 + $0x20] sm:$0xff] %v1703
          %1736 = vst [vmem:[#allocation3 + $0x28] sm:$0xff] %v1704
          %1737 = vst [vmem:[#allocation3 + $0x30] sm:$0xff] %v1705
          %1738 = vst [vmem:[#allocation3 + $0x38] sm:$0xff] %v1706
          %1739 = vst [vmem:[#allocation3 + $0x40] sm:$0xff] %v1707
          %1740 = vst [vmem:[#allocation3 + $0x48] sm:$0xff] %v1708
          %1741 = vst [vmem:[#allocation3 + $0x50] sm:$0xff] %v1709
          %1742 = vst [vmem:[#allocation3 + $0x58] sm:$0xff] %v1710
          %1743 = vst [vmem:[#allocation3 + $0x60] sm:$0xff] %v1711
          %1744 = vst [vmem:[#allocation3 + $0x68] sm:$0xff] %v1712
          %1745 = vst [vmem:[#allocation3 + $0x70] sm:$0xff] %v1713
          %1746 = vst [vmem:[#allocation3 + $0x78] sm:$0xff] %v1714
          %1747 = vst [vmem:[#allocation3 + $0x80] sm:$0xff] %v1715
          %1748 = vst [vmem:[#allocation3 + $0x88] sm:$0xff] %v1716
          %1749 = vst [vmem:[#allocation3 + $0x90] sm:$0xff] %v1717
          %1750 = vst [vmem:[#allocation3 + $0x98] sm:$0xff] %v1718
          %1751 = vst [vmem:[#allocation3 + $0xa0] sm:$0xff] %v1719
          %1752 = vst [vmem:[#allocation3 + $0xa8] sm:$0xff] %v1720
          %1753 = vst [vmem:[#allocation3 + $0xb0] sm:$0xff] %v1721
          %1754 = vst [vmem:[#allocation3 + $0xb8] sm:$0xff] %v1722
          %1755 = vst [vmem:[#allocation3 + $0xc0] sm:$0xff] %v1723
          %1756 = vst [vmem:[#allocation3 + $0xc8] sm:$0xff] %v1724
          %1757 = vst [vmem:[#allocation3 + $0xd0] sm:$0xff] %v1725
          %1758 = vst [vmem:[#allocation3 + $0xd8] sm:$0xff] %v1726
          %1759 = vst [vmem:[#allocation3 + $0xe0] sm:$0xff] %v1727
          %1760 = vst [vmem:[#allocation3 + $0xe8] sm:$0xff] %v1728
          %1761 = vst [vmem:[#allocation3 + $0xf0] sm:$0xff] %v1729
          %1762 = vst [vmem:[#allocation3 + $0xf8] sm:$0xff] %v1730
        $region80: #{tpu_custom_call.1} parent=51 // pred_fallthru
          _
        %p1763 = scmp.eq.s32.totalorder %s29, 3
        %p1764 = pnand %p1763, %p518
        %p1765 = pneg %p1764
        // Predicated region
        $region81: #{tpu_custom_call.1} parent=51 // pred_check
          _
        $region82: #{tpu_custom_call.1} parent=51 // pred_check_branch
          %1767 = sbr.rel (%p1764) target = $region84
        $region83: #{tpu_custom_call.1} parent=51 // pred_region
          %v1768 = vld [vmem:[#allocation3] sm:$0xff]
          %v1769 = vld [vmem:[#allocation3 + $0x8] sm:$0xff]
          %v1770 = vld [vmem:[#allocation3 + $0x10] sm:$0xff]
          %v1771 = vld [vmem:[#allocation3 + $0x18] sm:$0xff]
          %v1772 = vld [vmem:[#allocation3 + $0x20] sm:$0xff]
          %v1773 = vld [vmem:[#allocation3 + $0x28] sm:$0xff]
          %v1774 = vld [vmem:[#allocation3 + $0x30] sm:$0xff]
          %v1775 = vld [vmem:[#allocation3 + $0x38] sm:$0xff]
          %v1776 = vld [vmem:[#allocation3 + $0x40] sm:$0xff]
          %v1777 = vld [vmem:[#allocation3 + $0x48] sm:$0xff]
          %v1778 = vld [vmem:[#allocation3 + $0x50] sm:$0xff]
          %v1779 = vld [vmem:[#allocation3 + $0x58] sm:$0xff]
          %v1780 = vld [vmem:[#allocation3 + $0x60] sm:$0xff]
          %v1781 = vld [vmem:[#allocation3 + $0x68] sm:$0xff]
          %v1782 = vld [vmem:[#allocation3 + $0x70] sm:$0xff]
          %v1783 = vld [vmem:[#allocation3 + $0x78] sm:$0xff]
          %v1784 = vld [vmem:[#allocation3 + $0x80] sm:$0xff]
          %v1785 = vld [vmem:[#allocation3 + $0x88] sm:$0xff]
          %v1786 = vld [vmem:[#allocation3 + $0x90] sm:$0xff]
          %v1787 = vld [vmem:[#allocation3 + $0x98] sm:$0xff]
          %v1788 = vld [vmem:[#allocation3 + $0xa0] sm:$0xff]
          %v1789 = vld [vmem:[#allocation3 + $0xa8] sm:$0xff]
          %v1790 = vld [vmem:[#allocation3 + $0xb0] sm:$0xff]
          %v1791 = vld [vmem:[#allocation3 + $0xb8] sm:$0xff]
          %v1792 = vld [vmem:[#allocation3 + $0xc0] sm:$0xff]
          %v1793 = vld [vmem:[#allocation3 + $0xc8] sm:$0xff]
          %v1794 = vld [vmem:[#allocation3 + $0xd0] sm:$0xff]
          %v1795 = vld [vmem:[#allocation3 + $0xd8] sm:$0xff]
          %v1796 = vld [vmem:[#allocation3 + $0xe0] sm:$0xff]
          %v1797 = vld [vmem:[#allocation3 + $0xe8] sm:$0xff]
          %v1798 = vld [vmem:[#allocation3 + $0xf0] sm:$0xff]
          %v1799 = vld [vmem:[#allocation3 + $0xf8] sm:$0xff]
          %v1800 = vld [vmem:[#allocation7] sm:$0xf]
          %v1801 = vld [vmem:[#allocation7 + $0x4] sm:$0xf]
          %v1802 = vld [vmem:[#allocation7 + $0x8] sm:$0xf]
          %v1803 = vld [vmem:[#allocation7 + $0xc] sm:$0xf]
          %v1804 = vld [vmem:[#allocation7 + $0x10] sm:$0xf]
          %v1805 = vld [vmem:[#allocation7 + $0x14] sm:$0xf]
          %v1806 = vld [vmem:[#allocation7 + $0x18] sm:$0xf]
          %v1807 = vld [vmem:[#allocation7 + $0x1c] sm:$0xf]
          %v1808 = vld [vmem:[#allocation7 + $0x20] sm:$0xf]
          %v1809 = vld [vmem:[#allocation7 + $0x24] sm:$0xf]
          %v1810 = vld [vmem:[#allocation7 + $0x28] sm:$0xf]
          %v1811 = vld [vmem:[#allocation7 + $0x2c] sm:$0xf]
          %v1812 = vld [vmem:[#allocation7 + $0x30] sm:$0xf]
          %v1813 = vld [vmem:[#allocation7 + $0x34] sm:$0xf]
          %v1814 = vld [vmem:[#allocation7 + $0x38] sm:$0xf]
          %v1815 = vld [vmem:[#allocation7 + $0x3c] sm:$0xf]
          %v1816 = vld [vmem:[#allocation7 + $0x40] sm:$0xf]
          %v1817 = vld [vmem:[#allocation7 + $0x44] sm:$0xf]
          %v1818 = vld [vmem:[#allocation7 + $0x48] sm:$0xf]
          %v1819 = vld [vmem:[#allocation7 + $0x4c] sm:$0xf]
          %v1820 = vld [vmem:[#allocation7 + $0x50] sm:$0xf]
          %v1821 = vld [vmem:[#allocation7 + $0x54] sm:$0xf]
          %v1822 = vld [vmem:[#allocation7 + $0x58] sm:$0xf]
          %v1823 = vld [vmem:[#allocation7 + $0x5c] sm:$0xf]
          %v1824 = vld [vmem:[#allocation7 + $0x60] sm:$0xf]
          %v1825 = vld [vmem:[#allocation7 + $0x64] sm:$0xf]
          %v1826 = vld [vmem:[#allocation7 + $0x68] sm:$0xf]
          %v1827 = vld [vmem:[#allocation7 + $0x6c] sm:$0xf]
          %v1828 = vld [vmem:[#allocation7 + $0x70] sm:$0xf]
          %v1829 = vld [vmem:[#allocation7 + $0x74] sm:$0xf]
          %v1830 = vld [vmem:[#allocation7 + $0x78] sm:$0xf]
          %v1831 = vld [vmem:[#allocation7 + $0x7c] sm:$0xf]
          %v1832 = vld [vmem:[%s513] sm:$0xff]
          %v1833 = vld [vmem:[%s513 + $0x8] sm:$0xff]
          %v1834 = vld [vmem:[%s513 + $0x10] sm:$0xff]
          %v1835 = vld [vmem:[%s513 + $0x18] sm:$0xff]
          %v1836 = vld [vmem:[%s513 + $0x20] sm:$0xff]
          %v1837 = vld [vmem:[%s513 + $0x28] sm:$0xff]
          %v1838 = vld [vmem:[%s513 + $0x30] sm:$0xff]
          %v1839 = vld [vmem:[%s513 + $0x38] sm:$0xff]
          %v1840 = vld [vmem:[%s513 + $0x40] sm:$0xff]
          %v1841 = vld [vmem:[%s513 + $0x48] sm:$0xff]
          %v1842 = vld [vmem:[%s513 + $0x50] sm:$0xff]
          %v1843 = vld [vmem:[%s513 + $0x58] sm:$0xff]
          %v1844 = vld [vmem:[%s513 + $0x60] sm:$0xff]
          %v1845 = vld [vmem:[%s513 + $0x68] sm:$0xff]
          %v1846 = vld [vmem:[%s513 + $0x70] sm:$0xff]
          %v1847 = vld [vmem:[%s513 + $0x78] sm:$0xff]
          %v1848 = vld [vmem:[%s513 + $0x80] sm:$0xff]
          %v1849 = vld [vmem:[%s513 + $0x88] sm:$0xff]
          %v1850 = vld [vmem:[%s513 + $0x90] sm:$0xff]
          %v1851 = vld [vmem:[%s513 + $0x98] sm:$0xff]
          %v1852 = vld [vmem:[%s513 + $0xa0] sm:$0xff]
          %v1853 = vld [vmem:[%s513 + $0xa8] sm:$0xff]
          %v1854 = vld [vmem:[%s513 + $0xb0] sm:$0xff]
          %v1855 = vld [vmem:[%s513 + $0xb8] sm:$0xff]
          %v1856 = vld [vmem:[%s513 + $0xc0] sm:$0xff]
          %v1857 = vld [vmem:[%s513 + $0xc8] sm:$0xff]
          %v1858 = vld [vmem:[%s513 + $0xd0] sm:$0xff]
          %v1859 = vld [vmem:[%s513 + $0xd8] sm:$0xff]
          %v1860 = vld [vmem:[%s513 + $0xe0] sm:$0xff]
          %v1861 = vld [vmem:[%s513 + $0xe8] sm:$0xff]
          %v1862 = vld [vmem:[%s513 + $0xf0] sm:$0xff]
          %v1863 = vld [vmem:[%s513 + $0xf8] sm:$0xff]
          %vm1864 = vcmp.eq.s32.totalorder %v1832, 0
          %vm1865 = vcmp.eq.s32.totalorder %v1833, 0
          %vm1866 = vcmp.eq.s32.totalorder %v1834, 0
          %vm1867 = vcmp.eq.s32.totalorder %v1835, 0
          %vm1868 = vcmp.eq.s32.totalorder %v1836, 0
          %vm1869 = vcmp.eq.s32.totalorder %v1837, 0
          %vm1870 = vcmp.eq.s32.totalorder %v1838, 0
          %vm1871 = vcmp.eq.s32.totalorder %v1839, 0
          %vm1872 = vcmp.eq.s32.totalorder %v1840, 0
          %vm1873 = vcmp.eq.s32.totalorder %v1841, 0
          %vm1874 = vcmp.eq.s32.totalorder %v1842, 0
          %vm1875 = vcmp.eq.s32.totalorder %v1843, 0
          %vm1876 = vcmp.eq.s32.totalorder %v1844, 0
          %vm1877 = vcmp.eq.s32.totalorder %v1845, 0
          %vm1878 = vcmp.eq.s32.totalorder %v1846, 0
          %vm1879 = vcmp.eq.s32.totalorder %v1847, 0
          %vm1880 = vcmp.eq.s32.totalorder %v1848, 0
          %vm1881 = vcmp.eq.s32.totalorder %v1849, 0
          %vm1882 = vcmp.eq.s32.totalorder %v1850, 0
          %vm1883 = vcmp.eq.s32.totalorder %v1851, 0
          %vm1884 = vcmp.eq.s32.totalorder %v1852, 0
          %vm1885 = vcmp.eq.s32.totalorder %v1853, 0
          %vm1886 = vcmp.eq.s32.totalorder %v1854, 0
          %vm1887 = vcmp.eq.s32.totalorder %v1855, 0
          %vm1888 = vcmp.eq.s32.totalorder %v1856, 0
          %vm1889 = vcmp.eq.s32.totalorder %v1857, 0
          %vm1890 = vcmp.eq.s32.totalorder %v1858, 0
          %vm1891 = vcmp.eq.s32.totalorder %v1859, 0
          %vm1892 = vcmp.eq.s32.totalorder %v1860, 0
          %vm1893 = vcmp.eq.s32.totalorder %v1861, 0
          %vm1894 = vcmp.eq.s32.totalorder %v1862, 0
          %vm1895 = vcmp.eq.s32.totalorder %v1863, 0
          %v1896 = vsel %vm1864, 1, 0
          %v1897 = vsel %vm1865, 1, 0
          %v1898 = vsel %vm1866, 1, 0
          %v1899 = vsel %vm1867, 1, 0
          %v1900 = vsel %vm1868, 1, 0
          %v1901 = vsel %vm1869, 1, 0
          %v1902 = vsel %vm1870, 1, 0
          %v1903 = vsel %vm1871, 1, 0
          %v1904 = vsel %vm1872, 1, 0
          %v1905 = vsel %vm1873, 1, 0
          %v1906 = vsel %vm1874, 1, 0
          %v1907 = vsel %vm1875, 1, 0
          %v1908 = vsel %vm1876, 1, 0
          %v1909 = vsel %vm1877, 1, 0
          %v1910 = vsel %vm1878, 1, 0
          %v1911 = vsel %vm1879, 1, 0
          %v1912 = vsel %vm1880, 1, 0
          %v1913 = vsel %vm1881, 1, 0
          %v1914 = vsel %vm1882, 1, 0
          %v1915 = vsel %vm1883, 1, 0
          %v1916 = vsel %vm1884, 1, 0
          %v1917 = vsel %vm1885, 1, 0
          %v1918 = vsel %vm1886, 1, 0
          %v1919 = vsel %vm1887, 1, 0
          %v1920 = vsel %vm1888, 1, 0
          %v1921 = vsel %vm1889, 1, 0
          %v1922 = vsel %vm1890, 1, 0
          %v1923 = vsel %vm1891, 1, 0
          %v1924 = vsel %vm1892, 1, 0
          %v1925 = vsel %vm1893, 1, 0
          %v1926 = vsel %vm1894, 1, 0
          %v1927 = vsel %vm1895, 1, 0
          %1928 = vset.pattern.permute.xlu0 0
          %1929 = vperm.xlu0 %1928, %v1896
          %v1930 = vpop.permute.xlu0 %1929
          %1931 = vset.pattern.permute.xlu0 0
          %1932 = vperm.xlu0 %1931, %v1897
          %v1933 = vpop.permute.xlu0 %1932
          %1934 = vset.pattern.permute.xlu0 0
          %1935 = vperm.xlu0 %1934, %v1898
          %v1936 = vpop.permute.xlu0 %1935
          %1937 = vset.pattern.permute.xlu0 0
          %1938 = vperm.xlu0 %1937, %v1899
          %v1939 = vpop.permute.xlu0 %1938
          %1940 = vset.pattern.permute.xlu0 0
          %1941 = vperm.xlu0 %1940, %v1900
          %v1942 = vpop.permute.xlu0 %1941
          %1943 = vset.pattern.permute.xlu0 0
          %1944 = vperm.xlu0 %1943, %v1901
          %v1945 = vpop.permute.xlu0 %1944
          %1946 = vset.pattern.permute.xlu0 0
          %1947 = vperm.xlu0 %1946, %v1902
          %v1948 = vpop.permute.xlu0 %1947
          %1949 = vset.pattern.permute.xlu0 0
          %1950 = vperm.xlu0 %1949, %v1903
          %v1951 = vpop.permute.xlu0 %1950
          %1952 = vset.pattern.permute.xlu0 0
          %1953 = vperm.xlu0 %1952, %v1904
          %v1954 = vpop.permute.xlu0 %1953
          %1955 = vset.pattern.permute.xlu0 0
          %1956 = vperm.xlu0 %1955, %v1905
          %v1957 = vpop.permute.xlu0 %1956
          %1958 = vset.pattern.permute.xlu0 0
          %1959 = vperm.xlu0 %1958, %v1906
          %v1960 = vpop.permute.xlu0 %1959
          %1961 = vset.pattern.permute.xlu0 0
          %1962 = vperm.xlu0 %1961, %v1907
          %v1963 = vpop.permute.xlu0 %1962
          %1964 = vset.pattern.permute.xlu0 0
          %1965 = vperm.xlu0 %1964, %v1908
          %v1966 = vpop.permute.xlu0 %1965
          %1967 = vset.pattern.permute.xlu0 0
          %1968 = vperm.xlu0 %1967, %v1909
          %v1969 = vpop.permute.xlu0 %1968
          %1970 = vset.pattern.permute.xlu0 0
          %1971 = vperm.xlu0 %1970, %v1910
          %v1972 = vpop.permute.xlu0 %1971
          %1973 = vset.pattern.permute.xlu0 0
          %1974 = vperm.xlu0 %1973, %v1911
          %v1975 = vpop.permute.xlu0 %1974
          %1976 = vset.pattern.permute.xlu0 0
          %1977 = vperm.xlu0 %1976, %v1912
          %v1978 = vpop.permute.xlu0 %1977
          %1979 = vset.pattern.permute.xlu0 0
          %1980 = vperm.xlu0 %1979, %v1913
          %v1981 = vpop.permute.xlu0 %1980
          %1982 = vset.pattern.permute.xlu0 0
          %1983 = vperm.xlu0 %1982, %v1914
          %v1984 = vpop.permute.xlu0 %1983
          %1985 = vset.pattern.permute.xlu0 0
          %1986 = vperm.xlu0 %1985, %v1915
          %v1987 = vpop.permute.xlu0 %1986
          %1988 = vset.pattern.permute.xlu0 0
          %1989 = vperm.xlu0 %1988, %v1916
          %v1990 = vpop.permute.xlu0 %1989
          %1991 = vset.pattern.permute.xlu0 0
          %1992 = vperm.xlu0 %1991, %v1917
          %v1993 = vpop.permute.xlu0 %1992
          %1994 = vset.pattern.permute.xlu0 0
          %1995 = vperm.xlu0 %1994, %v1918
          %v1996 = vpop.permute.xlu0 %1995
          %1997 = vset.pattern.permute.xlu0 0
          %1998 = vperm.xlu0 %1997, %v1919
          %v1999 = vpop.permute.xlu0 %1998
          %2000 = vset.pattern.permute.xlu0 0
          %2001 = vperm.xlu0 %2000, %v1920
          %v2002 = vpop.permute.xlu0 %2001
          %2003 = vset.pattern.permute.xlu0 0
          %2004 = vperm.xlu0 %2003, %v1921
          %v2005 = vpop.permute.xlu0 %2004
          %2006 = vset.pattern.permute.xlu0 0
          %2007 = vperm.xlu0 %2006, %v1922
          %v2008 = vpop.permute.xlu0 %2007
          %2009 = vset.pattern.permute.xlu0 0
          %2010 = vperm.xlu0 %2009, %v1923
          %v2011 = vpop.permute.xlu0 %2010
          %2012 = vset.pattern.permute.xlu0 0
          %2013 = vperm.xlu0 %2012, %v1924
          %v2014 = vpop.permute.xlu0 %2013
          %2015 = vset.pattern.permute.xlu0 0
          %2016 = vperm.xlu0 %2015, %v1925
          %v2017 = vpop.permute.xlu0 %2016
          %2018 = vset.pattern.permute.xlu0 0
          %2019 = vperm.xlu0 %2018, %v1926
          %v2020 = vpop.permute.xlu0 %2019
          %2021 = vset.pattern.permute.xlu0 0
          %2022 = vperm.xlu0 %2021, %v1927
          %v2023 = vpop.permute.xlu0 %2022
          %vm2024 = vcmp.eq.s32.totalorder %v1930, 1
          %vm2025 = vcmp.eq.s32.totalorder %v1933, 1
          %vm2026 = vcmp.eq.s32.totalorder %v1936, 1
          %vm2027 = vcmp.eq.s32.totalorder %v1939, 1
          %vm2028 = vcmp.eq.s32.totalorder %v1942, 1
          %vm2029 = vcmp.eq.s32.totalorder %v1945, 1
          %vm2030 = vcmp.eq.s32.totalorder %v1948, 1
          %vm2031 = vcmp.eq.s32.totalorder %v1951, 1
          %vm2032 = vcmp.eq.s32.totalorder %v1954, 1
          %vm2033 = vcmp.eq.s32.totalorder %v1957, 1
          %vm2034 = vcmp.eq.s32.totalorder %v1960, 1
          %vm2035 = vcmp.eq.s32.totalorder %v1963, 1
          %vm2036 = vcmp.eq.s32.totalorder %v1966, 1
          %vm2037 = vcmp.eq.s32.totalorder %v1969, 1
          %vm2038 = vcmp.eq.s32.totalorder %v1972, 1
          %vm2039 = vcmp.eq.s32.totalorder %v1975, 1
          %vm2040 = vcmp.eq.s32.totalorder %v1978, 1
          %vm2041 = vcmp.eq.s32.totalorder %v1981, 1
          %vm2042 = vcmp.eq.s32.totalorder %v1984, 1
          %vm2043 = vcmp.eq.s32.totalorder %v1987, 1
          %vm2044 = vcmp.eq.s32.totalorder %v1990, 1
          %vm2045 = vcmp.eq.s32.totalorder %v1993, 1
          %vm2046 = vcmp.eq.s32.totalorder %v1996, 1
          %vm2047 = vcmp.eq.s32.totalorder %v1999, 1
          %vm2048 = vcmp.eq.s32.totalorder %v2002, 1
          %vm2049 = vcmp.eq.s32.totalorder %v2005, 1
          %vm2050 = vcmp.eq.s32.totalorder %v2008, 1
          %vm2051 = vcmp.eq.s32.totalorder %v2011, 1
          %vm2052 = vcmp.eq.s32.totalorder %v2014, 1
          %vm2053 = vcmp.eq.s32.totalorder %v2017, 1
          %vm2054 = vcmp.eq.s32.totalorder %v2020, 1
          %vm2055 = vcmp.eq.s32.totalorder %v2023, 1
          %vm2056 = vmpackc.low %vm2024, %vm2024
          %vm2057 = vmpackc.low %vm2025, %vm2025
          %vm2058 = vmpackc.low %vm2026, %vm2026
          %vm2059 = vmpackc.low %vm2027, %vm2027
          %vm2060 = vmpackc.low %vm2028, %vm2028
          %vm2061 = vmpackc.low %vm2029, %vm2029
          %vm2062 = vmpackc.low %vm2030, %vm2030
          %vm2063 = vmpackc.low %vm2031, %vm2031
          %vm2064 = vmpackc.low %vm2032, %vm2032
          %vm2065 = vmpackc.low %vm2033, %vm2033
          %vm2066 = vmpackc.low %vm2034, %vm2034
          %vm2067 = vmpackc.low %vm2035, %vm2035
          %vm2068 = vmpackc.low %vm2036, %vm2036
          %vm2069 = vmpackc.low %vm2037, %vm2037
          %vm2070 = vmpackc.low %vm2038, %vm2038
          %vm2071 = vmpackc.low %vm2039, %vm2039
          %vm2072 = vmpackc.low %vm2040, %vm2040
          %vm2073 = vmpackc.low %vm2041, %vm2041
          %vm2074 = vmpackc.low %vm2042, %vm2042
          %vm2075 = vmpackc.low %vm2043, %vm2043
          %vm2076 = vmpackc.low %vm2044, %vm2044
          %vm2077 = vmpackc.low %vm2045, %vm2045
          %vm2078 = vmpackc.low %vm2046, %vm2046
          %vm2079 = vmpackc.low %vm2047, %vm2047
          %vm2080 = vmpackc.low %vm2048, %vm2048
          %vm2081 = vmpackc.low %vm2049, %vm2049
          %vm2082 = vmpackc.low %vm2050, %vm2050
          %vm2083 = vmpackc.low %vm2051, %vm2051
          %vm2084 = vmpackc.low %vm2052, %vm2052
          %vm2085 = vmpackc.low %vm2053, %vm2053
          %vm2086 = vmpackc.low %vm2054, %vm2054
          %vm2087 = vmpackc.low %vm2055, %vm2055
          %v2088 = vsel %vm2056, %v1800, 0
          %v2089 = vsel %vm2057, %v1801, 0
          %v2090 = vsel %vm2058, %v1802, 0
          %v2091 = vsel %vm2059, %v1803, 0
          %v2092 = vsel %vm2060, %v1804, 0
          %v2093 = vsel %vm2061, %v1805, 0
          %v2094 = vsel %vm2062, %v1806, 0
          %v2095 = vsel %vm2063, %v1807, 0
          %v2096 = vsel %vm2064, %v1808, 0
          %v2097 = vsel %vm2065, %v1809, 0
          %v2098 = vsel %vm2066, %v1810, 0
          %v2099 = vsel %vm2067, %v1811, 0
          %v2100 = vsel %vm2068, %v1812, 0
          %v2101 = vsel %vm2069, %v1813, 0
          %v2102 = vsel %vm2070, %v1814, 0
          %v2103 = vsel %vm2071, %v1815, 0
          %v2104 = vsel %vm2072, %v1816, 0
          %v2105 = vsel %vm2073, %v1817, 0
          %v2106 = vsel %vm2074, %v1818, 0
          %v2107 = vsel %vm2075, %v1819, 0
          %v2108 = vsel %vm2076, %v1820, 0
          %v2109 = vsel %vm2077, %v1821, 0
          %v2110 = vsel %vm2078, %v1822, 0
          %v2111 = vsel %vm2079, %v1823, 0
          %v2112 = vsel %vm2080, %v1824, 0
          %v2113 = vsel %vm2081, %v1825, 0
          %v2114 = vsel %vm2082, %v1826, 0
          %v2115 = vsel %vm2083, %v1827, 0
          %v2116 = vsel %vm2084, %v1828, 0
          %v2117 = vsel %vm2085, %v1829, 0
          %v2118 = vsel %vm2086, %v1830, 0
          %v2119 = vsel %vm2087, %v1831, 0
          %v2120 = vld [vmem:[#allocation9] sm:$0xf]
          %v2121 = vld [vmem:[#allocation9 + $0x4] sm:$0xf]
          %v2122 = vld [vmem:[#allocation9 + $0x8] sm:$0xf]
          %v2123 = vld [vmem:[#allocation9 + $0xc] sm:$0xf]
          %v2124 = vld [vmem:[#allocation9 + $0x10] sm:$0xf]
          %v2125 = vld [vmem:[#allocation9 + $0x14] sm:$0xf]
          %v2126 = vld [vmem:[#allocation9 + $0x18] sm:$0xf]
          %v2127 = vld [vmem:[#allocation9 + $0x1c] sm:$0xf]
          %v2128 = vld [vmem:[#allocation9 + $0x20] sm:$0xf]
          %v2129 = vld [vmem:[#allocation9 + $0x24] sm:$0xf]
          %v2130 = vld [vmem:[#allocation9 + $0x28] sm:$0xf]
          %v2131 = vld [vmem:[#allocation9 + $0x2c] sm:$0xf]
          %v2132 = vld [vmem:[#allocation9 + $0x30] sm:$0xf]
          %v2133 = vld [vmem:[#allocation9 + $0x34] sm:$0xf]
          %v2134 = vld [vmem:[#allocation9 + $0x38] sm:$0xf]
          %v2135 = vld [vmem:[#allocation9 + $0x3c] sm:$0xf]
          %v2168 = vunpack.c.l.b16 %v2088
          %v2169 = vunpack.c.l.b16 %v2089
          %v2170 = vunpack.c.l.b16 %v2090
          %v2171 = vunpack.c.l.b16 %v2091
          %v2172 = vunpack.c.l.b16 %v2092
          %v2173 = vunpack.c.l.b16 %v2093
          %v2174 = vunpack.c.l.b16 %v2094
          %v2175 = vunpack.c.l.b16 %v2095
          %v2176 = vunpack.c.l.b16 %v2096
          %v2177 = vunpack.c.l.b16 %v2097
          %v2178 = vunpack.c.l.b16 %v2098
          %v2179 = vunpack.c.l.b16 %v2099
          %v2180 = vunpack.c.l.b16 %v2100
          %v2181 = vunpack.c.l.b16 %v2101
          %v2182 = vunpack.c.l.b16 %v2102
          %v2183 = vunpack.c.l.b16 %v2103
          %v2184 = vunpack.c.l.b16 %v2104
          %v2185 = vunpack.c.l.b16 %v2105
          %v2186 = vunpack.c.l.b16 %v2106
          %v2187 = vunpack.c.l.b16 %v2107
          %v2188 = vunpack.c.l.b16 %v2108
          %v2189 = vunpack.c.l.b16 %v2109
          %v2190 = vunpack.c.l.b16 %v2110
          %v2191 = vunpack.c.l.b16 %v2111
          %v2192 = vunpack.c.l.b16 %v2112
          %v2193 = vunpack.c.l.b16 %v2113
          %v2194 = vunpack.c.l.b16 %v2114
          %v2195 = vunpack.c.l.b16 %v2115
          %v2196 = vunpack.c.l.b16 %v2116
          %v2197 = vunpack.c.l.b16 %v2117
          %v2198 = vunpack.c.l.b16 %v2118
          %v2199 = vunpack.c.l.b16 %v2119
          %v2200 = vpack.c.b16 %v2169, %v2168
          %v2201 = vpack.c.b16 %v2171, %v2170
          %v2202 = vpack.c.b16 %v2173, %v2172
          %v2203 = vpack.c.b16 %v2175, %v2174
          %v2204 = vpack.c.b16 %v2177, %v2176
          %v2205 = vpack.c.b16 %v2179, %v2178
          %v2206 = vpack.c.b16 %v2181, %v2180
          %v2207 = vpack.c.b16 %v2183, %v2182
          %v2208 = vpack.c.b16 %v2185, %v2184
          %v2209 = vpack.c.b16 %v2187, %v2186
          %v2210 = vpack.c.b16 %v2189, %v2188
          %v2211 = vpack.c.b16 %v2191, %v2190
          %v2212 = vpack.c.b16 %v2193, %v2192
          %v2213 = vpack.c.b16 %v2195, %v2194
          %v2214 = vpack.c.b16 %v2197, %v2196
          %v2215 = vpack.c.b16 %v2199, %v2198
          %v2248 = vunpack.c.l.b16 %v2120
          %v2249 = vunpack.c.l.b16 %v2121
          %v2250 = vunpack.c.l.b16 %v2122
          %v2251 = vunpack.c.l.b16 %v2123
          %v2252 = vunpack.c.l.b16 %v2124
          %v2253 = vunpack.c.l.b16 %v2125
          %v2254 = vunpack.c.l.b16 %v2126
          %v2255 = vunpack.c.l.b16 %v2127
          %v2256 = vunpack.c.l.b16 %v2128
          %v2257 = vunpack.c.l.b16 %v2129
          %v2258 = vunpack.c.l.b16 %v2130
          %v2259 = vunpack.c.l.b16 %v2131
          %v2260 = vunpack.c.l.b16 %v2132
          %v2261 = vunpack.c.l.b16 %v2133
          %v2262 = vunpack.c.l.b16 %v2134
          %v2263 = vunpack.c.l.b16 %v2135
          %v2264 = vpack.c.b16 %v2249, %v2248
          %v2265 = vpack.c.b16 %v2251, %v2250
          %v2266 = vpack.c.b16 %v2253, %v2252
          %v2267 = vpack.c.b16 %v2255, %v2254
          %v2268 = vpack.c.b16 %v2257, %v2256
          %v2269 = vpack.c.b16 %v2259, %v2258
          %v2270 = vpack.c.b16 %v2261, %v2260
          %v2271 = vpack.c.b16 %v2263, %v2262
          %2280 = vmatprep.subr.bf16.mxu0 0
          %2281 = vmatpush1.bf16.msra.mxu0 %v2264
          %2282 = vmatprep.subr.bf16.mxu0 0
          %2283 = vmatpush1.bf16.msra.mxu0 %v2265
          %2284 = vmatprep.subr.bf16.mxu0 0
          %2285 = vmatpush1.bf16.msra.mxu0 %v2266
          %2286 = vmatprep.subr.bf16.mxu0 0
          %2287 = vmatpush1.bf16.msra.mxu0 %v2267
          %2288 = vmatprep.subr.bf16.mxu0 0
          %2289 = vmatpush1.bf16.msra.mxu0 %v2268
          %2290 = vmatprep.subr.bf16.mxu0 0
          %2291 = vmatpush1.bf16.msra.mxu0 %v2269
          %2292 = vmatprep.subr.bf16.mxu0 0
          %2293 = vmatpush1.bf16.msra.mxu0 %v2270
          %2294 = vmatprep.subr.bf16.mxu0 0
          %2295 = vmatpush1.bf16.msra.mxu0 %v2271
          %2296 = vmatprep.subr.bf16.mxu0 0
          %2297 = vmatpush1.bf16.msra.mxu0 0
          %2298 = vmatprep.subr.bf16.mxu0 0
          %2299 = vmatpush1.bf16.msra.mxu0 0
          %2300 = vmatprep.subr.bf16.mxu0 0
          %2301 = vmatpush1.bf16.msra.mxu0 0
          %2302 = vmatprep.subr.bf16.mxu0 0
          %2303 = vmatpush1.bf16.msra.mxu0 0
          %2304 = vmatprep.subr.bf16.mxu0 0
          %2305 = vmatpush1.bf16.msra.mxu0 0
          %2306 = vmatprep.subr.bf16.mxu0 0
          %2307 = vmatpush1.bf16.msra.mxu0 0
          %2308 = vmatprep.subr.bf16.mxu0 0
          %2309 = vmatpush1.bf16.msra.mxu0 0
          %2310 = vmatprep.subr.bf16.mxu0 0
          %2311 = vmatpush1.bf16.msra.mxu0 0
          %2312 = vmatprep.mubr.bf16.mxu0 0
          %2313 = vmatmul.mubr.bf16.gmra.mrb[0].mxu0 %v2200
          %v2314 = vpop.f32.mrb[0].mxu0
          %v2315 = vadd.f32 0.0, %v2314
          %v2316 = vpop.f32.mrb[0].mxu0
          %v2317 = vpop.f32.mrb[0].mxu0
          %v2318 = vadd.f32 0.0, %v2317
          %v2319 = vpop.f32.mrb[0].mxu0
          %2320 = vmatprep.mubr.bf16.mxu0 0
          %2321 = vmatmul.mubr.bf16.gmra.mrb[0].mxu0 %v2201
          %v2322 = vpop.f32.mrb[0].mxu0
          %v2323 = vadd.f32 0.0, %v2322
          %v2324 = vpop.f32.mrb[0].mxu0
          %v2325 = vpop.f32.mrb[0].mxu0
          %v2326 = vadd.f32 0.0, %v2325
          %v2327 = vpop.f32.mrb[0].mxu0
          %2328 = vmatprep.mubr.bf16.mxu0 0
          %2329 = vmatmul.mubr.bf16.gmra.mrb[0].mxu0 %v2202
          %v2330 = vpop.f32.mrb[0].mxu0
          %v2331 = vadd.f32 0.0, %v2330
          %v2332 = vpop.f32.mrb[0].mxu0
          %v2333 = vpop.f32.mrb[0].mxu0
          %v2334 = vadd.f32 0.0, %v2333
          %v2335 = vpop.f32.mrb[0].mxu0
          %2336 = vmatprep.mubr.bf16.mxu0 0
          %2337 = vmatmul.mubr.bf16.gmra.mrb[0].mxu0 %v2203
          %v2338 = vpop.f32.mrb[0].mxu0
          %v2339 = vadd.f32 0.0, %v2338
          %v2340 = vpop.f32.mrb[0].mxu0
          %v2341 = vpop.f32.mrb[0].mxu0
          %v2342 = vadd.f32 0.0, %v2341
          %v2343 = vpop.f32.mrb[0].mxu0
          %2344 = vmatprep.mubr.bf16.mxu0 0
          %2345 = vmatmul.mubr.bf16.gmra.mrb[0].mxu0 %v2204
          %v2346 = vpop.f32.mrb[0].mxu0
          %v2347 = vadd.f32 0.0, %v2346
          %v2348 = vpop.f32.mrb[0].mxu0
          %v2349 = vpop.f32.mrb[0].mxu0
          %v2350 = vadd.f32 0.0, %v2349
          %v2351 = vpop.f32.mrb[0].mxu0
          %2352 = vmatprep.mubr.bf16.mxu0 0
          %2353 = vmatmul.mubr.bf16.gmra.mrb[0].mxu0 %v2205
          %v2354 = vpop.f32.mrb[0].mxu0
          %v2355 = vadd.f32 0.0, %v2354
          %v2356 = vpop.f32.mrb[0].mxu0
          %v2357 = vpop.f32.mrb[0].mxu0
          %v2358 = vadd.f32 0.0, %v2357
          %v2359 = vpop.f32.mrb[0].mxu0
          %2360 = vmatprep.mubr.bf16.mxu0 0
          %2361 = vmatmul.mubr.bf16.gmra.mrb[0].mxu0 %v2206
          %v2362 = vpop.f32.mrb[0].mxu0
          %v2363 = vadd.f32 0.0, %v2362
          %v2364 = vpop.f32.mrb[0].mxu0
          %v2365 = vpop.f32.mrb[0].mxu0
          %v2366 = vadd.f32 0.0, %v2365
          %v2367 = vpop.f32.mrb[0].mxu0
          %2368 = vmatprep.mubr.bf16.mxu0 0
          %2369 = vmatmul.mubr.bf16.gmra.mrb[0].mxu0 %v2207
          %v2370 = vpop.f32.mrb[0].mxu0
          %v2371 = vadd.f32 0.0, %v2370
          %v2372 = vpop.f32.mrb[0].mxu0
          %v2373 = vpop.f32.mrb[0].mxu0
          %v2374 = vadd.f32 0.0, %v2373
          %v2375 = vpop.f32.mrb[0].mxu0
          %2376 = vmatprep.mubr.bf16.mxu0 0
          %2377 = vmatmul.mubr.bf16.gmra.mrb[0].mxu0 %v2208
          %v2378 = vpop.f32.mrb[0].mxu0
          %v2379 = vadd.f32 0.0, %v2378
          %v2380 = vpop.f32.mrb[0].mxu0
          %v2381 = vpop.f32.mrb[0].mxu0
          %v2382 = vadd.f32 0.0, %v2381
          %v2383 = vpop.f32.mrb[0].mxu0
          %2384 = vmatprep.mubr.bf16.mxu0 0
          %2385 = vmatmul.mubr.bf16.gmra.mrb[0].mxu0 %v2209
          %v2386 = vpop.f32.mrb[0].mxu0
          %v2387 = vadd.f32 0.0, %v2386
          %v2388 = vpop.f32.mrb[0].mxu0
          %v2389 = vpop.f32.mrb[0].mxu0
          %v2390 = vadd.f32 0.0, %v2389
          %v2391 = vpop.f32.mrb[0].mxu0
          %2392 = vmatprep.mubr.bf16.mxu0 0
          %2393 = vmatmul.mubr.bf16.gmra.mrb[0].mxu0 %v2210
          %v2394 = vpop.f32.mrb[0].mxu0
          %v2395 = vadd.f32 0.0, %v2394
          %v2396 = vpop.f32.mrb[0].mxu0
          %v2397 = vpop.f32.mrb[0].mxu0
          %v2398 = vadd.f32 0.0, %v2397
          %v2399 = vpop.f32.mrb[0].mxu0
          %2400 = vmatprep.mubr.bf16.mxu0 0
          %2401 = vmatmul.mubr.bf16.gmra.mrb[0].mxu0 %v2211
          %v2402 = vpop.f32.mrb[0].mxu0
          %v2403 = vadd.f32 0.0, %v2402
          %v2404 = vpop.f32.mrb[0].mxu0
          %v2405 = vpop.f32.mrb[0].mxu0
          %v2406 = vadd.f32 0.0, %v2405
          %v2407 = vpop.f32.mrb[0].mxu0
          %2408 = vmatprep.mubr.bf16.mxu0 0
          %2409 = vmatmul.mubr.bf16.gmra.mrb[0].mxu0 %v2212
          %v2410 = vpop.f32.mrb[0].mxu0
          %v2411 = vadd.f32 0.0, %v2410
          %v2412 = vpop.f32.mrb[0].mxu0
          %v2413 = vpop.f32.mrb[0].mxu0
          %v2414 = vadd.f32 0.0, %v2413
          %v2415 = vpop.f32.mrb[0].mxu0
          %2416 = vmatprep.mubr.bf16.mxu0 0
          %2417 = vmatmul.mubr.bf16.gmra.mrb[0].mxu0 %v2213
          %v2418 = vpop.f32.mrb[0].mxu0
          %v2419 = vadd.f32 0.0, %v2418
          %v2420 = vpop.f32.mrb[0].mxu0
          %v2421 = vpop.f32.mrb[0].mxu0
          %v2422 = vadd.f32 0.0, %v2421
          %v2423 = vpop.f32.mrb[0].mxu0
          %2424 = vmatprep.mubr.bf16.mxu0 0
          %2425 = vmatmul.mubr.bf16.gmra.mrb[0].mxu0 %v2214
          %v2426 = vpop.f32.mrb[0].mxu0
          %v2427 = vadd.f32 0.0, %v2426
          %v2428 = vpop.f32.mrb[0].mxu0
          %v2429 = vpop.f32.mrb[0].mxu0
          %v2430 = vadd.f32 0.0, %v2429
          %v2431 = vpop.f32.mrb[0].mxu0
          %2432 = vmatprep.mubr.bf16.mxu0 0
          %2433 = vmatmul.mubr.bf16.gmra.mrb[0].mxu0 %v2215
          %v2434 = vpop.f32.mrb[0].mxu0
          %v2435 = vadd.f32 0.0, %v2434
          %v2436 = vpop.f32.mrb[0].mxu0
          %v2437 = vpop.f32.mrb[0].mxu0
          %v2438 = vadd.f32 0.0, %v2437
          %v2439 = vpop.f32.mrb[0].mxu0
          %2440 = vdwg.mxu0
          %v2441 = vadd.f32 %v1768, %v2315
          %v2442 = vadd.f32 %v1769, %v2318
          %v2443 = vadd.f32 %v1770, %v2323
          %v2444 = vadd.f32 %v1771, %v2326
          %v2445 = vadd.f32 %v1772, %v2331
          %v2446 = vadd.f32 %v1773, %v2334
          %v2447 = vadd.f32 %v1774, %v2339
          %v2448 = vadd.f32 %v1775, %v2342
          %v2449 = vadd.f32 %v1776, %v2347
          %v2450 = vadd.f32 %v1777, %v2350
          %v2451 = vadd.f32 %v1778, %v2355
          %v2452 = vadd.f32 %v1779, %v2358
          %v2453 = vadd.f32 %v1780, %v2363
          %v2454 = vadd.f32 %v1781, %v2366
          %v2455 = vadd.f32 %v1782, %v2371
          %v2456 = vadd.f32 %v1783, %v2374
          %v2457 = vadd.f32 %v1784, %v2379
          %v2458 = vadd.f32 %v1785, %v2382
          %v2459 = vadd.f32 %v1786, %v2387
          %v2460 = vadd.f32 %v1787, %v2390
          %v2461 = vadd.f32 %v1788, %v2395
          %v2462 = vadd.f32 %v1789, %v2398
          %v2463 = vadd.f32 %v1790, %v2403
          %v2464 = vadd.f32 %v1791, %v2406
          %v2465 = vadd.f32 %v1792, %v2411
          %v2466 = vadd.f32 %v1793, %v2414
          %v2467 = vadd.f32 %v1794, %v2419
          %v2468 = vadd.f32 %v1795, %v2422
          %v2469 = vadd.f32 %v1796, %v2427
          %v2470 = vadd.f32 %v1797, %v2430
          %v2471 = vadd.f32 %v1798, %v2435
          %v2472 = vadd.f32 %v1799, %v2438
          %vm2473 = vcmp.eq.s32.totalorder %v1832, 1
          %vm2474 = vcmp.eq.s32.totalorder %v1833, 1
          %vm2475 = vcmp.eq.s32.totalorder %v1834, 1
          %vm2476 = vcmp.eq.s32.totalorder %v1835, 1
          %vm2477 = vcmp.eq.s32.totalorder %v1836, 1
          %vm2478 = vcmp.eq.s32.totalorder %v1837, 1
          %vm2479 = vcmp.eq.s32.totalorder %v1838, 1
          %vm2480 = vcmp.eq.s32.totalorder %v1839, 1
          %vm2481 = vcmp.eq.s32.totalorder %v1840, 1
          %vm2482 = vcmp.eq.s32.totalorder %v1841, 1
          %vm2483 = vcmp.eq.s32.totalorder %v1842, 1
          %vm2484 = vcmp.eq.s32.totalorder %v1843, 1
          %vm2485 = vcmp.eq.s32.totalorder %v1844, 1
          %vm2486 = vcmp.eq.s32.totalorder %v1845, 1
          %vm2487 = vcmp.eq.s32.totalorder %v1846, 1
          %vm2488 = vcmp.eq.s32.totalorder %v1847, 1
          %vm2489 = vcmp.eq.s32.totalorder %v1848, 1
          %vm2490 = vcmp.eq.s32.totalorder %v1849, 1
          %vm2491 = vcmp.eq.s32.totalorder %v1850, 1
          %vm2492 = vcmp.eq.s32.totalorder %v1851, 1
          %vm2493 = vcmp.eq.s32.totalorder %v1852, 1
          %vm2494 = vcmp.eq.s32.totalorder %v1853, 1
          %vm2495 = vcmp.eq.s32.totalorder %v1854, 1
          %vm2496 = vcmp.eq.s32.totalorder %v1855, 1
          %vm2497 = vcmp.eq.s32.totalorder %v1856, 1
          %vm2498 = vcmp.eq.s32.totalorder %v1857, 1
          %vm2499 = vcmp.eq.s32.totalorder %v1858, 1
          %vm2500 = vcmp.eq.s32.totalorder %v1859, 1
          %vm2501 = vcmp.eq.s32.totalorder %v1860, 1
          %vm2502 = vcmp.eq.s32.totalorder %v1861, 1
          %vm2503 = vcmp.eq.s32.totalorder %v1862, 1
          %vm2504 = vcmp.eq.s32.totalorder %v1863, 1
          %v2505 = vsel %vm2473, 1, 0
          %v2506 = vsel %vm2474, 1, 0
          %v2507 = vsel %vm2475, 1, 0
          %v2508 = vsel %vm2476, 1, 0
          %v2509 = vsel %vm2477, 1, 0
          %v2510 = vsel %vm2478, 1, 0
          %v2511 = vsel %vm2479, 1, 0
          %v2512 = vsel %vm2480, 1, 0
          %v2513 = vsel %vm2481, 1, 0
          %v2514 = vsel %vm2482, 1, 0
          %v2515 = vsel %vm2483, 1, 0
          %v2516 = vsel %vm2484, 1, 0
          %v2517 = vsel %vm2485, 1, 0
          %v2518 = vsel %vm2486, 1, 0
          %v2519 = vsel %vm2487, 1, 0
          %v2520 = vsel %vm2488, 1, 0
          %v2521 = vsel %vm2489, 1, 0
          %v2522 = vsel %vm2490, 1, 0
          %v2523 = vsel %vm2491, 1, 0
          %v2524 = vsel %vm2492, 1, 0
          %v2525 = vsel %vm2493, 1, 0
          %v2526 = vsel %vm2494, 1, 0
          %v2527 = vsel %vm2495, 1, 0
          %v2528 = vsel %vm2496, 1, 0
          %v2529 = vsel %vm2497, 1, 0
          %v2530 = vsel %vm2498, 1, 0
          %v2531 = vsel %vm2499, 1, 0
          %v2532 = vsel %vm2500, 1, 0
          %v2533 = vsel %vm2501, 1, 0
          %v2534 = vsel %vm2502, 1, 0
          %v2535 = vsel %vm2503, 1, 0
          %v2536 = vsel %vm2504, 1, 0
          %2537 = vset.pattern.permute.xlu0 0
          %2538 = vperm.xlu0 %2537, %v2505
          %v2539 = vpop.permute.xlu0 %2538
          %2540 = vset.pattern.permute.xlu0 0
          %2541 = vperm.xlu0 %2540, %v2506
          %v2542 = vpop.permute.xlu0 %2541
          %2543 = vset.pattern.permute.xlu0 0
          %2544 = vperm.xlu0 %2543, %v2507
          %v2545 = vpop.permute.xlu0 %2544
          %2546 = vset.pattern.permute.xlu0 0
          %2547 = vperm.xlu0 %2546, %v2508
          %v2548 = vpop.permute.xlu0 %2547
          %2549 = vset.pattern.permute.xlu0 0
          %2550 = vperm.xlu0 %2549, %v2509
          %v2551 = vpop.permute.xlu0 %2550
          %2552 = vset.pattern.permute.xlu0 0
          %2553 = vperm.xlu0 %2552, %v2510
          %v2554 = vpop.permute.xlu0 %2553
          %2555 = vset.pattern.permute.xlu0 0
          %2556 = vperm.xlu0 %2555, %v2511
          %v2557 = vpop.permute.xlu0 %2556
          %2558 = vset.pattern.permute.xlu0 0
          %2559 = vperm.xlu0 %2558, %v2512
          %v2560 = vpop.permute.xlu0 %2559
          %2561 = vset.pattern.permute.xlu0 0
          %2562 = vperm.xlu0 %2561, %v2513
          %v2563 = vpop.permute.xlu0 %2562
          %2564 = vset.pattern.permute.xlu0 0
          %2565 = vperm.xlu0 %2564, %v2514
          %v2566 = vpop.permute.xlu0 %2565
          %2567 = vset.pattern.permute.xlu0 0
          %2568 = vperm.xlu0 %2567, %v2515
          %v2569 = vpop.permute.xlu0 %2568
          %2570 = vset.pattern.permute.xlu0 0
          %2571 = vperm.xlu0 %2570, %v2516
          %v2572 = vpop.permute.xlu0 %2571
          %2573 = vset.pattern.permute.xlu0 0
          %2574 = vperm.xlu0 %2573, %v2517
          %v2575 = vpop.permute.xlu0 %2574
          %2576 = vset.pattern.permute.xlu0 0
          %2577 = vperm.xlu0 %2576, %v2518
          %v2578 = vpop.permute.xlu0 %2577
          %2579 = vset.pattern.permute.xlu0 0
          %2580 = vperm.xlu0 %2579, %v2519
          %v2581 = vpop.permute.xlu0 %2580
          %2582 = vset.pattern.permute.xlu0 0
          %2583 = vperm.xlu0 %2582, %v2520
          %v2584 = vpop.permute.xlu0 %2583
          %2585 = vset.pattern.permute.xlu0 0
          %2586 = vperm.xlu0 %2585, %v2521
          %v2587 = vpop.permute.xlu0 %2586
          %2588 = vset.pattern.permute.xlu0 0
          %2589 = vperm.xlu0 %2588, %v2522
          %v2590 = vpop.permute.xlu0 %2589
          %2591 = vset.pattern.permute.xlu0 0
          %2592 = vperm.xlu0 %2591, %v2523
          %v2593 = vpop.permute.xlu0 %2592
          %2594 = vset.pattern.permute.xlu0 0
          %2595 = vperm.xlu0 %2594, %v2524
          %v2596 = vpop.permute.xlu0 %2595
          %2597 = vset.pattern.permute.xlu0 0
          %2598 = vperm.xlu0 %2597, %v2525
          %v2599 = vpop.permute.xlu0 %2598
          %2600 = vset.pattern.permute.xlu0 0
          %2601 = vperm.xlu0 %2600, %v2526
          %v2602 = vpop.permute.xlu0 %2601
          %2603 = vset.pattern.permute.xlu0 0
          %2604 = vperm.xlu0 %2603, %v2527
          %v2605 = vpop.permute.xlu0 %2604
          %2606 = vset.pattern.permute.xlu0 0
          %2607 = vperm.xlu0 %2606, %v2528
          %v2608 = vpop.permute.xlu0 %2607
          %2609 = vset.pattern.permute.xlu0 0
          %2610 = vperm.xlu0 %2609, %v2529
          %v2611 = vpop.permute.xlu0 %2610
          %2612 = vset.pattern.permute.xlu0 0
          %2613 = vperm.xlu0 %2612, %v2530
          %v2614 = vpop.permute.xlu0 %2613
          %2615 = vset.pattern.permute.xlu0 0
          %2616 = vperm.xlu0 %2615, %v2531
          %v2617 = vpop.permute.xlu0 %2616
          %2618 = vset.pattern.permute.xlu0 0
          %2619 = vperm.xlu0 %2618, %v2532
          %v2620 = vpop.permute.xlu0 %2619
          %2621 = vset.pattern.permute.xlu0 0
          %2622 = vperm.xlu0 %2621, %v2533
          %v2623 = vpop.permute.xlu0 %2622
          %2624 = vset.pattern.permute.xlu0 0
          %2625 = vperm.xlu0 %2624, %v2534
          %v2626 = vpop.permute.xlu0 %2625
          %2627 = vset.pattern.permute.xlu0 0
          %2628 = vperm.xlu0 %2627, %v2535
          %v2629 = vpop.permute.xlu0 %2628
          %2630 = vset.pattern.permute.xlu0 0
          %2631 = vperm.xlu0 %2630, %v2536
          %v2632 = vpop.permute.xlu0 %2631
          %vm2633 = vcmp.eq.s32.totalorder %v2539, 1
          %vm2634 = vcmp.eq.s32.totalorder %v2542, 1
          %vm2635 = vcmp.eq.s32.totalorder %v2545, 1
          %vm2636 = vcmp.eq.s32.totalorder %v2548, 1
          %vm2637 = vcmp.eq.s32.totalorder %v2551, 1
          %vm2638 = vcmp.eq.s32.totalorder %v2554, 1
          %vm2639 = vcmp.eq.s32.totalorder %v2557, 1
          %vm2640 = vcmp.eq.s32.totalorder %v2560, 1
          %vm2641 = vcmp.eq.s32.totalorder %v2563, 1
          %vm2642 = vcmp.eq.s32.totalorder %v2566, 1
          %vm2643 = vcmp.eq.s32.totalorder %v2569, 1
          %vm2644 = vcmp.eq.s32.totalorder %v2572, 1
          %vm2645 = vcmp.eq.s32.totalorder %v2575, 1
          %vm2646 = vcmp.eq.s32.totalorder %v2578, 1
          %vm2647 = vcmp.eq.s32.totalorder %v2581, 1
          %vm2648 = vcmp.eq.s32.totalorder %v2584, 1
          %vm2649 = vcmp.eq.s32.totalorder %v2587, 1
          %vm2650 = vcmp.eq.s32.totalorder %v2590, 1
          %vm2651 = vcmp.eq.s32.totalorder %v2593, 1
          %vm2652 = vcmp.eq.s32.totalorder %v2596, 1
          %vm2653 = vcmp.eq.s32.totalorder %v2599, 1
          %vm2654 = vcmp.eq.s32.totalorder %v2602, 1
          %vm2655 = vcmp.eq.s32.totalorder %v2605, 1
          %vm2656 = vcmp.eq.s32.totalorder %v2608, 1
          %vm2657 = vcmp.eq.s32.totalorder %v2611, 1
          %vm2658 = vcmp.eq.s32.totalorder %v2614, 1
          %vm2659 = vcmp.eq.s32.totalorder %v2617, 1
          %vm2660 = vcmp.eq.s32.totalorder %v2620, 1
          %vm2661 = vcmp.eq.s32.totalorder %v2623, 1
          %vm2662 = vcmp.eq.s32.totalorder %v2626, 1
          %vm2663 = vcmp.eq.s32.totalorder %v2629, 1
          %vm2664 = vcmp.eq.s32.totalorder %v2632, 1
          %vm2665 = vmpackc.low %vm2633, %vm2633
          %vm2666 = vmpackc.low %vm2634, %vm2634
          %vm2667 = vmpackc.low %vm2635, %vm2635
          %vm2668 = vmpackc.low %vm2636, %vm2636
          %vm2669 = vmpackc.low %vm2637, %vm2637
          %vm2670 = vmpackc.low %vm2638, %vm2638
          %vm2671 = vmpackc.low %vm2639, %vm2639
          %vm2672 = vmpackc.low %vm2640, %vm2640
          %vm2673 = vmpackc.low %vm2641, %vm2641
          %vm2674 = vmpackc.low %vm2642, %vm2642
          %vm2675 = vmpackc.low %vm2643, %vm2643
          %vm2676 = vmpackc.low %vm2644, %vm2644
          %vm2677 = vmpackc.low %vm2645, %vm2645
          %vm2678 = vmpackc.low %vm2646, %vm2646
          %vm2679 = vmpackc.low %vm2647, %vm2647
          %vm2680 = vmpackc.low %vm2648, %vm2648
          %vm2681 = vmpackc.low %vm2649, %vm2649
          %vm2682 = vmpackc.low %vm2650, %vm2650
          %vm2683 = vmpackc.low %vm2651, %vm2651
          %vm2684 = vmpackc.low %vm2652, %vm2652
          %vm2685 = vmpackc.low %vm2653, %vm2653
          %vm2686 = vmpackc.low %vm2654, %vm2654
          %vm2687 = vmpackc.low %vm2655, %vm2655
          %vm2688 = vmpackc.low %vm2656, %vm2656
          %vm2689 = vmpackc.low %vm2657, %vm2657
          %vm2690 = vmpackc.low %vm2658, %vm2658
          %vm2691 = vmpackc.low %vm2659, %vm2659
          %vm2692 = vmpackc.low %vm2660, %vm2660
          %vm2693 = vmpackc.low %vm2661, %vm2661
          %vm2694 = vmpackc.low %vm2662, %vm2662
          %vm2695 = vmpackc.low %vm2663, %vm2663
          %vm2696 = vmpackc.low %vm2664, %vm2664
          %v2697 = vsel %vm2665, %v1800, 0
          %v2698 = vsel %vm2666, %v1801, 0
          %v2699 = vsel %vm2667, %v1802, 0
          %v2700 = vsel %vm2668, %v1803, 0
          %v2701 = vsel %vm2669, %v1804, 0
          %v2702 = vsel %vm2670, %v1805, 0
          %v2703 = vsel %vm2671, %v1806, 0
          %v2704 = vsel %vm2672, %v1807, 0
          %v2705 = vsel %vm2673, %v1808, 0
          %v2706 = vsel %vm2674, %v1809, 0
          %v2707 = vsel %vm2675, %v1810, 0
          %v2708 = vsel %vm2676, %v1811, 0
          %v2709 = vsel %vm2677, %v1812, 0
          %v2710 = vsel %vm2678, %v1813, 0
          %v2711 = vsel %vm2679, %v1814, 0
          %v2712 = vsel %vm2680, %v1815, 0
          %v2713 = vsel %vm2681, %v1816, 0
          %v2714 = vsel %vm2682, %v1817, 0
          %v2715 = vsel %vm2683, %v1818, 0
          %v2716 = vsel %vm2684, %v1819, 0
          %v2717 = vsel %vm2685, %v1820, 0
          %v2718 = vsel %vm2686, %v1821, 0
          %v2719 = vsel %vm2687, %v1822, 0
          %v2720 = vsel %vm2688, %v1823, 0
          %v2721 = vsel %vm2689, %v1824, 0
          %v2722 = vsel %vm2690, %v1825, 0
          %v2723 = vsel %vm2691, %v1826, 0
          %v2724 = vsel %vm2692, %v1827, 0
          %v2725 = vsel %vm2693, %v1828, 0
          %v2726 = vsel %vm2694, %v1829, 0
          %v2727 = vsel %vm2695, %v1830, 0
          %v2728 = vsel %vm2696, %v1831, 0
          %s2729 = scalar_lea.vmem [#allocation9], 64
          %v2730 = vld [vmem:[%s2729] sm:$0xf]
          %v2731 = vld [vmem:[%s2729 + $0x4] sm:$0xf]
          %v2732 = vld [vmem:[%s2729 + $0x8] sm:$0xf]
          %v2733 = vld [vmem:[%s2729 + $0xc] sm:$0xf]
          %v2734 = vld [vmem:[%s2729 + $0x10] sm:$0xf]
          %v2735 = vld [vmem:[%s2729 + $0x14] sm:$0xf]
          %v2736 = vld [vmem:[%s2729 + $0x18] sm:$0xf]
          %v2737 = vld [vmem:[%s2729 + $0x1c] sm:$0xf]
          %v2738 = vld [vmem:[%s2729 + $0x20] sm:$0xf]
          %v2739 = vld [vmem:[%s2729 + $0x24] sm:$0xf]
          %v2740 = vld [vmem:[%s2729 + $0x28] sm:$0xf]
          %v2741 = vld [vmem:[%s2729 + $0x2c] sm:$0xf]
          %v2742 = vld [vmem:[%s2729 + $0x30] sm:$0xf]
          %v2743 = vld [vmem:[%s2729 + $0x34] sm:$0xf]
          %v2744 = vld [vmem:[%s2729 + $0x38] sm:$0xf]
          %v2745 = vld [vmem:[%s2729 + $0x3c] sm:$0xf]
          %v2778 = vunpack.c.l.b16 %v2697
          %v2779 = vunpack.c.l.b16 %v2698
          %v2780 = vunpack.c.l.b16 %v2699
          %v2781 = vunpack.c.l.b16 %v2700
          %v2782 = vunpack.c.l.b16 %v2701
          %v2783 = vunpack.c.l.b16 %v2702
          %v2784 = vunpack.c.l.b16 %v2703
          %v2785 = vunpack.c.l.b16 %v2704
          %v2786 = vunpack.c.l.b16 %v2705
          %v2787 = vunpack.c.l.b16 %v2706
          %v2788 = vunpack.c.l.b16 %v2707
          %v2789 = vunpack.c.l.b16 %v2708
          %v2790 = vunpack.c.l.b16 %v2709
          %v2791 = vunpack.c.l.b16 %v2710
          %v2792 = vunpack.c.l.b16 %v2711
          %v2793 = vunpack.c.l.b16 %v2712
          %v2794 = vunpack.c.l.b16 %v2713
          %v2795 = vunpack.c.l.b16 %v2714
          %v2796 = vunpack.c.l.b16 %v2715
          %v2797 = vunpack.c.l.b16 %v2716
          %v2798 = vunpack.c.l.b16 %v2717
          %v2799 = vunpack.c.l.b16 %v2718
          %v2800 = vunpack.c.l.b16 %v2719
          %v2801 = vunpack.c.l.b16 %v2720
          %v2802 = vunpack.c.l.b16 %v2721
          %v2803 = vunpack.c.l.b16 %v2722
          %v2804 = vunpack.c.l.b16 %v2723
          %v2805 = vunpack.c.l.b16 %v2724
          %v2806 = vunpack.c.l.b16 %v2725
          %v2807 = vunpack.c.l.b16 %v2726
          %v2808 = vunpack.c.l.b16 %v2727
          %v2809 = vunpack.c.l.b16 %v2728
          %v2810 = vpack.c.b16 %v2779, %v2778
          %v2811 = vpack.c.b16 %v2781, %v2780
          %v2812 = vpack.c.b16 %v2783, %v2782
          %v2813 = vpack.c.b16 %v2785, %v2784
          %v2814 = vpack.c.b16 %v2787, %v2786
          %v2815 = vpack.c.b16 %v2789, %v2788
          %v2816 = vpack.c.b16 %v2791, %v2790
          %v2817 = vpack.c.b16 %v2793, %v2792
          %v2818 = vpack.c.b16 %v2795, %v2794
          %v2819 = vpack.c.b16 %v2797, %v2796
          %v2820 = vpack.c.b16 %v2799, %v2798
          %v2821 = vpack.c.b16 %v2801, %v2800
          %v2822 = vpack.c.b16 %v2803, %v2802
          %v2823 = vpack.c.b16 %v2805, %v2804
          %v2824 = vpack.c.b16 %v2807, %v2806
          %v2825 = vpack.c.b16 %v2809, %v2808
          %v2858 = vunpack.c.l.b16 %v2730
          %v2859 = vunpack.c.l.b16 %v2731
          %v2860 = vunpack.c.l.b16 %v2732
          %v2861 = vunpack.c.l.b16 %v2733
          %v2862 = vunpack.c.l.b16 %v2734
          %v2863 = vunpack.c.l.b16 %v2735
          %v2864 = vunpack.c.l.b16 %v2736
          %v2865 = vunpack.c.l.b16 %v2737
          %v2866 = vunpack.c.l.b16 %v2738
          %v2867 = vunpack.c.l.b16 %v2739
          %v2868 = vunpack.c.l.b16 %v2740
          %v2869 = vunpack.c.l.b16 %v2741
          %v2870 = vunpack.c.l.b16 %v2742
          %v2871 = vunpack.c.l.b16 %v2743
          %v2872 = vunpack.c.l.b16 %v2744
          %v2873 = vunpack.c.l.b16 %v2745
          %v2874 = vpack.c.b16 %v2859, %v2858
          %v2875 = vpack.c.b16 %v2861, %v2860
          %v2876 = vpack.c.b16 %v2863, %v2862
          %v2877 = vpack.c.b16 %v2865, %v2864
          %v2878 = vpack.c.b16 %v2867, %v2866
          %v2879 = vpack.c.b16 %v2869, %v2868
          %v2880 = vpack.c.b16 %v2871, %v2870
          %v2881 = vpack.c.b16 %v2873, %v2872
          %2890 = vmatprep.subr.bf16.mxu0 0
          %2891 = vmatpush1.bf16.msra.mxu0 %v2874
          %2892 = vmatprep.subr.bf16.mxu0 0
          %2893 = vmatpush1.bf16.msra.mxu0 %v2875
          %2894 = vmatprep.subr.bf16.mxu0 0
          %2895 = vmatpush1.bf16.msra.mxu0 %v2876
          %2896 = vmatprep.subr.bf16.mxu0 0
          %2897 = vmatpush1.bf16.msra.mxu0 %v2877
          %2898 = vmatprep.subr.bf16.mxu0 0
          %2899 = vmatpush1.bf16.msra.mxu0 %v2878
          %2900 = vmatprep.subr.bf16.mxu0 0
          %2901 = vmatpush1.bf16.msra.mxu0 %v2879
          %2902 = vmatprep.subr.bf16.mxu0 0
          %2903 = vmatpush1.bf16.msra.mxu0 %v2880
          %2904 = vmatprep.subr.bf16.mxu0 0
          %2905 = vmatpush1.bf16.msra.mxu0 %v2881
          %2906 = vmatprep.subr.bf16.mxu0 0
          %2907 = vmatpush1.bf16.msra.mxu0 0
          %2908 = vmatprep.subr.bf16.mxu0 0
          %2909 = vmatpush1.bf16.msra.mxu0 0
          %2910 = vmatprep.subr.bf16.mxu0 0
          %2911 = vmatpush1.bf16.msra.mxu0 0
          %2912 = vmatprep.subr.bf16.mxu0 0
          %2913 = vmatpush1.bf16.msra.mxu0 0
          %2914 = vmatprep.subr.bf16.mxu0 0
          %2915 = vmatpush1.bf16.msra.mxu0 0
          %2916 = vmatprep.subr.bf16.mxu0 0
          %2917 = vmatpush1.bf16.msra.mxu0 0
          %2918 = vmatprep.subr.bf16.mxu0 0
          %2919 = vmatpush1.bf16.msra.mxu0 0
          %2920 = vmatprep.subr.bf16.mxu0 0
          %2921 = vmatpush1.bf16.msra.mxu0 0
          %2922 = vmatprep.mubr.bf16.mxu0 0
          %2923 = vmatmul.mubr.bf16.gmra.mrb[0].mxu0 %v2810
          %v2924 = vpop.f32.mrb[0].mxu0
          %v2925 = vadd.f32 0.0, %v2924
          %v2926 = vpop.f32.mrb[0].mxu0
          %v2927 = vpop.f32.mrb[0].mxu0
          %v2928 = vadd.f32 0.0, %v2927
          %v2929 = vpop.f32.mrb[0].mxu0
          %2930 = vmatprep.mubr.bf16.mxu0 0
          %2931 = vmatmul.mubr.bf16.gmra.mrb[0].mxu0 %v2811
          %v2932 = vpop.f32.mrb[0].mxu0
          %v2933 = vadd.f32 0.0, %v2932
          %v2934 = vpop.f32.mrb[0].mxu0
          %v2935 = vpop.f32.mrb[0].mxu0
          %v2936 = vadd.f32 0.0, %v2935
          %v2937 = vpop.f32.mrb[0].mxu0
          %2938 = vmatprep.mubr.bf16.mxu0 0
          %2939 = vmatmul.mubr.bf16.gmra.mrb[0].mxu0 %v2812
          %v2940 = vpop.f32.mrb[0].mxu0
          %v2941 = vadd.f32 0.0, %v2940
          %v2942 = vpop.f32.mrb[0].mxu0
          %v2943 = vpop.f32.mrb[0].mxu0
          %v2944 = vadd.f32 0.0, %v2943
          %v2945 = vpop.f32.mrb[0].mxu0
          %2946 = vmatprep.mubr.bf16.mxu0 0
          %2947 = vmatmul.mubr.bf16.gmra.mrb[0].mxu0 %v2813
          %v2948 = vpop.f32.mrb[0].mxu0
          %v2949 = vadd.f32 0.0, %v2948
          %v2950 = vpop.f32.mrb[0].mxu0
          %v2951 = vpop.f32.mrb[0].mxu0
          %v2952 = vadd.f32 0.0, %v2951
          %v2953 = vpop.f32.mrb[0].mxu0
          %2954 = vmatprep.mubr.bf16.mxu0 0
          %2955 = vmatmul.mubr.bf16.gmra.mrb[0].mxu0 %v2814
          %v2956 = vpop.f32.mrb[0].mxu0
          %v2957 = vadd.f32 0.0, %v2956
          %v2958 = vpop.f32.mrb[0].mxu0
          %v2959 = vpop.f32.mrb[0].mxu0
          %v2960 = vadd.f32 0.0, %v2959
          %v2961 = vpop.f32.mrb[0].mxu0
          %2962 = vmatprep.mubr.bf16.mxu0 0
          %2963 = vmatmul.mubr.bf16.gmra.mrb[0].mxu0 %v2815
          %v2964 = vpop.f32.mrb[0].mxu0
          %v2965 = vadd.f32 0.0, %v2964
          %v2966 = vpop.f32.mrb[0].mxu0
          %v2967 = vpop.f32.mrb[0].mxu0
          %v2968 = vadd.f32 0.0, %v2967
          %v2969 = vpop.f32.mrb[0].mxu0
          %2970 = vmatprep.mubr.bf16.mxu0 0
          %2971 = vmatmul.mubr.bf16.gmra.mrb[0].mxu0 %v2816
          %v2972 = vpop.f32.mrb[0].mxu0
          %v2973 = vadd.f32 0.0, %v2972
          %v2974 = vpop.f32.mrb[0].mxu0
          %v2975 = vpop.f32.mrb[0].mxu0
          %v2976 = vadd.f32 0.0, %v2975
          %v2977 = vpop.f32.mrb[0].mxu0
          %2978 = vmatprep.mubr.bf16.mxu0 0
          %2979 = vmatmul.mubr.bf16.gmra.mrb[0].mxu0 %v2817
          %v2980 = vpop.f32.mrb[0].mxu0
          %v2981 = vadd.f32 0.0, %v2980
          %v2982 = vpop.f32.mrb[0].mxu0
          %v2983 = vpop.f32.mrb[0].mxu0
          %v2984 = vadd.f32 0.0, %v2983
          %v2985 = vpop.f32.mrb[0].mxu0
          %2986 = vmatprep.mubr.bf16.mxu0 0
          %2987 = vmatmul.mubr.bf16.gmra.mrb[0].mxu0 %v2818
          %v2988 = vpop.f32.mrb[0].mxu0
          %v2989 = vadd.f32 0.0, %v2988
          %v2990 = vpop.f32.mrb[0].mxu0
          %v2991 = vpop.f32.mrb[0].mxu0
          %v2992 = vadd.f32 0.0, %v2991
          %v2993 = vpop.f32.mrb[0].mxu0
          %2994 = vmatprep.mubr.bf16.mxu0 0
          %2995 = vmatmul.mubr.bf16.gmra.mrb[0].mxu0 %v2819
          %v2996 = vpop.f32.mrb[0].mxu0
          %v2997 = vadd.f32 0.0, %v2996
          %v2998 = vpop.f32.mrb[0].mxu0
          %v2999 = vpop.f32.mrb[0].mxu0
          %v3000 = vadd.f32 0.0, %v2999
          %v3001 = vpop.f32.mrb[0].mxu0
          %3002 = vmatprep.mubr.bf16.mxu0 0
          %3003 = vmatmul.mubr.bf16.gmra.mrb[0].mxu0 %v2820
          %v3004 = vpop.f32.mrb[0].mxu0
          %v3005 = vadd.f32 0.0, %v3004
          %v3006 = vpop.f32.mrb[0].mxu0
          %v3007 = vpop.f32.mrb[0].mxu0
          %v3008 = vadd.f32 0.0, %v3007
          %v3009 = vpop.f32.mrb[0].mxu0
          %3010 = vmatprep.mubr.bf16.mxu0 0
          %3011 = vmatmul.mubr.bf16.gmra.mrb[0].mxu0 %v2821
          %v3012 = vpop.f32.mrb[0].mxu0
          %v3013 = vadd.f32 0.0, %v3012
          %v3014 = vpop.f32.mrb[0].mxu0
          %v3015 = vpop.f32.mrb[0].mxu0
          %v3016 = vadd.f32 0.0, %v3015
          %v3017 = vpop.f32.mrb[0].mxu0
          %3018 = vmatprep.mubr.bf16.mxu0 0
          %3019 = vmatmul.mubr.bf16.gmra.mrb[0].mxu0 %v2822
          %v3020 = vpop.f32.mrb[0].mxu0
          %v3021 = vadd.f32 0.0, %v3020
          %v3022 = vpop.f32.mrb[0].mxu0
          %v3023 = vpop.f32.mrb[0].mxu0
          %v3024 = vadd.f32 0.0, %v3023
          %v3025 = vpop.f32.mrb[0].mxu0
          %3026 = vmatprep.mubr.bf16.mxu0 0
          %3027 = vmatmul.mubr.bf16.gmra.mrb[0].mxu0 %v2823
          %v3028 = vpop.f32.mrb[0].mxu0
          %v3029 = vadd.f32 0.0, %v3028
          %v3030 = vpop.f32.mrb[0].mxu0
          %v3031 = vpop.f32.mrb[0].mxu0
          %v3032 = vadd.f32 0.0, %v3031
          %v3033 = vpop.f32.mrb[0].mxu0
          %3034 = vmatprep.mubr.bf16.mxu0 0
          %3035 = vmatmul.mubr.bf16.gmra.mrb[0].mxu0 %v2824
          %v3036 = vpop.f32.mrb[0].mxu0
          %v3037 = vadd.f32 0.0, %v3036
          %v3038 = vpop.f32.mrb[0].mxu0
          %v3039 = vpop.f32.mrb[0].mxu0
          %v3040 = vadd.f32 0.0, %v3039
          %v3041 = vpop.f32.mrb[0].mxu0
          %3042 = vmatprep.mubr.bf16.mxu0 0
          %3043 = vmatmul.mubr.bf16.gmra.mrb[0].mxu0 %v2825
          %v3044 = vpop.f32.mrb[0].mxu0
          %v3045 = vadd.f32 0.0, %v3044
          %v3046 = vpop.f32.mrb[0].mxu0
          %v3047 = vpop.f32.mrb[0].mxu0
          %v3048 = vadd.f32 0.0, %v3047
          %v3049 = vpop.f32.mrb[0].mxu0
          %3050 = vdwg.mxu0
          %v3051 = vadd.f32 %v2441, %v2925
          %v3052 = vadd.f32 %v2442, %v2928
          %v3053 = vadd.f32 %v2443, %v2933
          %v3054 = vadd.f32 %v2444, %v2936
          %v3055 = vadd.f32 %v2445, %v2941
          %v3056 = vadd.f32 %v2446, %v2944
          %v3057 = vadd.f32 %v2447, %v2949
          %v3058 = vadd.f32 %v2448, %v2952
          %v3059 = vadd.f32 %v2449, %v2957
          %v3060 = vadd.f32 %v2450, %v2960
          %v3061 = vadd.f32 %v2451, %v2965
          %v3062 = vadd.f32 %v2452, %v2968
          %v3063 = vadd.f32 %v2453, %v2973
          %v3064 = vadd.f32 %v2454, %v2976
          %v3065 = vadd.f32 %v2455, %v2981
          %v3066 = vadd.f32 %v2456, %v2984
          %v3067 = vadd.f32 %v2457, %v2989
          %v3068 = vadd.f32 %v2458, %v2992
          %v3069 = vadd.f32 %v2459, %v2997
          %v3070 = vadd.f32 %v2460, %v3000
          %v3071 = vadd.f32 %v2461, %v3005
          %v3072 = vadd.f32 %v2462, %v3008
          %v3073 = vadd.f32 %v2463, %v3013
          %v3074 = vadd.f32 %v2464, %v3016
          %v3075 = vadd.f32 %v2465, %v3021
          %v3076 = vadd.f32 %v2466, %v3024
          %v3077 = vadd.f32 %v2467, %v3029
          %v3078 = vadd.f32 %v2468, %v3032
          %v3079 = vadd.f32 %v2469, %v3037
          %v3080 = vadd.f32 %v2470, %v3040
          %v3081 = vadd.f32 %v2471, %v3045
          %v3082 = vadd.f32 %v2472, %v3048
          %vm3083 = vcmp.eq.s32.totalorder %v1832, 2
          %vm3084 = vcmp.eq.s32.totalorder %v1833, 2
          %vm3085 = vcmp.eq.s32.totalorder %v1834, 2
          %vm3086 = vcmp.eq.s32.totalorder %v1835, 2
          %vm3087 = vcmp.eq.s32.totalorder %v1836, 2
          %vm3088 = vcmp.eq.s32.totalorder %v1837, 2
          %vm3089 = vcmp.eq.s32.totalorder %v1838, 2
          %vm3090 = vcmp.eq.s32.totalorder %v1839, 2
          %vm3091 = vcmp.eq.s32.totalorder %v1840, 2
          %vm3092 = vcmp.eq.s32.totalorder %v1841, 2
          %vm3093 = vcmp.eq.s32.totalorder %v1842, 2
          %vm3094 = vcmp.eq.s32.totalorder %v1843, 2
          %vm3095 = vcmp.eq.s32.totalorder %v1844, 2
          %vm3096 = vcmp.eq.s32.totalorder %v1845, 2
          %vm3097 = vcmp.eq.s32.totalorder %v1846, 2
          %vm3098 = vcmp.eq.s32.totalorder %v1847, 2
          %vm3099 = vcmp.eq.s32.totalorder %v1848, 2
          %vm3100 = vcmp.eq.s32.totalorder %v1849, 2
          %vm3101 = vcmp.eq.s32.totalorder %v1850, 2
          %vm3102 = vcmp.eq.s32.totalorder %v1851, 2
          %vm3103 = vcmp.eq.s32.totalorder %v1852, 2
          %vm3104 = vcmp.eq.s32.totalorder %v1853, 2
          %vm3105 = vcmp.eq.s32.totalorder %v1854, 2
          %vm3106 = vcmp.eq.s32.totalorder %v1855, 2
          %vm3107 = vcmp.eq.s32.totalorder %v1856, 2
          %vm3108 = vcmp.eq.s32.totalorder %v1857, 2
          %vm3109 = vcmp.eq.s32.totalorder %v1858, 2
          %vm3110 = vcmp.eq.s32.totalorder %v1859, 2
          %vm3111 = vcmp.eq.s32.totalorder %v1860, 2
          %vm3112 = vcmp.eq.s32.totalorder %v1861, 2
          %vm3113 = vcmp.eq.s32.totalorder %v1862, 2
          %vm3114 = vcmp.eq.s32.totalorder %v1863, 2
          %v3115 = vsel %vm3083, 1, 0
          %v3116 = vsel %vm3084, 1, 0
          %v3117 = vsel %vm3085, 1, 0
          %v3118 = vsel %vm3086, 1, 0
          %v3119 = vsel %vm3087, 1, 0
          %v3120 = vsel %vm3088, 1, 0
          %v3121 = vsel %vm3089, 1, 0
          %v3122 = vsel %vm3090, 1, 0
          %v3123 = vsel %vm3091, 1, 0
          %v3124 = vsel %vm3092, 1, 0
          %v3125 = vsel %vm3093, 1, 0
          %v3126 = vsel %vm3094, 1, 0
          %v3127 = vsel %vm3095, 1, 0
          %v3128 = vsel %vm3096, 1, 0
          %v3129 = vsel %vm3097, 1, 0
          %v3130 = vsel %vm3098, 1, 0
          %v3131 = vsel %vm3099, 1, 0
          %v3132 = vsel %vm3100, 1, 0
          %v3133 = vsel %vm3101, 1, 0
          %v3134 = vsel %vm3102, 1, 0
          %v3135 = vsel %vm3103, 1, 0
          %v3136 = vsel %vm3104, 1, 0
          %v3137 = vsel %vm3105, 1, 0
          %v3138 = vsel %vm3106, 1, 0
          %v3139 = vsel %vm3107, 1, 0
          %v3140 = vsel %vm3108, 1, 0
          %v3141 = vsel %vm3109, 1, 0
          %v3142 = vsel %vm3110, 1, 0
          %v3143 = vsel %vm3111, 1, 0
          %v3144 = vsel %vm3112, 1, 0
          %v3145 = vsel %vm3113, 1, 0
          %v3146 = vsel %vm3114, 1, 0
          %3147 = vset.pattern.permute.xlu0 0
          %3148 = vperm.xlu0 %3147, %v3115
          %v3149 = vpop.permute.xlu0 %3148
          %3150 = vset.pattern.permute.xlu0 0
          %3151 = vperm.xlu0 %3150, %v3116
          %v3152 = vpop.permute.xlu0 %3151
          %3153 = vset.pattern.permute.xlu0 0
          %3154 = vperm.xlu0 %3153, %v3117
          %v3155 = vpop.permute.xlu0 %3154
          %3156 = vset.pattern.permute.xlu0 0
          %3157 = vperm.xlu0 %3156, %v3118
          %v3158 = vpop.permute.xlu0 %3157
          %3159 = vset.pattern.permute.xlu0 0
          %3160 = vperm.xlu0 %3159, %v3119
          %v3161 = vpop.permute.xlu0 %3160
          %3162 = vset.pattern.permute.xlu0 0
          %3163 = vperm.xlu0 %3162, %v3120
          %v3164 = vpop.permute.xlu0 %3163
          %3165 = vset.pattern.permute.xlu0 0
          %3166 = vperm.xlu0 %3165, %v3121
          %v3167 = vpop.permute.xlu0 %3166
          %3168 = vset.pattern.permute.xlu0 0
          %3169 = vperm.xlu0 %3168, %v3122
          %v3170 = vpop.permute.xlu0 %3169
          %3171 = vset.pattern.permute.xlu0 0
          %3172 = vperm.xlu0 %3171, %v3123
          %v3173 = vpop.permute.xlu0 %3172
          %3174 = vset.pattern.permute.xlu0 0
          %3175 = vperm.xlu0 %3174, %v3124
          %v3176 = vpop.permute.xlu0 %3175
          %3177 = vset.pattern.permute.xlu0 0
          %3178 = vperm.xlu0 %3177, %v3125
          %v3179 = vpop.permute.xlu0 %3178
          %3180 = vset.pattern.permute.xlu0 0
          %3181 = vperm.xlu0 %3180, %v3126
          %v3182 = vpop.permute.xlu0 %3181
          %3183 = vset.pattern.permute.xlu0 0
          %3184 = vperm.xlu0 %3183, %v3127
          %v3185 = vpop.permute.xlu0 %3184
          %3186 = vset.pattern.permute.xlu0 0
          %3187 = vperm.xlu0 %3186, %v3128
          %v3188 = vpop.permute.xlu0 %3187
          %3189 = vset.pattern.permute.xlu0 0
          %3190 = vperm.xlu0 %3189, %v3129
          %v3191 = vpop.permute.xlu0 %3190
          %3192 = vset.pattern.permute.xlu0 0
          %3193 = vperm.xlu0 %3192, %v3130
          %v3194 = vpop.permute.xlu0 %3193
          %3195 = vset.pattern.permute.xlu0 0
          %3196 = vperm.xlu0 %3195, %v3131
          %v3197 = vpop.permute.xlu0 %3196
          %3198 = vset.pattern.permute.xlu0 0
          %3199 = vperm.xlu0 %3198, %v3132
          %v3200 = vpop.permute.xlu0 %3199
          %3201 = vset.pattern.permute.xlu0 0
          %3202 = vperm.xlu0 %3201, %v3133
          %v3203 = vpop.permute.xlu0 %3202
          %3204 = vset.pattern.permute.xlu0 0
          %3205 = vperm.xlu0 %3204, %v3134
          %v3206 = vpop.permute.xlu0 %3205
          %3207 = vset.pattern.permute.xlu0 0
          %3208 = vperm.xlu0 %3207, %v3135
          %v3209 = vpop.permute.xlu0 %3208
          %3210 = vset.pattern.permute.xlu0 0
          %3211 = vperm.xlu0 %3210, %v3136
          %v3212 = vpop.permute.xlu0 %3211
          %3213 = vset.pattern.permute.xlu0 0
          %3214 = vperm.xlu0 %3213, %v3137
          %v3215 = vpop.permute.xlu0 %3214
          %3216 = vset.pattern.permute.xlu0 0
          %3217 = vperm.xlu0 %3216, %v3138
          %v3218 = vpop.permute.xlu0 %3217
          %3219 = vset.pattern.permute.xlu0 0
          %3220 = vperm.xlu0 %3219, %v3139
          %v3221 = vpop.permute.xlu0 %3220
          %3222 = vset.pattern.permute.xlu0 0
          %3223 = vperm.xlu0 %3222, %v3140
          %v3224 = vpop.permute.xlu0 %3223
          %3225 = vset.pattern.permute.xlu0 0
          %3226 = vperm.xlu0 %3225, %v3141
          %v3227 = vpop.permute.xlu0 %3226
          %3228 = vset.pattern.permute.xlu0 0
          %3229 = vperm.xlu0 %3228, %v3142
          %v3230 = vpop.permute.xlu0 %3229
          %3231 = vset.pattern.permute.xlu0 0
          %3232 = vperm.xlu0 %3231, %v3143
          %v3233 = vpop.permute.xlu0 %3232
          %3234 = vset.pattern.permute.xlu0 0
          %3235 = vperm.xlu0 %3234, %v3144
          %v3236 = vpop.permute.xlu0 %3235
          %3237 = vset.pattern.permute.xlu0 0
          %3238 = vperm.xlu0 %3237, %v3145
          %v3239 = vpop.permute.xlu0 %3238
          %3240 = vset.pattern.permute.xlu0 0
          %3241 = vperm.xlu0 %3240, %v3146
          %v3242 = vpop.permute.xlu0 %3241
          %vm3243 = vcmp.eq.s32.totalorder %v3149, 1
          %vm3244 = vcmp.eq.s32.totalorder %v3152, 1
          %vm3245 = vcmp.eq.s32.totalorder %v3155, 1
          %vm3246 = vcmp.eq.s32.totalorder %v3158, 1
          %vm3247 = vcmp.eq.s32.totalorder %v3161, 1
          %vm3248 = vcmp.eq.s32.totalorder %v3164, 1
          %vm3249 = vcmp.eq.s32.totalorder %v3167, 1
          %vm3250 = vcmp.eq.s32.totalorder %v3170, 1
          %vm3251 = vcmp.eq.s32.totalorder %v3173, 1
          %vm3252 = vcmp.eq.s32.totalorder %v3176, 1
          %vm3253 = vcmp.eq.s32.totalorder %v3179, 1
          %vm3254 = vcmp.eq.s32.totalorder %v3182, 1
          %vm3255 = vcmp.eq.s32.totalorder %v3185, 1
          %vm3256 = vcmp.eq.s32.totalorder %v3188, 1
          %vm3257 = vcmp.eq.s32.totalorder %v3191, 1
          %vm3258 = vcmp.eq.s32.totalorder %v3194, 1
          %vm3259 = vcmp.eq.s32.totalorder %v3197, 1
          %vm3260 = vcmp.eq.s32.totalorder %v3200, 1
          %vm3261 = vcmp.eq.s32.totalorder %v3203, 1
          %vm3262 = vcmp.eq.s32.totalorder %v3206, 1
          %vm3263 = vcmp.eq.s32.totalorder %v3209, 1
          %vm3264 = vcmp.eq.s32.totalorder %v3212, 1
          %vm3265 = vcmp.eq.s32.totalorder %v3215, 1
          %vm3266 = vcmp.eq.s32.totalorder %v3218, 1
          %vm3267 = vcmp.eq.s32.totalorder %v3221, 1
          %vm3268 = vcmp.eq.s32.totalorder %v3224, 1
          %vm3269 = vcmp.eq.s32.totalorder %v3227, 1
          %vm3270 = vcmp.eq.s32.totalorder %v3230, 1
          %vm3271 = vcmp.eq.s32.totalorder %v3233, 1
          %vm3272 = vcmp.eq.s32.totalorder %v3236, 1
          %vm3273 = vcmp.eq.s32.totalorder %v3239, 1
          %vm3274 = vcmp.eq.s32.totalorder %v3242, 1
          %vm3275 = vmpackc.low %vm3243, %vm3243
          %vm3276 = vmpackc.low %vm3244, %vm3244
          %vm3277 = vmpackc.low %vm3245, %vm3245
          %vm3278 = vmpackc.low %vm3246, %vm3246
          %vm3279 = vmpackc.low %vm3247, %vm3247
          %vm3280 = vmpackc.low %vm3248, %vm3248
          %vm3281 = vmpackc.low %vm3249, %vm3249
          %vm3282 = vmpackc.low %vm3250, %vm3250
          %vm3283 = vmpackc.low %vm3251, %vm3251
          %vm3284 = vmpackc.low %vm3252, %vm3252
          %vm3285 = vmpackc.low %vm3253, %vm3253
          %vm3286 = vmpackc.low %vm3254, %vm3254
          %vm3287 = vmpackc.low %vm3255, %vm3255
          %vm3288 = vmpackc.low %vm3256, %vm3256
          %vm3289 = vmpackc.low %vm3257, %vm3257
          %vm3290 = vmpackc.low %vm3258, %vm3258
          %vm3291 = vmpackc.low %vm3259, %vm3259
          %vm3292 = vmpackc.low %vm3260, %vm3260
          %vm3293 = vmpackc.low %vm3261, %vm3261
          %vm3294 = vmpackc.low %vm3262, %vm3262
          %vm3295 = vmpackc.low %vm3263, %vm3263
          %vm3296 = vmpackc.low %vm3264, %vm3264
          %vm3297 = vmpackc.low %vm3265, %vm3265
          %vm3298 = vmpackc.low %vm3266, %vm3266
          %vm3299 = vmpackc.low %vm3267, %vm3267
          %vm3300 = vmpackc.low %vm3268, %vm3268
          %vm3301 = vmpackc.low %vm3269, %vm3269
          %vm3302 = vmpackc.low %vm3270, %vm3270
          %vm3303 = vmpackc.low %vm3271, %vm3271
          %vm3304 = vmpackc.low %vm3272, %vm3272
          %vm3305 = vmpackc.low %vm3273, %vm3273
          %vm3306 = vmpackc.low %vm3274, %vm3274
          %v3307 = vsel %vm3275, %v1800, 0
          %v3308 = vsel %vm3276, %v1801, 0
          %v3309 = vsel %vm3277, %v1802, 0
          %v3310 = vsel %vm3278, %v1803, 0
          %v3311 = vsel %vm3279, %v1804, 0
          %v3312 = vsel %vm3280, %v1805, 0
          %v3313 = vsel %vm3281, %v1806, 0
          %v3314 = vsel %vm3282, %v1807, 0
          %v3315 = vsel %vm3283, %v1808, 0
          %v3316 = vsel %vm3284, %v1809, 0
          %v3317 = vsel %vm3285, %v1810, 0
          %v3318 = vsel %vm3286, %v1811, 0
          %v3319 = vsel %vm3287, %v1812, 0
          %v3320 = vsel %vm3288, %v1813, 0
          %v3321 = vsel %vm3289, %v1814, 0
          %v3322 = vsel %vm3290, %v1815, 0
          %v3323 = vsel %vm3291, %v1816, 0
          %v3324 = vsel %vm3292, %v1817, 0
          %v3325 = vsel %vm3293, %v1818, 0
          %v3326 = vsel %vm3294, %v1819, 0
          %v3327 = vsel %vm3295, %v1820, 0
          %v3328 = vsel %vm3296, %v1821, 0
          %v3329 = vsel %vm3297, %v1822, 0
          %v3330 = vsel %vm3298, %v1823, 0
          %v3331 = vsel %vm3299, %v1824, 0
          %v3332 = vsel %vm3300, %v1825, 0
          %v3333 = vsel %vm3301, %v1826, 0
          %v3334 = vsel %vm3302, %v1827, 0
          %v3335 = vsel %vm3303, %v1828, 0
          %v3336 = vsel %vm3304, %v1829, 0
          %v3337 = vsel %vm3305, %v1830, 0
          %v3338 = vsel %vm3306, %v1831, 0
          %s3339 = scalar_lea.vmem [#allocation9], 128
          %v3340 = vld [vmem:[%s3339] sm:$0xf]
          %v3341 = vld [vmem:[%s3339 + $0x4] sm:$0xf]
          %v3342 = vld [vmem:[%s3339 + $0x8] sm:$0xf]
          %v3343 = vld [vmem:[%s3339 + $0xc] sm:$0xf]
          %v3344 = vld [vmem:[%s3339 + $0x10] sm:$0xf]
          %v3345 = vld [vmem:[%s3339 + $0x14] sm:$0xf]
          %v3346 = vld [vmem:[%s3339 + $0x18] sm:$0xf]
          %v3347 = vld [vmem:[%s3339 + $0x1c] sm:$0xf]
          %v3348 = vld [vmem:[%s3339 + $0x20] sm:$0xf]
          %v3349 = vld [vmem:[%s3339 + $0x24] sm:$0xf]
          %v3350 = vld [vmem:[%s3339 + $0x28] sm:$0xf]
          %v3351 = vld [vmem:[%s3339 + $0x2c] sm:$0xf]
          %v3352 = vld [vmem:[%s3339 + $0x30] sm:$0xf]
          %v3353 = vld [vmem:[%s3339 + $0x34] sm:$0xf]
          %v3354 = vld [vmem:[%s3339 + $0x38] sm:$0xf]
          %v3355 = vld [vmem:[%s3339 + $0x3c] sm:$0xf]
          %v3388 = vunpack.c.l.b16 %v3307
          %v3389 = vunpack.c.l.b16 %v3308
          %v3390 = vunpack.c.l.b16 %v3309
          %v3391 = vunpack.c.l.b16 %v3310
          %v3392 = vunpack.c.l.b16 %v3311
          %v3393 = vunpack.c.l.b16 %v3312
          %v3394 = vunpack.c.l.b16 %v3313
          %v3395 = vunpack.c.l.b16 %v3314
          %v3396 = vunpack.c.l.b16 %v3315
          %v3397 = vunpack.c.l.b16 %v3316
          %v3398 = vunpack.c.l.b16 %v3317
          %v3399 = vunpack.c.l.b16 %v3318
          %v3400 = vunpack.c.l.b16 %v3319
          %v3401 = vunpack.c.l.b16 %v3320
          %v3402 = vunpack.c.l.b16 %v3321
          %v3403 = vunpack.c.l.b16 %v3322
          %v3404 = vunpack.c.l.b16 %v3323
          %v3405 = vunpack.c.l.b16 %v3324
          %v3406 = vunpack.c.l.b16 %v3325
          %v3407 = vunpack.c.l.b16 %v3326
          %v3408 = vunpack.c.l.b16 %v3327
          %v3409 = vunpack.c.l.b16 %v3328
          %v3410 = vunpack.c.l.b16 %v3329
          %v3411 = vunpack.c.l.b16 %v3330
          %v3412 = vunpack.c.l.b16 %v3331
          %v3413 = vunpack.c.l.b16 %v3332
          %v3414 = vunpack.c.l.b16 %v3333
          %v3415 = vunpack.c.l.b16 %v3334
          %v3416 = vunpack.c.l.b16 %v3335
          %v3417 = vunpack.c.l.b16 %v3336
          %v3418 = vunpack.c.l.b16 %v3337
          %v3419 = vunpack.c.l.b16 %v3338
          %v3420 = vpack.c.b16 %v3389, %v3388
          %v3421 = vpack.c.b16 %v3391, %v3390
          %v3422 = vpack.c.b16 %v3393, %v3392
          %v3423 = vpack.c.b16 %v3395, %v3394
          %v3424 = vpack.c.b16 %v3397, %v3396
          %v3425 = vpack.c.b16 %v3399, %v3398
          %v3426 = vpack.c.b16 %v3401, %v3400
          %v3427 = vpack.c.b16 %v3403, %v3402
          %v3428 = vpack.c.b16 %v3405, %v3404
          %v3429 = vpack.c.b16 %v3407, %v3406
          %v3430 = vpack.c.b16 %v3409, %v3408
          %v3431 = vpack.c.b16 %v3411, %v3410
          %v3432 = vpack.c.b16 %v3413, %v3412
          %v3433 = vpack.c.b16 %v3415, %v3414
          %v3434 = vpack.c.b16 %v3417, %v3416
          %v3435 = vpack.c.b16 %v3419, %v3418
          %v3468 = vunpack.c.l.b16 %v3340
          %v3469 = vunpack.c.l.b16 %v3341
          %v3470 = vunpack.c.l.b16 %v3342
          %v3471 = vunpack.c.l.b16 %v3343
          %v3472 = vunpack.c.l.b16 %v3344
          %v3473 = vunpack.c.l.b16 %v3345
          %v3474 = vunpack.c.l.b16 %v3346
          %v3475 = vunpack.c.l.b16 %v3347
          %v3476 = vunpack.c.l.b16 %v3348
          %v3477 = vunpack.c.l.b16 %v3349
          %v3478 = vunpack.c.l.b16 %v3350
          %v3479 = vunpack.c.l.b16 %v3351
          %v3480 = vunpack.c.l.b16 %v3352
          %v3481 = vunpack.c.l.b16 %v3353
          %v3482 = vunpack.c.l.b16 %v3354
          %v3483 = vunpack.c.l.b16 %v3355
          %v3484 = vpack.c.b16 %v3469, %v3468
          %v3485 = vpack.c.b16 %v3471, %v3470
          %v3486 = vpack.c.b16 %v3473, %v3472
          %v3487 = vpack.c.b16 %v3475, %v3474
          %v3488 = vpack.c.b16 %v3477, %v3476
          %v3489 = vpack.c.b16 %v3479, %v3478
          %v3490 = vpack.c.b16 %v3481, %v3480
          %v3491 = vpack.c.b16 %v3483, %v3482
          %3500 = vmatprep.subr.bf16.mxu0 0
          %3501 = vmatpush1.bf16.msra.mxu0 %v3484
          %3502 = vmatprep.subr.bf16.mxu0 0
          %3503 = vmatpush1.bf16.msra.mxu0 %v3485
          %3504 = vmatprep.subr.bf16.mxu0 0
          %3505 = vmatpush1.bf16.msra.mxu0 %v3486
          %3506 = vmatprep.subr.bf16.mxu0 0
          %3507 = vmatpush1.bf16.msra.mxu0 %v3487
          %3508 = vmatprep.subr.bf16.mxu0 0
          %3509 = vmatpush1.bf16.msra.mxu0 %v3488
          %3510 = vmatprep.subr.bf16.mxu0 0
          %3511 = vmatpush1.bf16.msra.mxu0 %v3489
          %3512 = vmatprep.subr.bf16.mxu0 0
          %3513 = vmatpush1.bf16.msra.mxu0 %v3490
          %3514 = vmatprep.subr.bf16.mxu0 0
          %3515 = vmatpush1.bf16.msra.mxu0 %v3491
          %3516 = vmatprep.subr.bf16.mxu0 0
          %3517 = vmatpush1.bf16.msra.mxu0 0
          %3518 = vmatprep.subr.bf16.mxu0 0
          %3519 = vmatpush1.bf16.msra.mxu0 0
          %3520 = vmatprep.subr.bf16.mxu0 0
          %3521 = vmatpush1.bf16.msra.mxu0 0
          %3522 = vmatprep.subr.bf16.mxu0 0
          %3523 = vmatpush1.bf16.msra.mxu0 0
          %3524 = vmatprep.subr.bf16.mxu0 0
          %3525 = vmatpush1.bf16.msra.mxu0 0
          %3526 = vmatprep.subr.bf16.mxu0 0
          %3527 = vmatpush1.bf16.msra.mxu0 0
          %3528 = vmatprep.subr.bf16.mxu0 0
          %3529 = vmatpush1.bf16.msra.mxu0 0
          %3530 = vmatprep.subr.bf16.mxu0 0
          %3531 = vmatpush1.bf16.msra.mxu0 0
          %3532 = vmatprep.mubr.bf16.mxu0 0
          %3533 = vmatmul.mubr.bf16.gmra.mrb[0].mxu0 %v3420
          %v3534 = vpop.f32.mrb[0].mxu0
          %v3535 = vadd.f32 0.0, %v3534
          %v3536 = vpop.f32.mrb[0].mxu0
          %v3537 = vpop.f32.mrb[0].mxu0
          %v3538 = vadd.f32 0.0, %v3537
          %v3539 = vpop.f32.mrb[0].mxu0
          %3540 = vmatprep.mubr.bf16.mxu0 0
          %3541 = vmatmul.mubr.bf16.gmra.mrb[0].mxu0 %v3421
          %v3542 = vpop.f32.mrb[0].mxu0
          %v3543 = vadd.f32 0.0, %v3542
          %v3544 = vpop.f32.mrb[0].mxu0
          %v3545 = vpop.f32.mrb[0].mxu0
          %v3546 = vadd.f32 0.0, %v3545
          %v3547 = vpop.f32.mrb[0].mxu0
          %3548 = vmatprep.mubr.bf16.mxu0 0
          %3549 = vmatmul.mubr.bf16.gmra.mrb[0].mxu0 %v3422
          %v3550 = vpop.f32.mrb[0].mxu0
          %v3551 = vadd.f32 0.0, %v3550
          %v3552 = vpop.f32.mrb[0].mxu0
          %v3553 = vpop.f32.mrb[0].mxu0
          %v3554 = vadd.f32 0.0, %v3553
          %v3555 = vpop.f32.mrb[0].mxu0
          %3556 = vmatprep.mubr.bf16.mxu0 0
          %3557 = vmatmul.mubr.bf16.gmra.mrb[0].mxu0 %v3423
          %v3558 = vpop.f32.mrb[0].mxu0
          %v3559 = vadd.f32 0.0, %v3558
          %v3560 = vpop.f32.mrb[0].mxu0
          %v3561 = vpop.f32.mrb[0].mxu0
          %v3562 = vadd.f32 0.0, %v3561
          %v3563 = vpop.f32.mrb[0].mxu0
          %3564 = vmatprep.mubr.bf16.mxu0 0
          %3565 = vmatmul.mubr.bf16.gmra.mrb[0].mxu0 %v3424
          %v3566 = vpop.f32.mrb[0].mxu0
          %v3567 = vadd.f32 0.0, %v3566
          %v3568 = vpop.f32.mrb[0].mxu0
          %v3569 = vpop.f32.mrb[0].mxu0
          %v3570 = vadd.f32 0.0, %v3569
          %v3571 = vpop.f32.mrb[0].mxu0
          %3572 = vmatprep.mubr.bf16.mxu0 0
          %3573 = vmatmul.mubr.bf16.gmra.mrb[0].mxu0 %v3425
          %v3574 = vpop.f32.mrb[0].mxu0
          %v3575 = vadd.f32 0.0, %v3574
          %v3576 = vpop.f32.mrb[0].mxu0
          %v3577 = vpop.f32.mrb[0].mxu0
          %v3578 = vadd.f32 0.0, %v3577
          %v3579 = vpop.f32.mrb[0].mxu0
          %3580 = vmatprep.mubr.bf16.mxu0 0
          %3581 = vmatmul.mubr.bf16.gmra.mrb[0].mxu0 %v3426
          %v3582 = vpop.f32.mrb[0].mxu0
          %v3583 = vadd.f32 0.0, %v3582
          %v3584 = vpop.f32.mrb[0].mxu0
          %v3585 = vpop.f32.mrb[0].mxu0
          %v3586 = vadd.f32 0.0, %v3585
          %v3587 = vpop.f32.mrb[0].mxu0
          %3588 = vmatprep.mubr.bf16.mxu0 0
          %3589 = vmatmul.mubr.bf16.gmra.mrb[0].mxu0 %v3427
          %v3590 = vpop.f32.mrb[0].mxu0
          %v3591 = vadd.f32 0.0, %v3590
          %v3592 = vpop.f32.mrb[0].mxu0
          %v3593 = vpop.f32.mrb[0].mxu0
          %v3594 = vadd.f32 0.0, %v3593
          %v3595 = vpop.f32.mrb[0].mxu0
          %3596 = vmatprep.mubr.bf16.mxu0 0
          %3597 = vmatmul.mubr.bf16.gmra.mrb[0].mxu0 %v3428
          %v3598 = vpop.f32.mrb[0].mxu0
          %v3599 = vadd.f32 0.0, %v3598
          %v3600 = vpop.f32.mrb[0].mxu0
          %v3601 = vpop.f32.mrb[0].mxu0
          %v3602 = vadd.f32 0.0, %v3601
          %v3603 = vpop.f32.mrb[0].mxu0
          %3604 = vmatprep.mubr.bf16.mxu0 0
          %3605 = vmatmul.mubr.bf16.gmra.mrb[0].mxu0 %v3429
          %v3606 = vpop.f32.mrb[0].mxu0
          %v3607 = vadd.f32 0.0, %v3606
          %v3608 = vpop.f32.mrb[0].mxu0
          %v3609 = vpop.f32.mrb[0].mxu0
          %v3610 = vadd.f32 0.0, %v3609
          %v3611 = vpop.f32.mrb[0].mxu0
          %3612 = vmatprep.mubr.bf16.mxu0 0
          %3613 = vmatmul.mubr.bf16.gmra.mrb[0].mxu0 %v3430
          %v3614 = vpop.f32.mrb[0].mxu0
          %v3615 = vadd.f32 0.0, %v3614
          %v3616 = vpop.f32.mrb[0].mxu0
          %v3617 = vpop.f32.mrb[0].mxu0
          %v3618 = vadd.f32 0.0, %v3617
          %v3619 = vpop.f32.mrb[0].mxu0
          %3620 = vmatprep.mubr.bf16.mxu0 0
          %3621 = vmatmul.mubr.bf16.gmra.mrb[0].mxu0 %v3431
          %v3622 = vpop.f32.mrb[0].mxu0
          %v3623 = vadd.f32 0.0, %v3622
          %v3624 = vpop.f32.mrb[0].mxu0
          %v3625 = vpop.f32.mrb[0].mxu0
          %v3626 = vadd.f32 0.0, %v3625
          %v3627 = vpop.f32.mrb[0].mxu0
          %3628 = vmatprep.mubr.bf16.mxu0 0
          %3629 = vmatmul.mubr.bf16.gmra.mrb[0].mxu0 %v3432
          %v3630 = vpop.f32.mrb[0].mxu0
          %v3631 = vadd.f32 0.0, %v3630
          %v3632 = vpop.f32.mrb[0].mxu0
          %v3633 = vpop.f32.mrb[0].mxu0
          %v3634 = vadd.f32 0.0, %v3633
          %v3635 = vpop.f32.mrb[0].mxu0
          %3636 = vmatprep.mubr.bf16.mxu0 0
          %3637 = vmatmul.mubr.bf16.gmra.mrb[0].mxu0 %v3433
          %v3638 = vpop.f32.mrb[0].mxu0
          %v3639 = vadd.f32 0.0, %v3638
          %v3640 = vpop.f32.mrb[0].mxu0
          %v3641 = vpop.f32.mrb[0].mxu0
          %v3642 = vadd.f32 0.0, %v3641
          %v3643 = vpop.f32.mrb[0].mxu0
          %3644 = vmatprep.mubr.bf16.mxu0 0
          %3645 = vmatmul.mubr.bf16.gmra.mrb[0].mxu0 %v3434
          %v3646 = vpop.f32.mrb[0].mxu0
          %v3647 = vadd.f32 0.0, %v3646
          %v3648 = vpop.f32.mrb[0].mxu0
          %v3649 = vpop.f32.mrb[0].mxu0
          %v3650 = vadd.f32 0.0, %v3649
          %v3651 = vpop.f32.mrb[0].mxu0
          %3652 = vmatprep.mubr.bf16.mxu0 0
          %3653 = vmatmul.mubr.bf16.gmra.mrb[0].mxu0 %v3435
          %v3654 = vpop.f32.mrb[0].mxu0
          %v3655 = vadd.f32 0.0, %v3654
          %v3656 = vpop.f32.mrb[0].mxu0
          %v3657 = vpop.f32.mrb[0].mxu0
          %v3658 = vadd.f32 0.0, %v3657
          %v3659 = vpop.f32.mrb[0].mxu0
          %3660 = vdwg.mxu0
          %v3661 = vadd.f32 %v3051, %v3535
          %v3662 = vadd.f32 %v3052, %v3538
          %v3663 = vadd.f32 %v3053, %v3543
          %v3664 = vadd.f32 %v3054, %v3546
          %v3665 = vadd.f32 %v3055, %v3551
          %v3666 = vadd.f32 %v3056, %v3554
          %v3667 = vadd.f32 %v3057, %v3559
          %v3668 = vadd.f32 %v3058, %v3562
          %v3669 = vadd.f32 %v3059, %v3567
          %v3670 = vadd.f32 %v3060, %v3570
          %v3671 = vadd.f32 %v3061, %v3575
          %v3672 = vadd.f32 %v3062, %v3578
          %v3673 = vadd.f32 %v3063, %v3583
          %v3674 = vadd.f32 %v3064, %v3586
          %v3675 = vadd.f32 %v3065, %v3591
          %v3676 = vadd.f32 %v3066, %v3594
          %v3677 = vadd.f32 %v3067, %v3599
          %v3678 = vadd.f32 %v3068, %v3602
          %v3679 = vadd.f32 %v3069, %v3607
          %v3680 = vadd.f32 %v3070, %v3610
          %v3681 = vadd.f32 %v3071, %v3615
          %v3682 = vadd.f32 %v3072, %v3618
          %v3683 = vadd.f32 %v3073, %v3623
          %v3684 = vadd.f32 %v3074, %v3626
          %v3685 = vadd.f32 %v3075, %v3631
          %v3686 = vadd.f32 %v3076, %v3634
          %v3687 = vadd.f32 %v3077, %v3639
          %v3688 = vadd.f32 %v3078, %v3642
          %v3689 = vadd.f32 %v3079, %v3647
          %v3690 = vadd.f32 %v3080, %v3650
          %v3691 = vadd.f32 %v3081, %v3655
          %v3692 = vadd.f32 %v3082, %v3658
          %v3693 = vld [vmem:[#allocation10] sm:$0xff]
          %v3694 = vld [vmem:[#allocation10 + $0x8] sm:$0xff]
          %v3695 = vld [vmem:[#allocation10 + $0x10] sm:$0xff]
          %v3696 = vld [vmem:[#allocation10 + $0x18] sm:$0xff]
          %v3697 = vld [vmem:[#allocation10 + $0x20] sm:$0xff]
          %v3698 = vld [vmem:[#allocation10 + $0x28] sm:$0xff]
          %v3699 = vld [vmem:[#allocation10 + $0x30] sm:$0xff]
          %v3700 = vld [vmem:[#allocation10 + $0x38] sm:$0xff]
          %v3701 = vld [vmem:[#allocation10 + $0x40] sm:$0xff]
          %v3702 = vld [vmem:[#allocation10 + $0x48] sm:$0xff]
          %v3703 = vld [vmem:[#allocation10 + $0x50] sm:$0xff]
          %v3704 = vld [vmem:[#allocation10 + $0x58] sm:$0xff]
          %v3705 = vld [vmem:[#allocation10 + $0x60] sm:$0xff]
          %v3706 = vld [vmem:[#allocation10 + $0x68] sm:$0xff]
          %v3707 = vld [vmem:[#allocation10 + $0x70] sm:$0xff]
          %v3708 = vld [vmem:[#allocation10 + $0x78] sm:$0xff]
          %v3709 = vld [vmem:[#allocation10 + $0x80] sm:$0xff]
          %v3710 = vld [vmem:[#allocation10 + $0x88] sm:$0xff]
          %v3711 = vld [vmem:[#allocation10 + $0x90] sm:$0xff]
          %v3712 = vld [vmem:[#allocation10 + $0x98] sm:$0xff]
          %v3713 = vld [vmem:[#allocation10 + $0xa0] sm:$0xff]
          %v3714 = vld [vmem:[#allocation10 + $0xa8] sm:$0xff]
          %v3715 = vld [vmem:[#allocation10 + $0xb0] sm:$0xff]
          %v3716 = vld [vmem:[#allocation10 + $0xb8] sm:$0xff]
          %v3717 = vld [vmem:[#allocation10 + $0xc0] sm:$0xff]
          %v3718 = vld [vmem:[#allocation10 + $0xc8] sm:$0xff]
          %v3719 = vld [vmem:[#allocation10 + $0xd0] sm:$0xff]
          %v3720 = vld [vmem:[#allocation10 + $0xd8] sm:$0xff]
          %v3721 = vld [vmem:[#allocation10 + $0xe0] sm:$0xff]
          %v3722 = vld [vmem:[#allocation10 + $0xe8] sm:$0xff]
          %v3723 = vld [vmem:[#allocation10 + $0xf0] sm:$0xff]
          %v3724 = vld [vmem:[#allocation10 + $0xf8] sm:$0xff]
          %v3725 = vadd.f32 %v3661, %v3693
          %v3726 = vadd.f32 %v3662, %v3694
          %v3727 = vadd.f32 %v3663, %v3695
          %v3728 = vadd.f32 %v3664, %v3696
          %v3729 = vadd.f32 %v3665, %v3697
          %v3730 = vadd.f32 %v3666, %v3698
          %v3731 = vadd.f32 %v3667, %v3699
          %v3732 = vadd.f32 %v3668, %v3700
          %v3733 = vadd.f32 %v3669, %v3701
          %v3734 = vadd.f32 %v3670, %v3702
          %v3735 = vadd.f32 %v3671, %v3703
          %v3736 = vadd.f32 %v3672, %v3704
          %v3737 = vadd.f32 %v3673, %v3705
          %v3738 = vadd.f32 %v3674, %v3706
          %v3739 = vadd.f32 %v3675, %v3707
          %v3740 = vadd.f32 %v3676, %v3708
          %v3741 = vadd.f32 %v3677, %v3709
          %v3742 = vadd.f32 %v3678, %v3710
          %v3743 = vadd.f32 %v3679, %v3711
          %v3744 = vadd.f32 %v3680, %v3712
          %v3745 = vadd.f32 %v3681, %v3713
          %v3746 = vadd.f32 %v3682, %v3714
          %v3747 = vadd.f32 %v3683, %v3715
          %v3748 = vadd.f32 %v3684, %v3716
          %v3749 = vadd.f32 %v3685, %v3717
          %v3750 = vadd.f32 %v3686, %v3718
          %v3751 = vadd.f32 %v3687, %v3719
          %v3752 = vadd.f32 %v3688, %v3720
          %v3753 = vadd.f32 %v3689, %v3721
          %v3754 = vadd.f32 %v3690, %v3722
          %v3755 = vadd.f32 %v3691, %v3723
          %v3756 = vadd.f32 %v3692, %v3724
          %v3757 = vmax.f32 %v3725, 0.0
          %v3758 = vmax.f32 %v3726, 0.0
          %v3759 = vmax.f32 %v3727, 0.0
          %v3760 = vmax.f32 %v3728, 0.0
          %v3761 = vmax.f32 %v3729, 0.0
          %v3762 = vmax.f32 %v3730, 0.0
          %v3763 = vmax.f32 %v3731, 0.0
          %v3764 = vmax.f32 %v3732, 0.0
          %v3765 = vmax.f32 %v3733, 0.0
          %v3766 = vmax.f32 %v3734, 0.0
          %v3767 = vmax.f32 %v3735, 0.0
          %v3768 = vmax.f32 %v3736, 0.0
          %v3769 = vmax.f32 %v3737, 0.0
          %v3770 = vmax.f32 %v3738, 0.0
          %v3771 = vmax.f32 %v3739, 0.0
          %v3772 = vmax.f32 %v3740, 0.0
          %v3773 = vmax.f32 %v3741, 0.0
          %v3774 = vmax.f32 %v3742, 0.0
          %v3775 = vmax.f32 %v3743, 0.0
          %v3776 = vmax.f32 %v3744, 0.0
          %v3777 = vmax.f32 %v3745, 0.0
          %v3778 = vmax.f32 %v3746, 0.0
          %v3779 = vmax.f32 %v3747, 0.0
          %v3780 = vmax.f32 %v3748, 0.0
          %v3781 = vmax.f32 %v3749, 0.0
          %v3782 = vmax.f32 %v3750, 0.0
          %v3783 = vmax.f32 %v3751, 0.0
          %v3784 = vmax.f32 %v3752, 0.0
          %v3785 = vmax.f32 %v3753, 0.0
          %v3786 = vmax.f32 %v3754, 0.0
          %v3787 = vmax.f32 %v3755, 0.0
          %v3788 = vmax.f32 %v3756, 0.0
          %v3789 = vpack.c.bf16 %v3758, %v3757
          %v3790 = vpack.c.bf16 %v3760, %v3759
          %v3791 = vpack.c.bf16 %v3762, %v3761
          %v3792 = vpack.c.bf16 %v3764, %v3763
          %v3793 = vpack.c.bf16 %v3766, %v3765
          %v3794 = vpack.c.bf16 %v3768, %v3767
          %v3795 = vpack.c.bf16 %v3770, %v3769
          %v3796 = vpack.c.bf16 %v3772, %v3771
          %v3797 = vpack.c.bf16 %v3774, %v3773
          %v3798 = vpack.c.bf16 %v3776, %v3775
          %v3799 = vpack.c.bf16 %v3778, %v3777
          %v3800 = vpack.c.bf16 %v3780, %v3779
          %v3801 = vpack.c.bf16 %v3782, %v3781
          %v3802 = vpack.c.bf16 %v3784, %v3783
          %v3803 = vpack.c.bf16 %v3786, %v3785
          %v3804 = vpack.c.bf16 %v3788, %v3787
          %v3821 = vunpack.c.l.b16 %v3789
          %v3822 = vunpack.c.h.b16 %v3789
          %v3823 = vunpack.c.l.b16 %v3790
          %v3824 = vunpack.c.h.b16 %v3790
          %v3825 = vunpack.c.l.b16 %v3791
          %v3826 = vunpack.c.h.b16 %v3791
          %v3827 = vunpack.c.l.b16 %v3792
          %v3828 = vunpack.c.h.b16 %v3792
          %v3829 = vunpack.c.l.b16 %v3793
          %v3830 = vunpack.c.h.b16 %v3793
          %v3831 = vunpack.c.l.b16 %v3794
          %v3832 = vunpack.c.h.b16 %v3794
          %v3833 = vunpack.c.l.b16 %v3795
          %v3834 = vunpack.c.h.b16 %v3795
          %v3835 = vunpack.c.l.b16 %v3796
          %v3836 = vunpack.c.h.b16 %v3796
          %v3837 = vunpack.c.l.b16 %v3797
          %v3838 = vunpack.c.h.b16 %v3797
          %v3839 = vunpack.c.l.b16 %v3798
          %v3840 = vunpack.c.h.b16 %v3798
          %v3841 = vunpack.c.l.b16 %v3799
          %v3842 = vunpack.c.h.b16 %v3799
          %v3843 = vunpack.c.l.b16 %v3800
          %v3844 = vunpack.c.h.b16 %v3800
          %v3845 = vunpack.c.l.b16 %v3801
          %v3846 = vunpack.c.h.b16 %v3801
          %v3847 = vunpack.c.l.b16 %v3802
          %v3848 = vunpack.c.h.b16 %v3802
          %v3849 = vunpack.c.l.b16 %v3803
          %v3850 = vunpack.c.h.b16 %v3803
          %v3851 = vunpack.c.l.b16 %v3804
          %v3852 = vunpack.c.h.b16 %v3804
          %v3853 = vpack.c.b16 %v3821, %v3821
          %v3854 = vpack.c.b16 %v3822, %v3822
          %v3855 = vpack.c.b16 %v3823, %v3823
          %v3856 = vpack.c.b16 %v3824, %v3824
          %v3857 = vpack.c.b16 %v3825, %v3825
          %v3858 = vpack.c.b16 %v3826, %v3826
          %v3859 = vpack.c.b16 %v3827, %v3827
          %v3860 = vpack.c.b16 %v3828, %v3828
          %v3861 = vpack.c.b16 %v3829, %v3829
          %v3862 = vpack.c.b16 %v3830, %v3830
          %v3863 = vpack.c.b16 %v3831, %v3831
          %v3864 = vpack.c.b16 %v3832, %v3832
          %v3865 = vpack.c.b16 %v3833, %v3833
          %v3866 = vpack.c.b16 %v3834, %v3834
          %v3867 = vpack.c.b16 %v3835, %v3835
          %v3868 = vpack.c.b16 %v3836, %v3836
          %v3869 = vpack.c.b16 %v3837, %v3837
          %v3870 = vpack.c.b16 %v3838, %v3838
          %v3871 = vpack.c.b16 %v3839, %v3839
          %v3872 = vpack.c.b16 %v3840, %v3840
          %v3873 = vpack.c.b16 %v3841, %v3841
          %v3874 = vpack.c.b16 %v3842, %v3842
          %v3875 = vpack.c.b16 %v3843, %v3843
          %v3876 = vpack.c.b16 %v3844, %v3844
          %v3877 = vpack.c.b16 %v3845, %v3845
          %v3878 = vpack.c.b16 %v3846, %v3846
          %v3879 = vpack.c.b16 %v3847, %v3847
          %v3880 = vpack.c.b16 %v3848, %v3848
          %v3881 = vpack.c.b16 %v3849, %v3849
          %v3882 = vpack.c.b16 %v3850, %v3850
          %v3883 = vpack.c.b16 %v3851, %v3851
          %v3884 = vpack.c.b16 %v3852, %v3852
          %3917 = vst [vmem:[#allocation12] sm:$0xf] %v3853
          %3918 = vst [vmem:[#allocation12 + $0x4] sm:$0xf] %v3854
          %3919 = vst [vmem:[#allocation12 + $0x8] sm:$0xf] %v3855
          %3920 = vst [vmem:[#allocation12 + $0xc] sm:$0xf] %v3856
          %3921 = vst [vmem:[#allocation12 + $0x10] sm:$0xf] %v3857
          %3922 = vst [vmem:[#allocation12 + $0x14] sm:$0xf] %v3858
          %3923 = vst [vmem:[#allocation12 + $0x18] sm:$0xf] %v3859
          %3924 = vst [vmem:[#allocation12 + $0x1c] sm:$0xf] %v3860
          %3925 = vst [vmem:[#allocation12 + $0x20] sm:$0xf] %v3861
          %3926 = vst [vmem:[#allocation12 + $0x24] sm:$0xf] %v3862
          %3927 = vst [vmem:[#allocation12 + $0x28] sm:$0xf] %v3863
          %3928 = vst [vmem:[#allocation12 + $0x2c] sm:$0xf] %v3864
          %3929 = vst [vmem:[#allocation12 + $0x30] sm:$0xf] %v3865
          %3930 = vst [vmem:[#allocation12 + $0x34] sm:$0xf] %v3866
          %3931 = vst [vmem:[#allocation12 + $0x38] sm:$0xf] %v3867
          %3932 = vst [vmem:[#allocation12 + $0x3c] sm:$0xf] %v3868
          %3933 = vst [vmem:[#allocation12 + $0x40] sm:$0xf] %v3869
          %3934 = vst [vmem:[#allocation12 + $0x44] sm:$0xf] %v3870
          %3935 = vst [vmem:[#allocation12 + $0x48] sm:$0xf] %v3871
          %3936 = vst [vmem:[#allocation12 + $0x4c] sm:$0xf] %v3872
          %3937 = vst [vmem:[#allocation12 + $0x50] sm:$0xf] %v3873
          %3938 = vst [vmem:[#allocation12 + $0x54] sm:$0xf] %v3874
          %3939 = vst [vmem:[#allocation12 + $0x58] sm:$0xf] %v3875
          %3940 = vst [vmem:[#allocation12 + $0x5c] sm:$0xf] %v3876
          %3941 = vst [vmem:[#allocation12 + $0x60] sm:$0xf] %v3877
          %3942 = vst [vmem:[#allocation12 + $0x64] sm:$0xf] %v3878
          %3943 = vst [vmem:[#allocation12 + $0x68] sm:$0xf] %v3879
          %3944 = vst [vmem:[#allocation12 + $0x6c] sm:$0xf] %v3880
          %3945 = vst [vmem:[#allocation12 + $0x70] sm:$0xf] %v3881
          %3946 = vst [vmem:[#allocation12 + $0x74] sm:$0xf] %v3882
          %3947 = vst [vmem:[#allocation12 + $0x78] sm:$0xf] %v3883
          %3948 = vst [vmem:[#allocation12 + $0x7c] sm:$0xf] %v3884
        $region84: #{tpu_custom_call.1} parent=51 // pred_fallthru
          _
        // Predicated region
        $region85: #{tpu_custom_call.1} parent=51 // pred_check
          %p3949 = pneg %p269
        $region86: #{tpu_custom_call.1} parent=51 // pred_check_branch
          %3951 = sbr.rel (%p3949) target = $region88
        $region87: #{tpu_custom_call.1} parent=51 // pred_region
          %s3952 = smul.u32 32, %s28
          %s3954 = ssub.s32 2048, 2048
          %3955 = vsyncadd [#allocation6], %s3954
          %s3956 = smul.addr %s3952, 64
          %s3957 = scalar_lea.hbm %s8, %s3956
          %s3958 = sshll.u32 [#allocation12], 4
          %s3959 = int_to_ptr.vmem [resolvable:$true] %s3958
          %3964 = dma.vmem_to_hbm [thread:$0]  %s3959, 2048, %s3957, [#allocation6], 64, 64, 4
        $region88: #{tpu_custom_call.1} parent=51 // pred_fallthru
          _
        // Predicated region
        $region89: #{tpu_custom_call.1} parent=51 // pred_check
          %p3965 = pneg %p269
        $region90: #{tpu_custom_call.1} parent=51 // pred_check_branch
          %3967 = sbr.rel (%p3965) target = $region92
        $region91: #{tpu_custom_call.1} parent=51 // pred_region
          %3968 = dma.done [#allocation6], 2048
        $region92: #{tpu_custom_call.1} parent=51 // pred_fallthru
          _
      $region52: #{tpu_custom_call.1} parent=5 // pred_fallthru
        _
      %p3969 = scmp.le.s32.totalorder 2, %s18
      // Predicated region
      $region93: #{tpu_custom_call.1} parent=5 // pred_check
        %p3970 = pneg %p3969
      $region94: #{tpu_custom_call.1} parent=5 // pred_check_branch
        %3972 = sbr.rel (%p3970) target = $region96
      $region95: #{tpu_custom_call.1} parent=5 // pred_region
        %s3973 = ssub.s32 %s18, 2
      $region96: #{tpu_custom_call.1} parent=5 // pred_fallthru
        _
    $region6: #{tpu_custom_call.1} parent=1 // loop_footer
      %s22 = sadd.s32 1, %s18
    $region7: #{tpu_custom_call.1} parent=1 // loop_footer_branch
      %17 = sbr.rel target = $region3
    $region8: #{tpu_custom_call.1} parent=1 // loop_exit
      _
    %3974 = vsyncpa [#allocation5], 1
    %s3975 = scalar_lea.sflag [#allocation5], 1
    %3976 = vsyncpa %s3975, 1
    %3977 = vsyncpa [#allocation8], 1
    %3978 = vsyncpa [#allocation11], 1
    %3979 = vsyncpa [#allocation6], 1
    %s3980 = scalar_lea.sflag [#allocation6], 1
    %3981 = vsyncpa %s3980, 1

</llo_original>
